<compile_context>
chip_gen: v5e
topology: v5e:2x2
jax: 0.10.0
libtpu: 0.0.40
codegen_flags: <defaults>
</compile_context>

<pallas_src>
import math

import jax
import jax.numpy as jnp
from jax.experimental import pallas as pl

# ---------------- model hyper-parameters (small, ViT-style) ----------------
B = 2                      # batch
C = 3                      # input channels (RGB, like timm ViT)
IMG = 32                   # spatial size (small stand-in for 224)
PATCH = 16                 # patch size (matches vit_base_patch16)
N_PATCH = (IMG // PATCH) ** 2          # 4 patches
SEQ = N_PATCH + 1                      # +1 CLS token -> 5
DIM = 128                  # embed dim (small, lane-dense stand-in for 768)
HEADS = 4
HEAD_DIM = DIM // HEADS                # 32
MLP = DIM * 4                          # 512
DEPTH = 2                  # small stand-in for 12 blocks
PATCH_DIM = C * PATCH * PATCH          # 768
PATCH_AUG = PATCH_DIM + 2              # + [cls one-hot, conv-bias one-hot]
LN_EPS = 1e-6
SCALE = 1.0 / math.sqrt(HEAD_DIM)
NEG_INF = -1e30


# ---------------- in-kernel helpers ----------------
def _layernorm(x, g, b):
    mu = jnp.mean(x, axis=-1, keepdims=True)
    xc = x - mu
    var = jnp.mean(xc * xc, axis=-1, keepdims=True)
    return xc * jax.lax.rsqrt(var + LN_EPS) * g + b


def _gelu(x):
    # TODO(synk): timm ViT uses exact erf-GELU; tanh approximation used here.
    c = math.sqrt(2.0 / math.pi)
    return 0.5 * x * (1.0 + jnp.tanh(c * (x + 0.044715 * x * x * x)))


# ---------------- fused encoder kernel ----------------
def encoder_kernel(p_ref, w_aug_ref, pos_ref, bias_ref,
                   ln1_g_ref, ln1_b_ref, qkv_w_ref, qkv_b_ref,
                   proj_w_ref, proj_b_ref, ln2_g_ref, ln2_b_ref,
                   fc1_w_ref, fc1_b_ref, fc2_w_ref, fc2_b_ref,
                   lnf_g_ref, lnf_b_ref, o_ref):
    """Whole ViT encoder in one kernel invocation (no grid).

    p_ref     : (B*SEQ, PATCH_AUG) f32  augmented token rows (pixels + one-hots)
    w_aug_ref : (PATCH_AUG, DIM)   bf16 [patch_w ; cls ; patch_bias]
    pos_ref   : (B*SEQ, DIM)       f32  positional embedding, tiled over batch
    bias_ref  : (B*SEQ, B*SEQ)     f32  block-diagonal batch mask (0 / -1e30)
    block weights stacked on a leading DEPTH axis (big matmul weights bf16)
    o_ref     : (B, DIM)           f32  final-LN'd CLS features
    """
    bn = o_ref.shape[0]

    # --- patch embed + CLS insertion + conv bias + pos embed: one matmul ---
    x = jnp.dot(p_ref[...].astype(jnp.bfloat16), w_aug_ref[...],
                preferred_element_type=jnp.float32) + pos_ref[...]   # (B*SEQ, DIM)
    attn_bias = bias_ref[...]                                        # (B*SEQ, B*SEQ)

    for d in range(DEPTH):                       # fully unrolled depth loop
        # ---- multi-head self-attention (pre-LN), heads batched ----
        h = _layernorm(x, ln1_g_ref[d], ln1_b_ref[d])
        qkv = jnp.dot(h.astype(jnp.bfloat16), qkv_w_ref[d],
                      preferred_element_type=jnp.float32) + qkv_b_ref[d]

        q = jnp.stack([qkv[:, i * HEAD_DIM:(i + 1) * HEAD_DIM]
                       for i in range(HEADS)], axis=0)               # (H, T, hd)
        k = jnp.stack([qkv[:, DIM + i * HEAD_DIM:DIM + (i + 1) * HEAD_DIM]
                       for i in range(HEADS)], axis=0)
        v = jnp.stack([qkv[:, 2 * DIM + i * HEAD_DIM:2 * DIM + (i + 1) * HEAD_DIM]
                       for i in range(HEADS)], axis=0)

        s = jnp.einsum('hqd,hkd->hqk', q, k,
                       preferred_element_type=jnp.float32) * SCALE   # (H, T, T)
        s = s + attn_bias[None, :, :]            # keep attention within-batch
        s = s - jnp.max(s, axis=-1, keepdims=True)
        e = jnp.exp(s)
        p_attn = e * pl.reciprocal(jnp.sum(e, axis=-1, keepdims=True), approx=True)
        ctx = jnp.einsum('hqk,hkd->hqd', p_attn, v,
                         preferred_element_type=jnp.float32)         # (H, T, hd)

        attn = jnp.concatenate([ctx[i] for i in range(HEADS)], axis=-1)  # (T, DIM)
        attn = jnp.dot(attn.astype(jnp.bfloat16), proj_w_ref[d],
                       preferred_element_type=jnp.float32) + proj_b_ref[d]
        x = x + attn

        # ---- MLP (pre-LN) ----
        h2 = _layernorm(x, ln2_g_ref[d], ln2_b_ref[d])
        h2 = jnp.dot(h2.astype(jnp.bfloat16), fc1_w_ref[d],
                     preferred_element_type=jnp.float32) + fc1_b_ref[d]
        h2 = _gelu(h2)
        h2 = jnp.dot(h2.astype(jnp.bfloat16), fc2_w_ref[d],
                     preferred_element_type=jnp.float32) + fc2_b_ref[d]
        x = x + h2

    # --- final LayerNorm on each batch element's CLS token (head = Identity) ---
    for b in range(bn):
        cls = _layernorm(x[b * SEQ:b * SEQ + 1, :], lnf_g_ref[...], lnf_b_ref[...])
        o_ref[pl.ds(b, 1), :] = cls


# ---------------- wrapper ----------------
def encoder_forward(x, params):
    """x: (B, C, IMG, IMG) NCHW float32 -> (B, DIM) encoder features."""
    bn = x.shape[0]
    n_tok = bn * SEQ

    # --- glue: extract non-overlapping patches, flatten in (C, ph, pw) order ---
    p = x.reshape(bn, C, IMG // PATCH, PATCH, IMG // PATCH, PATCH)
    p = p.transpose(0, 2, 4, 1, 3, 5).reshape(bn, N_PATCH, PATCH_DIM)

    # Augment token rows with [cls one-hot, bias one-hot] so CLS insertion and
    # the conv bias fold into the single in-kernel patch-embedding matmul.
    patch_rows = jnp.concatenate(
        [p, jnp.zeros((bn, N_PATCH, 1), p.dtype), jnp.ones((bn, N_PATCH, 1), p.dtype)],
        axis=-1)
    cls_rows = jnp.zeros((bn, 1, PATCH_AUG), p.dtype).at[:, :, PATCH_DIM].set(1.0)
    p_aug = jnp.concatenate([cls_rows, patch_rows], axis=1).reshape(n_tok, PATCH_AUG)

    # Positional embedding tiled over batch; block-diagonal batch mask for scores.
    pos_tiled = jnp.tile(params["pos"], (bn, 1))
    tok_batch = jnp.arange(n_tok) // SEQ
    attn_bias = jnp.where(tok_batch[:, None] == tok_batch[None, :],
                          0.0, NEG_INF).astype(jnp.float32)

    # Advisory cost estimate for XLA scheduling around the single custom call.
    flops = (2 * n_tok * PATCH_AUG * DIM
             + DEPTH * (2 * n_tok * DIM * 3 * DIM
                        + 2 * 2 * HEADS * n_tok * n_tok * HEAD_DIM
                        + 2 * n_tok * DIM * DIM
                        + 2 * 2 * n_tok * DIM * MLP))
    transcendentals = DEPTH * (HEADS * n_tok * n_tok + n_tok * MLP)
    bytes_accessed = int(
        sum(v.size * v.dtype.itemsize for v in jax.tree_util.tree_leaves(params))
        + p_aug.size * p_aug.dtype.itemsize
        + pos_tiled.size * 4 + attn_bias.size * 4 + bn * DIM * 4)

    out = pl.pallas_call(
        encoder_kernel,
        out_shape=jax.ShapeDtypeStruct((bn, DIM), jnp.float32),
        cost_estimate=pl.CostEstimate(flops=flops,
                                      transcendentals=transcendentals,
                                      bytes_accessed=bytes_accessed),
    )(p_aug, params["w_aug"], pos_tiled, attn_bias,
      params["ln1_g"], params["ln1_b"], params["qkv_w"], params["qkv_b"],
      params["proj_w"], params["proj_b"], params["ln2_g"], params["ln2_b"],
      params["fc1_w"], params["fc1_b"], params["fc2_w"], params["fc2_b"],
      params["ln_g"], params["ln_b"])
    return out


# ---------------- deterministic parameter init ----------------
def init_params(key):
    def nrm(k, shape, std=0.02):
        return (std * jax.random.normal(k, shape)).astype(jnp.float32)

    ks = iter(jax.random.split(key, 8))
    patch_w = nrm(next(ks), (PATCH_DIM, DIM))
    cls = nrm(next(ks), (1, DIM))
    patch_b = jnp.zeros((1, DIM), jnp.float32)
    # Augmented embedding weight: rows = [patch_w ; cls token ; conv bias].
    w_aug = jnp.concatenate([patch_w, cls, patch_b], axis=0).astype(jnp.bfloat16)

    params = {
        "w_aug": w_aug,                                     # (PATCH_AUG, DIM) bf16
        "pos": nrm(next(ks), (SEQ, DIM)),
        "ln1_g": jnp.ones((DEPTH, 1, DIM), jnp.float32),
        "ln1_b": jnp.zeros((DEPTH, 1, DIM), jnp.float32),
        "qkv_w": nrm(next(ks), (DEPTH, DIM, 3 * DIM)).astype(jnp.bfloat16),
        "qkv_b": jnp.zeros((DEPTH, 1, 3 * DIM), jnp.float32),
        "proj_w": nrm(next(ks), (DEPTH, DIM, DIM)).astype(jnp.bfloat16),
        "proj_b": jnp.zeros((DEPTH, 1, DIM), jnp.float32),
        "ln2_g": jnp.ones((DEPTH, 1, DIM), jnp.float32),
        "ln2_b": jnp.zeros((DEPTH, 1, DIM), jnp.float32),
        "fc1_w": nrm(next(ks), (DEPTH, DIM, MLP)).astype(jnp.bfloat16),
        "fc1_b": jnp.zeros((DEPTH, 1, MLP), jnp.float32),
        "fc2_w": nrm(next(ks), (DEPTH, MLP, DIM)).astype(jnp.bfloat16),
        "fc2_b": jnp.zeros((DEPTH, 1, DIM), jnp.float32),
        "ln_g": jnp.ones((1, DIM), jnp.float32),
        "ln_b": jnp.zeros((1, DIM), jnp.float32),
    }
    return params


if __name__ == "__main__":
    key = jax.random.PRNGKey(0)
    pkey, xkey = jax.random.split(key)
    params = init_params(pkey)
    x = jax.random.normal(xkey, (B, C, IMG, IMG), dtype=jnp.float32)

    y = jax.jit(encoder_forward)(x, params)
    y = jax.block_until_ready(y)
    assert y.shape == (B, DIM) and y.dtype == jnp.float32
    assert bool(jnp.all(jnp.isfinite(y)))
    print("KERNEL_OK")
</pallas_src>

<mosaic_0001>
module attributes {stable_mosaic.version = 11 : i64} {
  func.func @encoder_kernel(%arg0: memref<10x770xf32, #tpu.memory_space<vmem>>, %arg1: memref<770x128xbf16, #tpu.memory_space<vmem>>, %arg2: memref<10x128xf32, #tpu.memory_space<vmem>>, %arg3: memref<10x10xf32, #tpu.memory_space<vmem>>, %arg4: memref<2x1x128xf32, #tpu.memory_space<vmem>>, %arg5: memref<2x1x128xf32, #tpu.memory_space<vmem>>, %arg6: memref<2x128x384xbf16, #tpu.memory_space<vmem>>, %arg7: memref<2x1x384xf32, #tpu.memory_space<vmem>>, %arg8: memref<2x128x128xbf16, #tpu.memory_space<vmem>>, %arg9: memref<2x1x128xf32, #tpu.memory_space<vmem>>, %arg10: memref<2x1x128xf32, #tpu.memory_space<vmem>>, %arg11: memref<2x1x128xf32, #tpu.memory_space<vmem>>, %arg12: memref<2x128x512xbf16, #tpu.memory_space<vmem>>, %arg13: memref<2x1x512xf32, #tpu.memory_space<vmem>>, %arg14: memref<2x512x128xbf16, #tpu.memory_space<vmem>>, %arg15: memref<2x1x128xf32, #tpu.memory_space<vmem>>, %arg16: memref<1x128xf32, #tpu.memory_space<vmem>>, %arg17: memref<1x128xf32, #tpu.memory_space<vmem>>, %arg18: memref<2x128xf32, #tpu.memory_space<vmem>>) attributes {dimension_semantics = [], scalar_prefetch = 0 : i64, scratch_operands = 0 : i64, tpu.core_type = #tpu.core_type<tc>} {
    %c0 = arith.constant 0 : index
    %c0_0 = arith.constant 0 : index
    %0 = vector.load %arg0[%c0, %c0_0] : memref<10x770xf32, #tpu.memory_space<vmem>>, vector<10x770xf32>
    %1 = arith.truncf %0 : vector<10x770xf32> to vector<10x770xbf16>
    %c0_1 = arith.constant 0 : index
    %c0_2 = arith.constant 0 : index
    %2 = vector.load %arg1[%c0_1, %c0_2] : memref<770x128xbf16, #tpu.memory_space<vmem>>, vector<770x128xbf16>
    %cst = arith.constant dense<0.000000e+00> : vector<10x128xf32>
    %3 = tpu.matmul %1, %2, %cst {dimension_numbers = #tpu.dot_dimension_numbers<[1], [0], [0], [1], [0, 0, 1, 1], [], []>} : vector<10x770xbf16>, vector<770x128xbf16>, vector<10x128xf32> -> vector<10x128xf32>
    %c0_3 = arith.constant 0 : index
    %c0_4 = arith.constant 0 : index
    %4 = vector.load %arg2[%c0_3, %c0_4] : memref<10x128xf32, #tpu.memory_space<vmem>>, vector<10x128xf32>
    %5 = arith.addf %3, %4 : vector<10x128xf32>
    %c0_5 = arith.constant 0 : index
    %c0_6 = arith.constant 0 : index
    %6 = vector.load %arg3[%c0_5, %c0_6] : memref<10x10xf32, #tpu.memory_space<vmem>>, vector<10x10xf32>
    %c0_7 = arith.constant 0 : index
    %c0_8 = arith.constant 0 : index
    %c0_9 = arith.constant 0 : index
    %7 = vector.load %arg4[%c0_7, %c0_8, %c0_9] : memref<2x1x128xf32, #tpu.memory_space<vmem>>, vector<1x1x128xf32>
    %8 = vector.shape_cast %7 : vector<1x1x128xf32> to vector<1x128xf32>
    %c0_10 = arith.constant 0 : index
    %c0_11 = arith.constant 0 : index
    %c0_12 = arith.constant 0 : index
    %9 = vector.load %arg5[%c0_10, %c0_11, %c0_12] : memref<2x1x128xf32, #tpu.memory_space<vmem>>, vector<1x1x128xf32>
    %10 = vector.shape_cast %9 : vector<1x1x128xf32> to vector<1x128xf32>
    %cst_13 = arith.constant dense<0.000000e+00> : vector<10xf32>
    %11 = vector.multi_reduction <add>, %5, %cst_13 [1] : vector<10x128xf32> to vector<10xf32>
    %12 = vector.shape_cast %11 : vector<10xf32> to vector<10x1xf32>
    %cst_14 = arith.constant 1.280000e+02 : f32
    %13 = vector.broadcast %cst_14 : f32 to vector<10x1xf32>
    %14 = arith.divf %12, %13 : vector<10x1xf32>
    %15 = vector.broadcast %14 : vector<10x1xf32> to vector<10x128xf32>
    %16 = arith.subf %5, %15 : vector<10x128xf32>
    %17 = arith.mulf %16, %16 : vector<10x128xf32>
    %cst_15 = arith.constant dense<0.000000e+00> : vector<10xf32>
    %18 = vector.multi_reduction <add>, %17, %cst_15 [1] : vector<10x128xf32> to vector<10xf32>
    %19 = vector.shape_cast %18 : vector<10xf32> to vector<10x1xf32>
    %cst_16 = arith.constant 1.280000e+02 : f32
    %20 = vector.broadcast %cst_16 : f32 to vector<10x1xf32>
    %21 = arith.divf %19, %20 : vector<10x1xf32>
    %cst_17 = arith.constant 9.99999997E-7 : f32
    %22 = vector.broadcast %cst_17 : f32 to vector<10x1xf32>
    %23 = arith.addf %21, %22 : vector<10x1xf32>
    %24 = math.rsqrt %23 : vector<10x1xf32>
    %25 = vector.broadcast %24 : vector<10x1xf32> to vector<10x128xf32>
    %26 = arith.mulf %16, %25 : vector<10x128xf32>
    %27 = vector.broadcast %8 : vector<1x128xf32> to vector<10x128xf32>
    %28 = arith.mulf %26, %27 : vector<10x128xf32>
    %29 = vector.broadcast %10 : vector<1x128xf32> to vector<10x128xf32>
    %30 = arith.addf %28, %29 : vector<10x128xf32>
    %31 = arith.truncf %30 : vector<10x128xf32> to vector<10x128xbf16>
    %c0_18 = arith.constant 0 : index
    %c0_19 = arith.constant 0 : index
    %c0_20 = arith.constant 0 : index
    %32 = vector.load %arg6[%c0_18, %c0_19, %c0_20] : memref<2x128x384xbf16, #tpu.memory_space<vmem>>, vector<1x128x384xbf16>
    %33 = vector.shape_cast %32 : vector<1x128x384xbf16> to vector<128x384xbf16>
    %cst_21 = arith.constant dense<0.000000e+00> : vector<10x384xf32>
    %34 = tpu.matmul %31, %33, %cst_21 {dimension_numbers = #tpu.dot_dimension_numbers<[1], [0], [0], [1], [0, 0, 1, 1], [], []>} : vector<10x128xbf16>, vector<128x384xbf16>, vector<10x384xf32> -> vector<10x384xf32>
    %c0_22 = arith.constant 0 : index
    %c0_23 = arith.constant 0 : index
    %c0_24 = arith.constant 0 : index
    %35 = vector.load %arg7[%c0_22, %c0_23, %c0_24] : memref<2x1x384xf32, #tpu.memory_space<vmem>>, vector<1x1x384xf32>
    %36 = vector.shape_cast %35 : vector<1x1x384xf32> to vector<1x384xf32>
    %37 = vector.broadcast %36 : vector<1x384xf32> to vector<10x384xf32>
    %38 = arith.addf %34, %37 : vector<10x384xf32>
    %39 = vector.extract_strided_slice %38 {offsets = [0, 0], sizes = [10, 32], strides = [1, 1]} : vector<10x384xf32> to vector<10x32xf32>
    %40 = vector.extract_strided_slice %38 {offsets = [0, 32], sizes = [10, 32], strides = [1, 1]} : vector<10x384xf32> to vector<10x32xf32>
    %41 = vector.extract_strided_slice %38 {offsets = [0, 64], sizes = [10, 32], strides = [1, 1]} : vector<10x384xf32> to vector<10x32xf32>
    %42 = vector.extract_strided_slice %38 {offsets = [0, 96], sizes = [10, 32], strides = [1, 1]} : vector<10x384xf32> to vector<10x32xf32>
    %43 = vector.shape_cast %39 : vector<10x32xf32> to vector<1x10x32xf32>
    %44 = vector.shape_cast %40 : vector<10x32xf32> to vector<1x10x32xf32>
    %45 = vector.shape_cast %41 : vector<10x32xf32> to vector<1x10x32xf32>
    %46 = vector.shape_cast %42 : vector<10x32xf32> to vector<1x10x32xf32>
    %47 = tpu.concatenate %43, %44, %45, %46 in 0 : vector<1x10x32xf32>, vector<1x10x32xf32>, vector<1x10x32xf32>, vector<1x10x32xf32> -> vector<4x10x32xf32>
    %48 = vector.extract_strided_slice %38 {offsets = [0, 128], sizes = [10, 32], strides = [1, 1]} : vector<10x384xf32> to vector<10x32xf32>
    %49 = vector.extract_strided_slice %38 {offsets = [0, 160], sizes = [10, 32], strides = [1, 1]} : vector<10x384xf32> to vector<10x32xf32>
    %50 = vector.extract_strided_slice %38 {offsets = [0, 192], sizes = [10, 32], strides = [1, 1]} : vector<10x384xf32> to vector<10x32xf32>
    %51 = vector.extract_strided_slice %38 {offsets = [0, 224], sizes = [10, 32], strides = [1, 1]} : vector<10x384xf32> to vector<10x32xf32>
    %52 = vector.shape_cast %48 : vector<10x32xf32> to vector<1x10x32xf32>
    %53 = vector.shape_cast %49 : vector<10x32xf32> to vector<1x10x32xf32>
    %54 = vector.shape_cast %50 : vector<10x32xf32> to vector<1x10x32xf32>
    %55 = vector.shape_cast %51 : vector<10x32xf32> to vector<1x10x32xf32>
    %56 = tpu.concatenate %52, %53, %54, %55 in 0 : vector<1x10x32xf32>, vector<1x10x32xf32>, vector<1x10x32xf32>, vector<1x10x32xf32> -> vector<4x10x32xf32>
    %57 = vector.extract_strided_slice %38 {offsets = [0, 256], sizes = [10, 32], strides = [1, 1]} : vector<10x384xf32> to vector<10x32xf32>
    %58 = vector.extract_strided_slice %38 {offsets = [0, 288], sizes = [10, 32], strides = [1, 1]} : vector<10x384xf32> to vector<10x32xf32>
    %59 = vector.extract_strided_slice %38 {offsets = [0, 320], sizes = [10, 32], strides = [1, 1]} : vector<10x384xf32> to vector<10x32xf32>
    %60 = vector.extract_strided_slice %38 {offsets = [0, 352], sizes = [10, 32], strides = [1, 1]} : vector<10x384xf32> to vector<10x32xf32>
    %61 = vector.shape_cast %57 : vector<10x32xf32> to vector<1x10x32xf32>
    %62 = vector.shape_cast %58 : vector<10x32xf32> to vector<1x10x32xf32>
    %63 = vector.shape_cast %59 : vector<10x32xf32> to vector<1x10x32xf32>
    %64 = vector.shape_cast %60 : vector<10x32xf32> to vector<1x10x32xf32>
    %65 = tpu.concatenate %61, %62, %63, %64 in 0 : vector<1x10x32xf32>, vector<1x10x32xf32>, vector<1x10x32xf32>, vector<1x10x32xf32> -> vector<4x10x32xf32>
    "tpu.trace_start"() <{level = 10 : i32, message = "hqd,hkd->hqk"}> : () -> ()
    %cst_25 = arith.constant dense<0.000000e+00> : vector<4x10x10xf32>
    %66 = tpu.matmul %47, %56, %cst_25 {dimension_numbers = #tpu.dot_dimension_numbers<[2], [2], [1], [1], [0, 0, 0, 1, 1, 1], [0], [0]>} : vector<4x10x32xf32>, vector<4x10x32xf32>, vector<4x10x10xf32> -> vector<4x10x10xf32>
    "tpu.trace_stop"() : () -> ()
    %cst_26 = arith.constant 0.176776692 : f32
    %67 = vector.broadcast %cst_26 : f32 to vector<4x10x10xf32>
    %68 = arith.mulf %66, %67 : vector<4x10x10xf32>
    %69 = vector.shape_cast %6 : vector<10x10xf32> to vector<1x10x10xf32>
    %70 = vector.broadcast %69 : vector<1x10x10xf32> to vector<4x10x10xf32>
    %71 = arith.addf %68, %70 : vector<4x10x10xf32>
    %cst_27 = arith.constant dense<0xFF800000> : vector<4x10xf32>
    %72 = vector.multi_reduction <maximumf>, %71, %cst_27 [2] : vector<4x10x10xf32> to vector<4x10xf32>
    %73 = vector.shape_cast %72 : vector<4x10xf32> to vector<4x10x1xf32>
    %74 = vector.broadcast %73 : vector<4x10x1xf32> to vector<4x10x10xf32>
    %75 = arith.subf %71, %74 : vector<4x10x10xf32>
    %76 = math.exp %75 : vector<4x10x10xf32>
    %cst_28 = arith.constant dense<0.000000e+00> : vector<4x10xf32>
    %77 = vector.multi_reduction <add>, %76, %cst_28 [2] : vector<4x10x10xf32> to vector<4x10xf32>
    %78 = vector.shape_cast %77 : vector<4x10xf32> to vector<4x10x1xf32>
    %79 = tpu.reciprocal %78 {approx = true} : vector<4x10x1xf32> -> vector<4x10x1xf32>
    %80 = vector.broadcast %79 : vector<4x10x1xf32> to vector<4x10x10xf32>
    %81 = arith.mulf %76, %80 : vector<4x10x10xf32>
    "tpu.trace_start"() <{level = 10 : i32, message = "hqk,hkd->hqd"}> : () -> ()
    %cst_29 = arith.constant dense<0.000000e+00> : vector<4x10x32xf32>
    %82 = tpu.matmul %81, %65, %cst_29 {dimension_numbers = #tpu.dot_dimension_numbers<[2], [1], [1], [2], [0, 0, 0, 1, 1, 2], [0], [0]>} : vector<4x10x10xf32>, vector<4x10x32xf32>, vector<4x10x32xf32> -> vector<4x10x32xf32>
    "tpu.trace_stop"() : () -> ()
    %83 = vector.extract_strided_slice %82 {offsets = [0, 0, 0], sizes = [1, 10, 32], strides = [1, 1, 1]} : vector<4x10x32xf32> to vector<1x10x32xf32>
    %84 = vector.shape_cast %83 : vector<1x10x32xf32> to vector<10x32xf32>
    %85 = vector.extract_strided_slice %82 {offsets = [1, 0, 0], sizes = [1, 10, 32], strides = [1, 1, 1]} : vector<4x10x32xf32> to vector<1x10x32xf32>
    %86 = vector.shape_cast %85 : vector<1x10x32xf32> to vector<10x32xf32>
    %87 = vector.extract_strided_slice %82 {offsets = [2, 0, 0], sizes = [1, 10, 32], strides = [1, 1, 1]} : vector<4x10x32xf32> to vector<1x10x32xf32>
    %88 = vector.shape_cast %87 : vector<1x10x32xf32> to vector<10x32xf32>
    %89 = vector.extract_strided_slice %82 {offsets = [3, 0, 0], sizes = [1, 10, 32], strides = [1, 1, 1]} : vector<4x10x32xf32> to vector<1x10x32xf32>
    %90 = vector.shape_cast %89 : vector<1x10x32xf32> to vector<10x32xf32>
    %91 = tpu.concatenate %84, %86, %88, %90 in 1 : vector<10x32xf32>, vector<10x32xf32>, vector<10x32xf32>, vector<10x32xf32> -> vector<10x128xf32>
    %92 = arith.truncf %91 : vector<10x128xf32> to vector<10x128xbf16>
    %c0_30 = arith.constant 0 : index
    %c0_31 = arith.constant 0 : index
    %c0_32 = arith.constant 0 : index
    %93 = vector.load %arg8[%c0_30, %c0_31, %c0_32] : memref<2x128x128xbf16, #tpu.memory_space<vmem>>, vector<1x128x128xbf16>
    %94 = vector.shape_cast %93 : vector<1x128x128xbf16> to vector<128x128xbf16>
    %cst_33 = arith.constant dense<0.000000e+00> : vector<10x128xf32>
    %95 = tpu.matmul %92, %94, %cst_33 {dimension_numbers = #tpu.dot_dimension_numbers<[1], [0], [0], [1], [0, 0, 1, 1], [], []>} : vector<10x128xbf16>, vector<128x128xbf16>, vector<10x128xf32> -> vector<10x128xf32>
    %c0_34 = arith.constant 0 : index
    %c0_35 = arith.constant 0 : index
    %c0_36 = arith.constant 0 : index
    %96 = vector.load %arg9[%c0_34, %c0_35, %c0_36] : memref<2x1x128xf32, #tpu.memory_space<vmem>>, vector<1x1x128xf32>
    %97 = vector.shape_cast %96 : vector<1x1x128xf32> to vector<1x128xf32>
    %98 = vector.broadcast %97 : vector<1x128xf32> to vector<10x128xf32>
    %99 = arith.addf %95, %98 : vector<10x128xf32>
    %100 = arith.addf %5, %99 : vector<10x128xf32>
    %c0_37 = arith.constant 0 : index
    %c0_38 = arith.constant 0 : index
    %c0_39 = arith.constant 0 : index
    %101 = vector.load %arg10[%c0_37, %c0_38, %c0_39] : memref<2x1x128xf32, #tpu.memory_space<vmem>>, vector<1x1x128xf32>
    %102 = vector.shape_cast %101 : vector<1x1x128xf32> to vector<1x128xf32>
    %c0_40 = arith.constant 0 : index
    %c0_41 = arith.constant 0 : index
    %c0_42 = arith.constant 0 : index
    %103 = vector.load %arg11[%c0_40, %c0_41, %c0_42] : memref<2x1x128xf32, #tpu.memory_space<vmem>>, vector<1x1x128xf32>
    %104 = vector.shape_cast %103 : vector<1x1x128xf32> to vector<1x128xf32>
    %cst_43 = arith.constant dense<0.000000e+00> : vector<10xf32>
    %105 = vector.multi_reduction <add>, %100, %cst_43 [1] : vector<10x128xf32> to vector<10xf32>
    %106 = vector.shape_cast %105 : vector<10xf32> to vector<10x1xf32>
    %cst_44 = arith.constant 1.280000e+02 : f32
    %107 = vector.broadcast %cst_44 : f32 to vector<10x1xf32>
    %108 = arith.divf %106, %107 : vector<10x1xf32>
    %109 = vector.broadcast %108 : vector<10x1xf32> to vector<10x128xf32>
    %110 = arith.subf %100, %109 : vector<10x128xf32>
    %111 = arith.mulf %110, %110 : vector<10x128xf32>
    %cst_45 = arith.constant dense<0.000000e+00> : vector<10xf32>
    %112 = vector.multi_reduction <add>, %111, %cst_45 [1] : vector<10x128xf32> to vector<10xf32>
    %113 = vector.shape_cast %112 : vector<10xf32> to vector<10x1xf32>
    %cst_46 = arith.constant 1.280000e+02 : f32
    %114 = vector.broadcast %cst_46 : f32 to vector<10x1xf32>
    %115 = arith.divf %113, %114 : vector<10x1xf32>
    %cst_47 = arith.constant 9.99999997E-7 : f32
    %116 = vector.broadcast %cst_47 : f32 to vector<10x1xf32>
    %117 = arith.addf %115, %116 : vector<10x1xf32>
    %118 = math.rsqrt %117 : vector<10x1xf32>
    %119 = vector.broadcast %118 : vector<10x1xf32> to vector<10x128xf32>
    %120 = arith.mulf %110, %119 : vector<10x128xf32>
    %121 = vector.broadcast %102 : vector<1x128xf32> to vector<10x128xf32>
    %122 = arith.mulf %120, %121 : vector<10x128xf32>
    %123 = vector.broadcast %104 : vector<1x128xf32> to vector<10x128xf32>
    %124 = arith.addf %122, %123 : vector<10x128xf32>
    %125 = arith.truncf %124 : vector<10x128xf32> to vector<10x128xbf16>
    %c0_48 = arith.constant 0 : index
    %c0_49 = arith.constant 0 : index
    %c0_50 = arith.constant 0 : index
    %126 = vector.load %arg12[%c0_48, %c0_49, %c0_50] : memref<2x128x512xbf16, #tpu.memory_space<vmem>>, vector<1x128x512xbf16>
    %127 = vector.shape_cast %126 : vector<1x128x512xbf16> to vector<128x512xbf16>
    %cst_51 = arith.constant dense<0.000000e+00> : vector<10x512xf32>
    %128 = tpu.matmul %125, %127, %cst_51 {dimension_numbers = #tpu.dot_dimension_numbers<[1], [0], [0], [1], [0, 0, 1, 1], [], []>} : vector<10x128xbf16>, vector<128x512xbf16>, vector<10x512xf32> -> vector<10x512xf32>
    %c0_52 = arith.constant 0 : index
    %c0_53 = arith.constant 0 : index
    %c0_54 = arith.constant 0 : index
    %129 = vector.load %arg13[%c0_52, %c0_53, %c0_54] : memref<2x1x512xf32, #tpu.memory_space<vmem>>, vector<1x1x512xf32>
    %130 = vector.shape_cast %129 : vector<1x1x512xf32> to vector<1x512xf32>
    %131 = vector.broadcast %130 : vector<1x512xf32> to vector<10x512xf32>
    %132 = arith.addf %128, %131 : vector<10x512xf32>
    %cst_55 = arith.constant 5.000000e-01 : f32
    %133 = vector.broadcast %cst_55 : f32 to vector<10x512xf32>
    %134 = arith.mulf %133, %132 : vector<10x512xf32>
    %cst_56 = arith.constant 4.471500e-02 : f32
    %135 = vector.broadcast %cst_56 : f32 to vector<10x512xf32>
    %136 = arith.mulf %135, %132 : vector<10x512xf32>
    %137 = arith.mulf %136, %132 : vector<10x512xf32>
    %138 = arith.mulf %137, %132 : vector<10x512xf32>
    %139 = arith.addf %132, %138 : vector<10x512xf32>
    %cst_57 = arith.constant 0.797884583 : f32
    %140 = vector.broadcast %cst_57 : f32 to vector<10x512xf32>
    %141 = arith.mulf %140, %139 : vector<10x512xf32>
    %142 = math.tanh %141 : vector<10x512xf32>
    %cst_58 = arith.constant 1.000000e+00 : f32
    %143 = vector.broadcast %cst_58 : f32 to vector<10x512xf32>
    %144 = arith.addf %143, %142 : vector<10x512xf32>
    %145 = arith.mulf %134, %144 : vector<10x512xf32>
    %146 = arith.truncf %145 : vector<10x512xf32> to vector<10x512xbf16>
    %c0_59 = arith.constant 0 : index
    %c0_60 = arith.constant 0 : index
    %c0_61 = arith.constant 0 : index
    %147 = vector.load %arg14[%c0_59, %c0_60, %c0_61] : memref<2x512x128xbf16, #tpu.memory_space<vmem>>, vector<1x512x128xbf16>
    %148 = vector.shape_cast %147 : vector<1x512x128xbf16> to vector<512x128xbf16>
    %cst_62 = arith.constant dense<0.000000e+00> : vector<10x128xf32>
    %149 = tpu.matmul %146, %148, %cst_62 {dimension_numbers = #tpu.dot_dimension_numbers<[1], [0], [0], [1], [0, 0, 1, 1], [], []>} : vector<10x512xbf16>, vector<512x128xbf16>, vector<10x128xf32> -> vector<10x128xf32>
    %c0_63 = arith.constant 0 : index
    %c0_64 = arith.constant 0 : index
    %c0_65 = arith.constant 0 : index
    %150 = vector.load %arg15[%c0_63, %c0_64, %c0_65] : memref<2x1x128xf32, #tpu.memory_space<vmem>>, vector<1x1x128xf32>
    %151 = vector.shape_cast %150 : vector<1x1x128xf32> to vector<1x128xf32>
    %152 = vector.broadcast %151 : vector<1x128xf32> to vector<10x128xf32>
    %153 = arith.addf %149, %152 : vector<10x128xf32>
    %154 = arith.addf %100, %153 : vector<10x128xf32>
    %c1 = arith.constant 1 : index
    %c0_66 = arith.constant 0 : index
    %c0_67 = arith.constant 0 : index
    %155 = vector.load %arg4[%c1, %c0_66, %c0_67] : memref<2x1x128xf32, #tpu.memory_space<vmem>>, vector<1x1x128xf32>
    %156 = vector.shape_cast %155 : vector<1x1x128xf32> to vector<1x128xf32>
    %c1_68 = arith.constant 1 : index
    %c0_69 = arith.constant 0 : index
    %c0_70 = arith.constant 0 : index
    %157 = vector.load %arg5[%c1_68, %c0_69, %c0_70] : memref<2x1x128xf32, #tpu.memory_space<vmem>>, vector<1x1x128xf32>
    %158 = vector.shape_cast %157 : vector<1x1x128xf32> to vector<1x128xf32>
    %cst_71 = arith.constant dense<0.000000e+00> : vector<10xf32>
    %159 = vector.multi_reduction <add>, %154, %cst_71 [1] : vector<10x128xf32> to vector<10xf32>
    %160 = vector.shape_cast %159 : vector<10xf32> to vector<10x1xf32>
    %cst_72 = arith.constant 1.280000e+02 : f32
    %161 = vector.broadcast %cst_72 : f32 to vector<10x1xf32>
    %162 = arith.divf %160, %161 : vector<10x1xf32>
    %163 = vector.broadcast %162 : vector<10x1xf32> to vector<10x128xf32>
    %164 = arith.subf %154, %163 : vector<10x128xf32>
    %165 = arith.mulf %164, %164 : vector<10x128xf32>
    %cst_73 = arith.constant dense<0.000000e+00> : vector<10xf32>
    %166 = vector.multi_reduction <add>, %165, %cst_73 [1] : vector<10x128xf32> to vector<10xf32>
    %167 = vector.shape_cast %166 : vector<10xf32> to vector<10x1xf32>
    %cst_74 = arith.constant 1.280000e+02 : f32
    %168 = vector.broadcast %cst_74 : f32 to vector<10x1xf32>
    %169 = arith.divf %167, %168 : vector<10x1xf32>
    %cst_75 = arith.constant 9.99999997E-7 : f32
    %170 = vector.broadcast %cst_75 : f32 to vector<10x1xf32>
    %171 = arith.addf %169, %170 : vector<10x1xf32>
    %172 = math.rsqrt %171 : vector<10x1xf32>
    %173 = vector.broadcast %172 : vector<10x1xf32> to vector<10x128xf32>
    %174 = arith.mulf %164, %173 : vector<10x128xf32>
    %175 = vector.broadcast %156 : vector<1x128xf32> to vector<10x128xf32>
    %176 = arith.mulf %174, %175 : vector<10x128xf32>
    %177 = vector.broadcast %158 : vector<1x128xf32> to vector<10x128xf32>
    %178 = arith.addf %176, %177 : vector<10x128xf32>
    %179 = arith.truncf %178 : vector<10x128xf32> to vector<10x128xbf16>
    %c1_76 = arith.constant 1 : index
    %c0_77 = arith.constant 0 : index
    %c0_78 = arith.constant 0 : index
    %180 = vector.load %arg6[%c1_76, %c0_77, %c0_78] : memref<2x128x384xbf16, #tpu.memory_space<vmem>>, vector<1x128x384xbf16>
    %181 = vector.shape_cast %180 : vector<1x128x384xbf16> to vector<128x384xbf16>
    %cst_79 = arith.constant dense<0.000000e+00> : vector<10x384xf32>
    %182 = tpu.matmul %179, %181, %cst_79 {dimension_numbers = #tpu.dot_dimension_numbers<[1], [0], [0], [1], [0, 0, 1, 1], [], []>} : vector<10x128xbf16>, vector<128x384xbf16>, vector<10x384xf32> -> vector<10x384xf32>
    %c1_80 = arith.constant 1 : index
    %c0_81 = arith.constant 0 : index
    %c0_82 = arith.constant 0 : index
    %183 = vector.load %arg7[%c1_80, %c0_81, %c0_82] : memref<2x1x384xf32, #tpu.memory_space<vmem>>, vector<1x1x384xf32>
    %184 = vector.shape_cast %183 : vector<1x1x384xf32> to vector<1x384xf32>
    %185 = vector.broadcast %184 : vector<1x384xf32> to vector<10x384xf32>
    %186 = arith.addf %182, %185 : vector<10x384xf32>
    %187 = vector.extract_strided_slice %186 {offsets = [0, 0], sizes = [10, 32], strides = [1, 1]} : vector<10x384xf32> to vector<10x32xf32>
    %188 = vector.extract_strided_slice %186 {offsets = [0, 32], sizes = [10, 32], strides = [1, 1]} : vector<10x384xf32> to vector<10x32xf32>
    %189 = vector.extract_strided_slice %186 {offsets = [0, 64], sizes = [10, 32], strides = [1, 1]} : vector<10x384xf32> to vector<10x32xf32>
    %190 = vector.extract_strided_slice %186 {offsets = [0, 96], sizes = [10, 32], strides = [1, 1]} : vector<10x384xf32> to vector<10x32xf32>
    %191 = vector.shape_cast %187 : vector<10x32xf32> to vector<1x10x32xf32>
    %192 = vector.shape_cast %188 : vector<10x32xf32> to vector<1x10x32xf32>
    %193 = vector.shape_cast %189 : vector<10x32xf32> to vector<1x10x32xf32>
    %194 = vector.shape_cast %190 : vector<10x32xf32> to vector<1x10x32xf32>
    %195 = tpu.concatenate %191, %192, %193, %194 in 0 : vector<1x10x32xf32>, vector<1x10x32xf32>, vector<1x10x32xf32>, vector<1x10x32xf32> -> vector<4x10x32xf32>
    %196 = vector.extract_strided_slice %186 {offsets = [0, 128], sizes = [10, 32], strides = [1, 1]} : vector<10x384xf32> to vector<10x32xf32>
    %197 = vector.extract_strided_slice %186 {offsets = [0, 160], sizes = [10, 32], strides = [1, 1]} : vector<10x384xf32> to vector<10x32xf32>
    %198 = vector.extract_strided_slice %186 {offsets = [0, 192], sizes = [10, 32], strides = [1, 1]} : vector<10x384xf32> to vector<10x32xf32>
    %199 = vector.extract_strided_slice %186 {offsets = [0, 224], sizes = [10, 32], strides = [1, 1]} : vector<10x384xf32> to vector<10x32xf32>
    %200 = vector.shape_cast %196 : vector<10x32xf32> to vector<1x10x32xf32>
    %201 = vector.shape_cast %197 : vector<10x32xf32> to vector<1x10x32xf32>
    %202 = vector.shape_cast %198 : vector<10x32xf32> to vector<1x10x32xf32>
    %203 = vector.shape_cast %199 : vector<10x32xf32> to vector<1x10x32xf32>
    %204 = tpu.concatenate %200, %201, %202, %203 in 0 : vector<1x10x32xf32>, vector<1x10x32xf32>, vector<1x10x32xf32>, vector<1x10x32xf32> -> vector<4x10x32xf32>
    %205 = vector.extract_strided_slice %186 {offsets = [0, 256], sizes = [10, 32], strides = [1, 1]} : vector<10x384xf32> to vector<10x32xf32>
    %206 = vector.extract_strided_slice %186 {offsets = [0, 288], sizes = [10, 32], strides = [1, 1]} : vector<10x384xf32> to vector<10x32xf32>
    %207 = vector.extract_strided_slice %186 {offsets = [0, 320], sizes = [10, 32], strides = [1, 1]} : vector<10x384xf32> to vector<10x32xf32>
    %208 = vector.extract_strided_slice %186 {offsets = [0, 352], sizes = [10, 32], strides = [1, 1]} : vector<10x384xf32> to vector<10x32xf32>
    %209 = vector.shape_cast %205 : vector<10x32xf32> to vector<1x10x32xf32>
    %210 = vector.shape_cast %206 : vector<10x32xf32> to vector<1x10x32xf32>
    %211 = vector.shape_cast %207 : vector<10x32xf32> to vector<1x10x32xf32>
    %212 = vector.shape_cast %208 : vector<10x32xf32> to vector<1x10x32xf32>
    %213 = tpu.concatenate %209, %210, %211, %212 in 0 : vector<1x10x32xf32>, vector<1x10x32xf32>, vector<1x10x32xf32>, vector<1x10x32xf32> -> vector<4x10x32xf32>
    "tpu.trace_start"() <{level = 10 : i32, message = "hqd,hkd->hqk"}> : () -> ()
    %cst_83 = arith.constant dense<0.000000e+00> : vector<4x10x10xf32>
    %214 = tpu.matmul %195, %204, %cst_83 {dimension_numbers = #tpu.dot_dimension_numbers<[2], [2], [1], [1], [0, 0, 0, 1, 1, 1], [0], [0]>} : vector<4x10x32xf32>, vector<4x10x32xf32>, vector<4x10x10xf32> -> vector<4x10x10xf32>
    "tpu.trace_stop"() : () -> ()
    %cst_84 = arith.constant 0.176776692 : f32
    %215 = vector.broadcast %cst_84 : f32 to vector<4x10x10xf32>
    %216 = arith.mulf %214, %215 : vector<4x10x10xf32>
    %217 = vector.shape_cast %6 : vector<10x10xf32> to vector<1x10x10xf32>
    %218 = vector.broadcast %217 : vector<1x10x10xf32> to vector<4x10x10xf32>
    %219 = arith.addf %216, %218 : vector<4x10x10xf32>
    %cst_85 = arith.constant dense<0xFF800000> : vector<4x10xf32>
    %220 = vector.multi_reduction <maximumf>, %219, %cst_85 [2] : vector<4x10x10xf32> to vector<4x10xf32>
    %221 = vector.shape_cast %220 : vector<4x10xf32> to vector<4x10x1xf32>
    %222 = vector.broadcast %221 : vector<4x10x1xf32> to vector<4x10x10xf32>
    %223 = arith.subf %219, %222 : vector<4x10x10xf32>
    %224 = math.exp %223 : vector<4x10x10xf32>
    %cst_86 = arith.constant dense<0.000000e+00> : vector<4x10xf32>
    %225 = vector.multi_reduction <add>, %224, %cst_86 [2] : vector<4x10x10xf32> to vector<4x10xf32>
    %226 = vector.shape_cast %225 : vector<4x10xf32> to vector<4x10x1xf32>
    %227 = tpu.reciprocal %226 {approx = true} : vector<4x10x1xf32> -> vector<4x10x1xf32>
    %228 = vector.broadcast %227 : vector<4x10x1xf32> to vector<4x10x10xf32>
    %229 = arith.mulf %224, %228 : vector<4x10x10xf32>
    "tpu.trace_start"() <{level = 10 : i32, message = "hqk,hkd->hqd"}> : () -> ()
    %cst_87 = arith.constant dense<0.000000e+00> : vector<4x10x32xf32>
    %230 = tpu.matmul %229, %213, %cst_87 {dimension_numbers = #tpu.dot_dimension_numbers<[2], [1], [1], [2], [0, 0, 0, 1, 1, 2], [0], [0]>} : vector<4x10x10xf32>, vector<4x10x32xf32>, vector<4x10x32xf32> -> vector<4x10x32xf32>
    "tpu.trace_stop"() : () -> ()
    %231 = vector.extract_strided_slice %230 {offsets = [0, 0, 0], sizes = [1, 10, 32], strides = [1, 1, 1]} : vector<4x10x32xf32> to vector<1x10x32xf32>
    %232 = vector.shape_cast %231 : vector<1x10x32xf32> to vector<10x32xf32>
    %233 = vector.extract_strided_slice %230 {offsets = [1, 0, 0], sizes = [1, 10, 32], strides = [1, 1, 1]} : vector<4x10x32xf32> to vector<1x10x32xf32>
    %234 = vector.shape_cast %233 : vector<1x10x32xf32> to vector<10x32xf32>
    %235 = vector.extract_strided_slice %230 {offsets = [2, 0, 0], sizes = [1, 10, 32], strides = [1, 1, 1]} : vector<4x10x32xf32> to vector<1x10x32xf32>
    %236 = vector.shape_cast %235 : vector<1x10x32xf32> to vector<10x32xf32>
    %237 = vector.extract_strided_slice %230 {offsets = [3, 0, 0], sizes = [1, 10, 32], strides = [1, 1, 1]} : vector<4x10x32xf32> to vector<1x10x32xf32>
    %238 = vector.shape_cast %237 : vector<1x10x32xf32> to vector<10x32xf32>
    %239 = tpu.concatenate %232, %234, %236, %238 in 1 : vector<10x32xf32>, vector<10x32xf32>, vector<10x32xf32>, vector<10x32xf32> -> vector<10x128xf32>
    %240 = arith.truncf %239 : vector<10x128xf32> to vector<10x128xbf16>
    %c1_88 = arith.constant 1 : index
    %c0_89 = arith.constant 0 : index
    %c0_90 = arith.constant 0 : index
    %241 = vector.load %arg8[%c1_88, %c0_89, %c0_90] : memref<2x128x128xbf16, #tpu.memory_space<vmem>>, vector<1x128x128xbf16>
    %242 = vector.shape_cast %241 : vector<1x128x128xbf16> to vector<128x128xbf16>
    %cst_91 = arith.constant dense<0.000000e+00> : vector<10x128xf32>
    %243 = tpu.matmul %240, %242, %cst_91 {dimension_numbers = #tpu.dot_dimension_numbers<[1], [0], [0], [1], [0, 0, 1, 1], [], []>} : vector<10x128xbf16>, vector<128x128xbf16>, vector<10x128xf32> -> vector<10x128xf32>
    %c1_92 = arith.constant 1 : index
    %c0_93 = arith.constant 0 : index
    %c0_94 = arith.constant 0 : index
    %244 = vector.load %arg9[%c1_92, %c0_93, %c0_94] : memref<2x1x128xf32, #tpu.memory_space<vmem>>, vector<1x1x128xf32>
    %245 = vector.shape_cast %244 : vector<1x1x128xf32> to vector<1x128xf32>
    %246 = vector.broadcast %245 : vector<1x128xf32> to vector<10x128xf32>
    %247 = arith.addf %243, %246 : vector<10x128xf32>
    %248 = arith.addf %154, %247 : vector<10x128xf32>
    %c1_95 = arith.constant 1 : index
    %c0_96 = arith.constant 0 : index
    %c0_97 = arith.constant 0 : index
    %249 = vector.load %arg10[%c1_95, %c0_96, %c0_97] : memref<2x1x128xf32, #tpu.memory_space<vmem>>, vector<1x1x128xf32>
    %250 = vector.shape_cast %249 : vector<1x1x128xf32> to vector<1x128xf32>
    %c1_98 = arith.constant 1 : index
    %c0_99 = arith.constant 0 : index
    %c0_100 = arith.constant 0 : index
    %251 = vector.load %arg11[%c1_98, %c0_99, %c0_100] : memref<2x1x128xf32, #tpu.memory_space<vmem>>, vector<1x1x128xf32>
    %252 = vector.shape_cast %251 : vector<1x1x128xf32> to vector<1x128xf32>
    %cst_101 = arith.constant dense<0.000000e+00> : vector<10xf32>
    %253 = vector.multi_reduction <add>, %248, %cst_101 [1] : vector<10x128xf32> to vector<10xf32>
    %254 = vector.shape_cast %253 : vector<10xf32> to vector<10x1xf32>
    %cst_102 = arith.constant 1.280000e+02 : f32
    %255 = vector.broadcast %cst_102 : f32 to vector<10x1xf32>
    %256 = arith.divf %254, %255 : vector<10x1xf32>
    %257 = vector.broadcast %256 : vector<10x1xf32> to vector<10x128xf32>
    %258 = arith.subf %248, %257 : vector<10x128xf32>
    %259 = arith.mulf %258, %258 : vector<10x128xf32>
    %cst_103 = arith.constant dense<0.000000e+00> : vector<10xf32>
    %260 = vector.multi_reduction <add>, %259, %cst_103 [1] : vector<10x128xf32> to vector<10xf32>
    %261 = vector.shape_cast %260 : vector<10xf32> to vector<10x1xf32>
    %cst_104 = arith.constant 1.280000e+02 : f32
    %262 = vector.broadcast %cst_104 : f32 to vector<10x1xf32>
    %263 = arith.divf %261, %262 : vector<10x1xf32>
    %cst_105 = arith.constant 9.99999997E-7 : f32
    %264 = vector.broadcast %cst_105 : f32 to vector<10x1xf32>
    %265 = arith.addf %263, %264 : vector<10x1xf32>
    %266 = math.rsqrt %265 : vector<10x1xf32>
    %267 = vector.broadcast %266 : vector<10x1xf32> to vector<10x128xf32>
    %268 = arith.mulf %258, %267 : vector<10x128xf32>
    %269 = vector.broadcast %250 : vector<1x128xf32> to vector<10x128xf32>
    %270 = arith.mulf %268, %269 : vector<10x128xf32>
    %271 = vector.broadcast %252 : vector<1x128xf32> to vector<10x128xf32>
    %272 = arith.addf %270, %271 : vector<10x128xf32>
    %273 = arith.truncf %272 : vector<10x128xf32> to vector<10x128xbf16>
    %c1_106 = arith.constant 1 : index
    %c0_107 = arith.constant 0 : index
    %c0_108 = arith.constant 0 : index
    %274 = vector.load %arg12[%c1_106, %c0_107, %c0_108] : memref<2x128x512xbf16, #tpu.memory_space<vmem>>, vector<1x128x512xbf16>
    %275 = vector.shape_cast %274 : vector<1x128x512xbf16> to vector<128x512xbf16>
    %cst_109 = arith.constant dense<0.000000e+00> : vector<10x512xf32>
    %276 = tpu.matmul %273, %275, %cst_109 {dimension_numbers = #tpu.dot_dimension_numbers<[1], [0], [0], [1], [0, 0, 1, 1], [], []>} : vector<10x128xbf16>, vector<128x512xbf16>, vector<10x512xf32> -> vector<10x512xf32>
    %c1_110 = arith.constant 1 : index
    %c0_111 = arith.constant 0 : index
    %c0_112 = arith.constant 0 : index
    %277 = vector.load %arg13[%c1_110, %c0_111, %c0_112] : memref<2x1x512xf32, #tpu.memory_space<vmem>>, vector<1x1x512xf32>
    %278 = vector.shape_cast %277 : vector<1x1x512xf32> to vector<1x512xf32>
    %279 = vector.broadcast %278 : vector<1x512xf32> to vector<10x512xf32>
    %280 = arith.addf %276, %279 : vector<10x512xf32>
    %cst_113 = arith.constant 5.000000e-01 : f32
    %281 = vector.broadcast %cst_113 : f32 to vector<10x512xf32>
    %282 = arith.mulf %281, %280 : vector<10x512xf32>
    %cst_114 = arith.constant 4.471500e-02 : f32
    %283 = vector.broadcast %cst_114 : f32 to vector<10x512xf32>
    %284 = arith.mulf %283, %280 : vector<10x512xf32>
    %285 = arith.mulf %284, %280 : vector<10x512xf32>
    %286 = arith.mulf %285, %280 : vector<10x512xf32>
    %287 = arith.addf %280, %286 : vector<10x512xf32>
    %cst_115 = arith.constant 0.797884583 : f32
    %288 = vector.broadcast %cst_115 : f32 to vector<10x512xf32>
    %289 = arith.mulf %288, %287 : vector<10x512xf32>
    %290 = math.tanh %289 : vector<10x512xf32>
    %cst_116 = arith.constant 1.000000e+00 : f32
    %291 = vector.broadcast %cst_116 : f32 to vector<10x512xf32>
    %292 = arith.addf %291, %290 : vector<10x512xf32>
    %293 = arith.mulf %282, %292 : vector<10x512xf32>
    %294 = arith.truncf %293 : vector<10x512xf32> to vector<10x512xbf16>
    %c1_117 = arith.constant 1 : index
    %c0_118 = arith.constant 0 : index
    %c0_119 = arith.constant 0 : index
    %295 = vector.load %arg14[%c1_117, %c0_118, %c0_119] : memref<2x512x128xbf16, #tpu.memory_space<vmem>>, vector<1x512x128xbf16>
    %296 = vector.shape_cast %295 : vector<1x512x128xbf16> to vector<512x128xbf16>
    %cst_120 = arith.constant dense<0.000000e+00> : vector<10x128xf32>
    %297 = tpu.matmul %294, %296, %cst_120 {dimension_numbers = #tpu.dot_dimension_numbers<[1], [0], [0], [1], [0, 0, 1, 1], [], []>} : vector<10x512xbf16>, vector<512x128xbf16>, vector<10x128xf32> -> vector<10x128xf32>
    %c1_121 = arith.constant 1 : index
    %c0_122 = arith.constant 0 : index
    %c0_123 = arith.constant 0 : index
    %298 = vector.load %arg15[%c1_121, %c0_122, %c0_123] : memref<2x1x128xf32, #tpu.memory_space<vmem>>, vector<1x1x128xf32>
    %299 = vector.shape_cast %298 : vector<1x1x128xf32> to vector<1x128xf32>
    %300 = vector.broadcast %299 : vector<1x128xf32> to vector<10x128xf32>
    %301 = arith.addf %297, %300 : vector<10x128xf32>
    %302 = arith.addf %248, %301 : vector<10x128xf32>
    %303 = vector.extract_strided_slice %302 {offsets = [0, 0], sizes = [1, 128], strides = [1, 1]} : vector<10x128xf32> to vector<1x128xf32>
    %c0_124 = arith.constant 0 : index
    %c0_125 = arith.constant 0 : index
    %304 = vector.load %arg16[%c0_124, %c0_125] : memref<1x128xf32, #tpu.memory_space<vmem>>, vector<1x128xf32>
    %c0_126 = arith.constant 0 : index
    %c0_127 = arith.constant 0 : index
    %305 = vector.load %arg17[%c0_126, %c0_127] : memref<1x128xf32, #tpu.memory_space<vmem>>, vector<1x128xf32>
    %cst_128 = arith.constant dense<0.000000e+00> : vector<1xf32>
    %306 = vector.multi_reduction <add>, %303, %cst_128 [1] : vector<1x128xf32> to vector<1xf32>
    %307 = vector.shape_cast %306 : vector<1xf32> to vector<1x1xf32>
    %cst_129 = arith.constant 1.280000e+02 : f32
    %308 = vector.broadcast %cst_129 : f32 to vector<1x1xf32>
    %309 = arith.divf %307, %308 : vector<1x1xf32>
    %310 = vector.broadcast %309 : vector<1x1xf32> to vector<1x128xf32>
    %311 = arith.subf %303, %310 : vector<1x128xf32>
    %312 = arith.mulf %311, %311 : vector<1x128xf32>
    %cst_130 = arith.constant dense<0.000000e+00> : vector<1xf32>
    %313 = vector.multi_reduction <add>, %312, %cst_130 [1] : vector<1x128xf32> to vector<1xf32>
    %314 = vector.shape_cast %313 : vector<1xf32> to vector<1x1xf32>
    %cst_131 = arith.constant 1.280000e+02 : f32
    %315 = vector.broadcast %cst_131 : f32 to vector<1x1xf32>
    %316 = arith.divf %314, %315 : vector<1x1xf32>
    %cst_132 = arith.constant 9.99999997E-7 : f32
    %317 = vector.broadcast %cst_132 : f32 to vector<1x1xf32>
    %318 = arith.addf %316, %317 : vector<1x1xf32>
    %319 = math.rsqrt %318 : vector<1x1xf32>
    %320 = vector.broadcast %319 : vector<1x1xf32> to vector<1x128xf32>
    %321 = arith.mulf %311, %320 : vector<1x128xf32>
    %322 = arith.mulf %321, %304 : vector<1x128xf32>
    %323 = arith.addf %322, %305 : vector<1x128xf32>
    %c0_133 = arith.constant 0 : index
    %c0_134 = arith.constant 0 : index
    %324 = vector.load %arg18[%c0_133, %c0_134] : memref<2x128xf32, #tpu.memory_space<vmem>>, vector<1x128xf32>
    tpu.vector_store %arg18[%c0_133, %c0_134], %323 {strides = array<i32>} : memref<2x128xf32, #tpu.memory_space<vmem>>, vector<1x128xf32>,
    %325 = vector.extract_strided_slice %302 {offsets = [5, 0], sizes = [1, 128], strides = [1, 1]} : vector<10x128xf32> to vector<1x128xf32>
    %c0_135 = arith.constant 0 : index
    %c0_136 = arith.constant 0 : index
    %326 = vector.load %arg16[%c0_135, %c0_136] : memref<1x128xf32, #tpu.memory_space<vmem>>, vector<1x128xf32>
    %c0_137 = arith.constant 0 : index
    %c0_138 = arith.constant 0 : index
    %327 = vector.load %arg17[%c0_137, %c0_138] : memref<1x128xf32, #tpu.memory_space<vmem>>, vector<1x128xf32>
    %cst_139 = arith.constant dense<0.000000e+00> : vector<1xf32>
    %328 = vector.multi_reduction <add>, %325, %cst_139 [1] : vector<1x128xf32> to vector<1xf32>
    %329 = vector.shape_cast %328 : vector<1xf32> to vector<1x1xf32>
    %cst_140 = arith.constant 1.280000e+02 : f32
    %330 = vector.broadcast %cst_140 : f32 to vector<1x1xf32>
    %331 = arith.divf %329, %330 : vector<1x1xf32>
    %332 = vector.broadcast %331 : vector<1x1xf32> to vector<1x128xf32>
    %333 = arith.subf %325, %332 : vector<1x128xf32>
    %334 = arith.mulf %333, %333 : vector<1x128xf32>
    %cst_141 = arith.constant dense<0.000000e+00> : vector<1xf32>
    %335 = vector.multi_reduction <add>, %334, %cst_141 [1] : vector<1x128xf32> to vector<1xf32>
    %336 = vector.shape_cast %335 : vector<1xf32> to vector<1x1xf32>
    %cst_142 = arith.constant 1.280000e+02 : f32
    %337 = vector.broadcast %cst_142 : f32 to vector<1x1xf32>
    %338 = arith.divf %336, %337 : vector<1x1xf32>
    %cst_143 = arith.constant 9.99999997E-7 : f32
    %339 = vector.broadcast %cst_143 : f32 to vector<1x1xf32>
    %340 = arith.addf %338, %339 : vector<1x1xf32>
    %341 = math.rsqrt %340 : vector<1x1xf32>
    %342 = vector.broadcast %341 : vector<1x1xf32> to vector<1x128xf32>
    %343 = arith.mulf %333, %342 : vector<1x128xf32>
    %344 = arith.mulf %343, %326 : vector<1x128xf32>
    %345 = arith.addf %344, %327 : vector<1x128xf32>
    %c1_144 = arith.constant 1 : index
    %c0_145 = arith.constant 0 : index
    %346 = vector.load %arg18[%c1_144, %c0_145] : memref<2x128xf32, #tpu.memory_space<vmem>>, vector<1x128xf32>
    tpu.vector_store %arg18[%c1_144, %c0_145], %345 {strides = array<i32>} : memref<2x128xf32, #tpu.memory_space<vmem>>, vector<1x128xf32>,
    return
  }
}

</mosaic_0001>

<llo_original>
// kernel: tile.9
$region0: #{tile.9}
  %s0 = inlined_call_operand.vmem [shape: f32[2,5,128], index: 0, kind: input, shape index: {}]
  %s1 = inlined_call_operand.vmem [shape: f32[10,128], index: 1, kind: output, shape index: {}]
  %v2 = vld [vmem:[%s0] sm:$0x1f]
  %3 = vst [vmem:[%s1] sm:$0x1f] %v2
  %s4 = scalar_lea.vmem %s0, 8
  %v5 = vld [vmem:[%s4] sm:$0x1f]
  %s6 = scalar_lea.vmem %s1, 5
  %7 = vst [vmem:[%s6] sm:$0x1f] %v5

// kernel: encoder_forward.1
$region0: #{encoder_forward.1}
  #allocation0 [shape = 'u32[]', space=smem, size = 0x4, offset = 0x4, fixed_abs, tag = 'smem constant byte address 0x4 - core index']
  #allocation1 [shape = 'u32[72,128]{1,0:T(1,128)}', space=vmem, size = 0x9000, scoped, tag = 'internal scratch']
  %s0 = inlined_call_operand.vmem [shape: f32[10,770], index: 0, kind: input, shape index: {}]
  %s1 = inlined_call_operand.vmem [shape: bf16[770,128], index: 1, kind: input, shape index: {}]
  %s2 = inlined_call_operand.vmem [shape: f32[10,128], index: 2, kind: input, shape index: {}]
  %s3 = inlined_call_operand.vmem [shape: f32[10,10], index: 3, kind: input, shape index: {}]
  %s4 = inlined_call_operand.vmem [shape: f32[2,1,128], index: 4, kind: input, shape index: {}]
  %s5 = inlined_call_operand.vmem [shape: f32[2,1,128], index: 5, kind: input, shape index: {}]
  %s6 = inlined_call_operand.vmem [shape: bf16[2,128,384], index: 6, kind: input, shape index: {}]
  %s7 = inlined_call_operand.vmem [shape: f32[2,1,384], index: 7, kind: input, shape index: {}]
  %s8 = inlined_call_operand.vmem [shape: bf16[2,128,128], index: 8, kind: input, shape index: {}]
  %s9 = inlined_call_operand.vmem [shape: f32[2,1,128], index: 9, kind: input, shape index: {}]
  %s10 = inlined_call_operand.vmem [shape: f32[2,1,128], index: 10, kind: input, shape index: {}]
  %s11 = inlined_call_operand.vmem [shape: f32[2,1,128], index: 11, kind: input, shape index: {}]
  %s12 = inlined_call_operand.vmem [shape: bf16[2,128,512], index: 12, kind: input, shape index: {}]
  %s13 = inlined_call_operand.vmem [shape: f32[2,1,512], index: 13, kind: input, shape index: {}]
  %s14 = inlined_call_operand.vmem [shape: bf16[2,512,128], index: 14, kind: input, shape index: {}]
  %s15 = inlined_call_operand.vmem [shape: f32[2,1,128], index: 15, kind: input, shape index: {}]
  %s16 = inlined_call_operand.vmem [shape: f32[1,128], index: 16, kind: input, shape index: {}]
  %s17 = inlined_call_operand.vmem [shape: f32[1,128], index: 17, kind: input, shape index: {}]
  %s18 = inlined_call_operand.hbm [shape: f32[2,128], index: 18, kind: output, shape index: {}]
  %s19 = sld [smem:[#allocation0]]
  $region82: #{encoder_forward.1} parent=0
    _
  %s21 = ssub.s32 1, %s19
  %s22 = scalar_select 0, %s21, %s19
  $region1: #{encoder_forward.1} parent=0
    #allocation2 [shape = 'u8[1024]{0}', space=vmem, size = 0x400, scoped, tag = 'output window, operand 0, single buffered']
    #allocation3 [shape = 's32[1]{0}', space=sflag, size = 0x4, scoped, tag = 'scoped memory for encoder_forward.1']
    %23 = vsyncpa [#allocation3], 0
    // Predicated region
    $region2: #{encoder_forward.1} parent=1 // pred_check
      _
    $region3: #{encoder_forward.1} parent=1 // pred_check_branch
      %25 = sbr.rel (0) target = $region5
    $region4: #{encoder_forward.1} parent=1 // pred_region
      _
    $region5: #{encoder_forward.1} parent=1 // pred_fallthru
      _
    // Predicated region
    $region6: #{encoder_forward.1} parent=1 // pred_check
      _
    $region7: #{encoder_forward.1} parent=1 // pred_check_branch
      %27 = sbr.rel (0) target = $region9
    $region8: #{encoder_forward.1} parent=1 // pred_region
      _
    $region9: #{encoder_forward.1} parent=1 // pred_fallthru
      _
    // Predicated region
    $region10: #{encoder_forward.1} parent=1 // pred_check
      _
    $region11: #{encoder_forward.1} parent=1 // pred_check_branch
      %29 = sbr.rel (0) target = $region13
    $region12: #{encoder_forward.1} parent=1 // pred_region
      _
    $region13: #{encoder_forward.1} parent=1 // pred_fallthru
      _
    // Predicated region
    $region14: #{encoder_forward.1} parent=1 // pred_check
      _
    $region15: #{encoder_forward.1} parent=1 // pred_check_branch
      %31 = sbr.rel (0) target = $region17
    $region16: #{encoder_forward.1} parent=1 // pred_region
      _
    $region17: #{encoder_forward.1} parent=1 // pred_fallthru
      _
    // Predicated region
    $region18: #{encoder_forward.1} parent=1 // pred_check
      _
    $region19: #{encoder_forward.1} parent=1 // pred_check_branch
      %33 = sbr.rel (0) target = $region21
    $region20: #{encoder_forward.1} parent=1 // pred_region
      _
    $region21: #{encoder_forward.1} parent=1 // pred_fallthru
      _
    // Predicated region
    $region22: #{encoder_forward.1} parent=1 // pred_check
      _
    $region23: #{encoder_forward.1} parent=1 // pred_check_branch
      %35 = sbr.rel (0) target = $region25
    $region24: #{encoder_forward.1} parent=1 // pred_region
      _
    $region25: #{encoder_forward.1} parent=1 // pred_fallthru
      _
    // Predicated region
    $region26: #{encoder_forward.1} parent=1 // pred_check
      _
    $region27: #{encoder_forward.1} parent=1 // pred_check_branch
      %37 = sbr.rel (0) target = $region29
    $region28: #{encoder_forward.1} parent=1 // pred_region
      _
    $region29: #{encoder_forward.1} parent=1 // pred_fallthru
      _
    // Predicated region
    $region30: #{encoder_forward.1} parent=1 // pred_check
      _
    $region31: #{encoder_forward.1} parent=1 // pred_check_branch
      %39 = sbr.rel (0) target = $region33
    $region32: #{encoder_forward.1} parent=1 // pred_region
      _
    $region33: #{encoder_forward.1} parent=1 // pred_fallthru
      _
    // Predicated region
    $region34: #{encoder_forward.1} parent=1 // pred_check
      _
    $region35: #{encoder_forward.1} parent=1 // pred_check_branch
      %41 = sbr.rel (0) target = $region37
    $region36: #{encoder_forward.1} parent=1 // pred_region
      _
    $region37: #{encoder_forward.1} parent=1 // pred_fallthru
      _
    // Predicated region
    $region38: #{encoder_forward.1} parent=1 // pred_check
      _
    $region39: #{encoder_forward.1} parent=1 // pred_check_branch
      %43 = sbr.rel (0) target = $region41
    $region40: #{encoder_forward.1} parent=1 // pred_region
      _
    $region41: #{encoder_forward.1} parent=1 // pred_fallthru
      _
    // Predicated region
    $region42: #{encoder_forward.1} parent=1 // pred_check
      _
    $region43: #{encoder_forward.1} parent=1 // pred_check_branch
      %45 = sbr.rel (0) target = $region45
    $region44: #{encoder_forward.1} parent=1 // pred_region
      _
    $region45: #{encoder_forward.1} parent=1 // pred_fallthru
      _
    // Predicated region
    $region46: #{encoder_forward.1} parent=1 // pred_check
      _
    $region47: #{encoder_forward.1} parent=1 // pred_check_branch
      %47 = sbr.rel (0) target = $region49
    $region48: #{encoder_forward.1} parent=1 // pred_region
      _
    $region49: #{encoder_forward.1} parent=1 // pred_fallthru
      _
    // Predicated region
    $region50: #{encoder_forward.1} parent=1 // pred_check
      _
    $region51: #{encoder_forward.1} parent=1 // pred_check_branch
      %49 = sbr.rel (0) target = $region53
    $region52: #{encoder_forward.1} parent=1 // pred_region
      _
    $region53: #{encoder_forward.1} parent=1 // pred_fallthru
      _
    // Predicated region
    $region54: #{encoder_forward.1} parent=1 // pred_check
      _
    $region55: #{encoder_forward.1} parent=1 // pred_check_branch
      %51 = sbr.rel (0) target = $region57
    $region56: #{encoder_forward.1} parent=1 // pred_region
      _
    $region57: #{encoder_forward.1} parent=1 // pred_fallthru
      _
    // Predicated region
    $region58: #{encoder_forward.1} parent=1 // pred_check
      _
    $region59: #{encoder_forward.1} parent=1 // pred_check_branch
      %53 = sbr.rel (0) target = $region61
    $region60: #{encoder_forward.1} parent=1 // pred_region
      _
    $region61: #{encoder_forward.1} parent=1 // pred_fallthru
      _
    // Predicated region
    $region62: #{encoder_forward.1} parent=1 // pred_check
      _
    $region63: #{encoder_forward.1} parent=1 // pred_check_branch
      %55 = sbr.rel (0) target = $region65
    $region64: #{encoder_forward.1} parent=1 // pred_region
      _
    $region65: #{encoder_forward.1} parent=1 // pred_fallthru
      _
    // Predicated region
    $region66: #{encoder_forward.1} parent=1 // pred_check
      _
    $region67: #{encoder_forward.1} parent=1 // pred_check_branch
      %57 = sbr.rel (0) target = $region69
    $region68: #{encoder_forward.1} parent=1 // pred_region
      _
    $region69: #{encoder_forward.1} parent=1 // pred_fallthru
      _
    // Predicated region
    $region70: #{encoder_forward.1} parent=1 // pred_check
      _
    $region71: #{encoder_forward.1} parent=1 // pred_check_branch
      %59 = sbr.rel (0) target = $region73
    $region72: #{encoder_forward.1} parent=1 // pred_region
      _
    $region73: #{encoder_forward.1} parent=1 // pred_fallthru
      _
    %v61 = vld [vmem:[%s0] sm:$0xff]
    %v62 = vld [vmem:[%s0 + $0x8] sm:$0xff]
    %v63 = vld [vmem:[%s0 + $0x10] sm:$0xff]
    %v64 = vld [vmem:[%s0 + $0x18] sm:$0xff]
    %v65 = vld [vmem:[%s0 + $0x20] sm:$0xff]
    %v66 = vld [vmem:[%s0 + $0x28] sm:$0xff]
    %v67 = vld [vmem:[%s0 + $0x30] sm:$0xff]
    %v68 = vld [vmem:[%s0 + $0x38] sm:$0x3]
    %v69 = vld [vmem:[%s0 + $0x40] sm:$0x3]
    %v70 = vld [vmem:[%s0 + $0x48] sm:$0x3]
    %v71 = vld [vmem:[%s0 + $0x50] sm:$0x3]
    %v72 = vld [vmem:[%s0 + $0x58] sm:$0x3]
    %v73 = vld [vmem:[%s0 + $0x60] sm:$0x3]
    %v74 = vld [vmem:[%s0 + $0x68] sm:$0x3]
    %v75 = vpack.c.bf16 %v68, %v61
    %v76 = vpack.c.bf16 %v69, %v62
    %v77 = vpack.c.bf16 %v70, %v63
    %v78 = vpack.c.bf16 %v71, %v64
    %v79 = vpack.c.bf16 %v72, %v65
    %v80 = vpack.c.bf16 %v73, %v66
    %v81 = vpack.c.bf16 %v74, %v67
    %v82 = vld [vmem:[%s1] sm:$0xf]
    %v83 = vld [vmem:[%s1 + $0x4] sm:$0xf]
    %v84 = vld [vmem:[%s1 + $0x8] sm:$0xf]
    %v85 = vld [vmem:[%s1 + $0xc] sm:$0xf]
    %v86 = vld [vmem:[%s1 + $0x10] sm:$0xf]
    %v87 = vld [vmem:[%s1 + $0x14] sm:$0xf]
    %v88 = vld [vmem:[%s1 + $0x18] sm:$0xf]
    %v89 = vld [vmem:[%s1 + $0x1c] sm:$0xf]
    %v90 = vld [vmem:[%s1 + $0x20] sm:$0xf]
    %v91 = vld [vmem:[%s1 + $0x24] sm:$0xf]
    %v92 = vld [vmem:[%s1 + $0x28] sm:$0xf]
    %v93 = vld [vmem:[%s1 + $0x2c] sm:$0xf]
    %v94 = vld [vmem:[%s1 + $0x30] sm:$0xf]
    %v95 = vld [vmem:[%s1 + $0x34] sm:$0xf]
    %v96 = vld [vmem:[%s1 + $0x38] sm:$0xf]
    %v97 = vld [vmem:[%s1 + $0x3c] sm:$0xf]
    %v98 = vld [vmem:[%s1 + $0x40] sm:$0xf]
    %v99 = vld [vmem:[%s1 + $0x44] sm:$0xf]
    %v100 = vld [vmem:[%s1 + $0x48] sm:$0xf]
    %v101 = vld [vmem:[%s1 + $0x4c] sm:$0xf]
    %v102 = vld [vmem:[%s1 + $0x50] sm:$0xf]
    %v103 = vld [vmem:[%s1 + $0x54] sm:$0xf]
    %v104 = vld [vmem:[%s1 + $0x58] sm:$0xf]
    %v105 = vld [vmem:[%s1 + $0x5c] sm:$0xf]
    %v106 = vld [vmem:[%s1 + $0x60] sm:$0xf]
    %v107 = vld [vmem:[%s1 + $0x64] sm:$0xf]
    %v108 = vld [vmem:[%s1 + $0x68] sm:$0xf]
    %v109 = vld [vmem:[%s1 + $0x6c] sm:$0xf]
    %v110 = vld [vmem:[%s1 + $0x70] sm:$0xf]
    %v111 = vld [vmem:[%s1 + $0x74] sm:$0xf]
    %v112 = vld [vmem:[%s1 + $0x78] sm:$0xf]
    %v113 = vld [vmem:[%s1 + $0x7c] sm:$0xf]
    %v114 = vld [vmem:[%s1 + $0x80] sm:$0xf]
    %v115 = vld [vmem:[%s1 + $0x84] sm:$0xf]
    %v116 = vld [vmem:[%s1 + $0x88] sm:$0xf]
    %v117 = vld [vmem:[%s1 + $0x8c] sm:$0xf]
    %v118 = vld [vmem:[%s1 + $0x90] sm:$0xf]
    %v119 = vld [vmem:[%s1 + $0x94] sm:$0xf]
    %v120 = vld [vmem:[%s1 + $0x98] sm:$0xf]
    %v121 = vld [vmem:[%s1 + $0x9c] sm:$0xf]
    %v122 = vld [vmem:[%s1 + $0xa0] sm:$0xf]
    %v123 = vld [vmem:[%s1 + $0xa4] sm:$0xf]
    %v124 = vld [vmem:[%s1 + $0xa8] sm:$0xf]
    %v125 = vld [vmem:[%s1 + $0xac] sm:$0xf]
    %v126 = vld [vmem:[%s1 + $0xb0] sm:$0xf]
    %v127 = vld [vmem:[%s1 + $0xb4] sm:$0xf]
    %v128 = vld [vmem:[%s1 + $0xb8] sm:$0xf]
    %v129 = vld [vmem:[%s1 + $0xbc] sm:$0xf]
    %v130 = vld [vmem:[%s1 + $0xc0] sm:$0xf]
    %v131 = vld [vmem:[%s1 + $0xc4] sm:$0xf]
    %v132 = vld [vmem:[%s1 + $0xc8] sm:$0xf]
    %v133 = vld [vmem:[%s1 + $0xcc] sm:$0xf]
    %v134 = vld [vmem:[%s1 + $0xd0] sm:$0xf]
    %v135 = vld [vmem:[%s1 + $0xd4] sm:$0xf]
    %v136 = vld [vmem:[%s1 + $0xd8] sm:$0xf]
    %v137 = vld [vmem:[%s1 + $0xdc] sm:$0xf]
    %v138 = vld [vmem:[%s1 + $0xe0] sm:$0xf]
    %v139 = vld [vmem:[%s1 + $0xe4] sm:$0xf]
    %v140 = vld [vmem:[%s1 + $0xe8] sm:$0xf]
    %v141 = vld [vmem:[%s1 + $0xec] sm:$0xf]
    %v142 = vld [vmem:[%s1 + $0xf0] sm:$0xf]
    %v143 = vld [vmem:[%s1 + $0xf4] sm:$0xf]
    %v144 = vld [vmem:[%s1 + $0xf8] sm:$0xf]
    %v145 = vld [vmem:[%s1 + $0xfc] sm:$0xf]
    %v146 = vld [vmem:[%s1 + $0x100] sm:$0xf]
    %v147 = vld [vmem:[%s1 + $0x104] sm:$0xf]
    %v148 = vld [vmem:[%s1 + $0x108] sm:$0xf]
    %v149 = vld [vmem:[%s1 + $0x10c] sm:$0xf]
    %v150 = vld [vmem:[%s1 + $0x110] sm:$0xf]
    %v151 = vld [vmem:[%s1 + $0x114] sm:$0xf]
    %v152 = vld [vmem:[%s1 + $0x118] sm:$0xf]
    %v153 = vld [vmem:[%s1 + $0x11c] sm:$0xf]
    %v154 = vld [vmem:[%s1 + $0x120] sm:$0xf]
    %v155 = vld [vmem:[%s1 + $0x124] sm:$0xf]
    %v156 = vld [vmem:[%s1 + $0x128] sm:$0xf]
    %v157 = vld [vmem:[%s1 + $0x12c] sm:$0xf]
    %v158 = vld [vmem:[%s1 + $0x130] sm:$0xf]
    %v159 = vld [vmem:[%s1 + $0x134] sm:$0xf]
    %v160 = vld [vmem:[%s1 + $0x138] sm:$0xf]
    %v161 = vld [vmem:[%s1 + $0x13c] sm:$0xf]
    %v162 = vld [vmem:[%s1 + $0x140] sm:$0xf]
    %v163 = vld [vmem:[%s1 + $0x144] sm:$0xf]
    %v164 = vld [vmem:[%s1 + $0x148] sm:$0xf]
    %v165 = vld [vmem:[%s1 + $0x14c] sm:$0xf]
    %v166 = vld [vmem:[%s1 + $0x150] sm:$0xf]
    %v167 = vld [vmem:[%s1 + $0x154] sm:$0xf]
    %v168 = vld [vmem:[%s1 + $0x158] sm:$0xf]
    %v169 = vld [vmem:[%s1 + $0x15c] sm:$0xf]
    %v170 = vld [vmem:[%s1 + $0x160] sm:$0xf]
    %v171 = vld [vmem:[%s1 + $0x164] sm:$0xf]
    %v172 = vld [vmem:[%s1 + $0x168] sm:$0xf]
    %v173 = vld [vmem:[%s1 + $0x16c] sm:$0xf]
    %v174 = vld [vmem:[%s1 + $0x170] sm:$0xf]
    %v175 = vld [vmem:[%s1 + $0x174] sm:$0xf]
    %v176 = vld [vmem:[%s1 + $0x178] sm:$0xf]
    %v177 = vld [vmem:[%s1 + $0x17c] sm:$0xf]
    %v178 = vld [vmem:[%s1 + $0x180] sm:$0x1]
    %v179 = vld [vmem:[%s2] sm:$0xff]
    %v180 = vld [vmem:[%s2 + $0x8] sm:$0x3]
    %v278 = vunpack.c.l.b16 %v82
    %v279 = vunpack.c.l.b16 %v83
    %v280 = vunpack.c.l.b16 %v84
    %v281 = vunpack.c.l.b16 %v85
    %v282 = vunpack.c.l.b16 %v86
    %v283 = vunpack.c.l.b16 %v87
    %v284 = vunpack.c.l.b16 %v88
    %v285 = vunpack.c.l.b16 %v89
    %v286 = vunpack.c.l.b16 %v90
    %v287 = vunpack.c.l.b16 %v91
    %v288 = vunpack.c.l.b16 %v92
    %v289 = vunpack.c.l.b16 %v93
    %v290 = vunpack.c.l.b16 %v94
    %v291 = vunpack.c.l.b16 %v95
    %v292 = vunpack.c.l.b16 %v96
    %v293 = vunpack.c.l.b16 %v97
    %v294 = vunpack.c.l.b16 %v98
    %v295 = vunpack.c.l.b16 %v99
    %v296 = vunpack.c.l.b16 %v100
    %v297 = vunpack.c.l.b16 %v101
    %v298 = vunpack.c.l.b16 %v102
    %v299 = vunpack.c.l.b16 %v103
    %v300 = vunpack.c.l.b16 %v104
    %v301 = vunpack.c.l.b16 %v105
    %v302 = vunpack.c.l.b16 %v106
    %v303 = vunpack.c.l.b16 %v107
    %v304 = vunpack.c.l.b16 %v108
    %v305 = vunpack.c.l.b16 %v109
    %v306 = vunpack.c.l.b16 %v110
    %v307 = vunpack.c.l.b16 %v111
    %v308 = vunpack.c.l.b16 %v112
    %v309 = vunpack.c.l.b16 %v113
    %v310 = vunpack.c.l.b16 %v114
    %v311 = vunpack.c.l.b16 %v115
    %v312 = vunpack.c.l.b16 %v116
    %v313 = vunpack.c.l.b16 %v117
    %v314 = vunpack.c.l.b16 %v118
    %v315 = vunpack.c.l.b16 %v119
    %v316 = vunpack.c.l.b16 %v120
    %v317 = vunpack.c.l.b16 %v121
    %v318 = vunpack.c.l.b16 %v122
    %v319 = vunpack.c.l.b16 %v123
    %v320 = vunpack.c.l.b16 %v124
    %v321 = vunpack.c.l.b16 %v125
    %v322 = vunpack.c.l.b16 %v126
    %v323 = vunpack.c.l.b16 %v127
    %v324 = vunpack.c.l.b16 %v128
    %v325 = vunpack.c.l.b16 %v129
    %v326 = vunpack.c.l.b16 %v130
    %v327 = vunpack.c.l.b16 %v131
    %v328 = vunpack.c.l.b16 %v132
    %v329 = vunpack.c.l.b16 %v133
    %v330 = vunpack.c.l.b16 %v134
    %v331 = vunpack.c.l.b16 %v135
    %v332 = vunpack.c.l.b16 %v136
    %v333 = vunpack.c.l.b16 %v137
    %v334 = vunpack.c.l.b16 %v138
    %v335 = vunpack.c.l.b16 %v139
    %v336 = vunpack.c.l.b16 %v140
    %v337 = vunpack.c.l.b16 %v141
    %v338 = vunpack.c.l.b16 %v142
    %v339 = vunpack.c.l.b16 %v143
    %v340 = vunpack.c.l.b16 %v144
    %v341 = vunpack.c.l.b16 %v145
    %v342 = vunpack.c.l.b16 %v146
    %v343 = vunpack.c.l.b16 %v147
    %v344 = vunpack.c.l.b16 %v148
    %v345 = vunpack.c.l.b16 %v149
    %v346 = vunpack.c.l.b16 %v150
    %v347 = vunpack.c.l.b16 %v151
    %v348 = vunpack.c.l.b16 %v152
    %v349 = vunpack.c.l.b16 %v153
    %v350 = vunpack.c.l.b16 %v154
    %v351 = vunpack.c.l.b16 %v155
    %v352 = vunpack.c.l.b16 %v156
    %v353 = vunpack.c.l.b16 %v157
    %v354 = vunpack.c.l.b16 %v158
    %v355 = vunpack.c.l.b16 %v159
    %v356 = vunpack.c.l.b16 %v160
    %v357 = vunpack.c.l.b16 %v161
    %v358 = vunpack.c.l.b16 %v162
    %v359 = vunpack.c.l.b16 %v163
    %v360 = vunpack.c.l.b16 %v164
    %v361 = vunpack.c.l.b16 %v165
    %v362 = vunpack.c.l.b16 %v166
    %v363 = vunpack.c.l.b16 %v167
    %v364 = vunpack.c.l.b16 %v168
    %v365 = vunpack.c.l.b16 %v169
    %v366 = vunpack.c.l.b16 %v170
    %v367 = vunpack.c.l.b16 %v171
    %v368 = vunpack.c.l.b16 %v172
    %v369 = vunpack.c.l.b16 %v173
    %v370 = vunpack.c.l.b16 %v174
    %v371 = vunpack.c.l.b16 %v175
    %v372 = vunpack.c.l.b16 %v176
    %v373 = vunpack.c.l.b16 %v177
    %v374 = vunpack.c.l.b16 %v178
    %v375 = vpack.c.b16 %v279, %v278
    %v376 = vpack.c.b16 %v281, %v280
    %v377 = vpack.c.b16 %v283, %v282
    %v378 = vpack.c.b16 %v285, %v284
    %v379 = vpack.c.b16 %v287, %v286
    %v380 = vpack.c.b16 %v289, %v288
    %v381 = vpack.c.b16 %v291, %v290
    %v382 = vpack.c.b16 %v293, %v292
    %v383 = vpack.c.b16 %v295, %v294
    %v384 = vpack.c.b16 %v297, %v296
    %v385 = vpack.c.b16 %v299, %v298
    %v386 = vpack.c.b16 %v301, %v300
    %v387 = vpack.c.b16 %v303, %v302
    %v388 = vpack.c.b16 %v305, %v304
    %v389 = vpack.c.b16 %v307, %v306
    %v390 = vpack.c.b16 %v309, %v308
    %v391 = vpack.c.b16 %v311, %v310
    %v392 = vpack.c.b16 %v313, %v312
    %v393 = vpack.c.b16 %v315, %v314
    %v394 = vpack.c.b16 %v317, %v316
    %v395 = vpack.c.b16 %v319, %v318
    %v396 = vpack.c.b16 %v321, %v320
    %v397 = vpack.c.b16 %v323, %v322
    %v398 = vpack.c.b16 %v325, %v324
    %v399 = vpack.c.b16 %v327, %v326
    %v400 = vpack.c.b16 %v329, %v328
    %v401 = vpack.c.b16 %v331, %v330
    %v402 = vpack.c.b16 %v333, %v332
    %v403 = vpack.c.b16 %v335, %v334
    %v404 = vpack.c.b16 %v337, %v336
    %v405 = vpack.c.b16 %v339, %v338
    %v406 = vpack.c.b16 %v341, %v340
    %v407 = vpack.c.b16 %v343, %v342
    %v408 = vpack.c.b16 %v345, %v344
    %v409 = vpack.c.b16 %v347, %v346
    %v410 = vpack.c.b16 %v349, %v348
    %v411 = vpack.c.b16 %v351, %v350
    %v412 = vpack.c.b16 %v353, %v352
    %v413 = vpack.c.b16 %v355, %v354
    %v414 = vpack.c.b16 %v357, %v356
    %v415 = vpack.c.b16 %v359, %v358
    %v416 = vpack.c.b16 %v361, %v360
    %v417 = vpack.c.b16 %v363, %v362
    %v418 = vpack.c.b16 %v365, %v364
    %v419 = vpack.c.b16 %v367, %v366
    %v420 = vpack.c.b16 %v369, %v368
    %v421 = vpack.c.b16 %v371, %v370
    %v422 = vpack.c.b16 %v373, %v372
    %v423 = vpack.c.b16 %v374, %v374
    %vm472 = vcmask 15360
    %v474 = vsel %vm472, %v81, 0
    %vm476 = vcmask 1040384
    %v478 = vsel %vm476, %v423, 0
    %480 = vmatpush.bf16.msra.mxu0 %v382
    %481 = vmatpush.bf16.msra.mxu0 %v381
    %482 = vmatpush.bf16.msra.mxu0 %v380
    %483 = vmatpush.bf16.msra.mxu0 %v379
    %484 = vmatpush.bf16.msra.mxu0 %v378
    %485 = vmatpush.bf16.msra.mxu0 %v377
    %486 = vmatpush.bf16.msra.mxu0 %v376
    %487 = vmatpush.bf16.msra.mxu0 %v375
    %488 = vmatmul.bf16.gmra.mxu0 %v75
    %v489 = vpop.f32.mrf.mxu0
    %v490 = vadd.f32 %v179, %v489
    %v491 = vpop.f32.mrf.mxu0
    %v492 = vadd.f32 %v180, %v491
    %493 = vdwg.mxu0
    %494 = vmatpush.bf16.msra.mxu0 %v390
    %495 = vmatpush.bf16.msra.mxu0 %v389
    %496 = vmatpush.bf16.msra.mxu0 %v388
    %497 = vmatpush.bf16.msra.mxu0 %v387
    %498 = vmatpush.bf16.msra.mxu0 %v386
    %499 = vmatpush.bf16.msra.mxu0 %v385
    %500 = vmatpush.bf16.msra.mxu0 %v384
    %501 = vmatpush.bf16.msra.mxu0 %v383
    %502 = vmatmul.bf16.gmra.mxu0 %v76
    %v503 = vpop.f32.mrf.mxu0
    %v504 = vadd.f32 %v490, %v503
    %v505 = vpop.f32.mrf.mxu0
    %v506 = vadd.f32 %v492, %v505
    %507 = vdwg.mxu0
    %508 = vmatpush.bf16.msra.mxu0 %v398
    %509 = vmatpush.bf16.msra.mxu0 %v397
    %510 = vmatpush.bf16.msra.mxu0 %v396
    %511 = vmatpush.bf16.msra.mxu0 %v395
    %512 = vmatpush.bf16.msra.mxu0 %v394
    %513 = vmatpush.bf16.msra.mxu0 %v393
    %514 = vmatpush.bf16.msra.mxu0 %v392
    %515 = vmatpush.bf16.msra.mxu0 %v391
    %516 = vmatmul.bf16.gmra.mxu0 %v77
    %v517 = vpop.f32.mrf.mxu0
    %v518 = vadd.f32 %v504, %v517
    %v519 = vpop.f32.mrf.mxu0
    %v520 = vadd.f32 %v506, %v519
    %521 = vdwg.mxu0
    %522 = vmatpush.bf16.msra.mxu0 %v406
    %523 = vmatpush.bf16.msra.mxu0 %v405
    %524 = vmatpush.bf16.msra.mxu0 %v404
    %525 = vmatpush.bf16.msra.mxu0 %v403
    %526 = vmatpush.bf16.msra.mxu0 %v402
    %527 = vmatpush.bf16.msra.mxu0 %v401
    %528 = vmatpush.bf16.msra.mxu0 %v400
    %529 = vmatpush.bf16.msra.mxu0 %v399
    %530 = vmatmul.bf16.gmra.mxu0 %v78
    %v531 = vpop.f32.mrf.mxu0
    %v532 = vadd.f32 %v518, %v531
    %v533 = vpop.f32.mrf.mxu0
    %v534 = vadd.f32 %v520, %v533
    %535 = vdwg.mxu0
    %536 = vmatpush.bf16.msra.mxu0 %v414
    %537 = vmatpush.bf16.msra.mxu0 %v413
    %538 = vmatpush.bf16.msra.mxu0 %v412
    %539 = vmatpush.bf16.msra.mxu0 %v411
    %540 = vmatpush.bf16.msra.mxu0 %v410
    %541 = vmatpush.bf16.msra.mxu0 %v409
    %542 = vmatpush.bf16.msra.mxu0 %v408
    %543 = vmatpush.bf16.msra.mxu0 %v407
    %544 = vmatmul.bf16.gmra.mxu0 %v79
    %v545 = vpop.f32.mrf.mxu0
    %v546 = vadd.f32 %v532, %v545
    %v547 = vpop.f32.mrf.mxu0
    %v548 = vadd.f32 %v534, %v547
    %549 = vdwg.mxu0
    %550 = vmatpush.bf16.msra.mxu0 %v422
    %551 = vmatpush.bf16.msra.mxu0 %v421
    %552 = vmatpush.bf16.msra.mxu0 %v420
    %553 = vmatpush.bf16.msra.mxu0 %v419
    %554 = vmatpush.bf16.msra.mxu0 %v418
    %555 = vmatpush.bf16.msra.mxu0 %v417
    %556 = vmatpush.bf16.msra.mxu0 %v416
    %557 = vmatpush.bf16.msra.mxu0 %v415
    %558 = vmatmul.bf16.gmra.mxu0 %v80
    %v559 = vpop.f32.mrf.mxu0
    %v560 = vadd.f32 %v546, %v559
    %v561 = vpop.f32.mrf.mxu0
    %v562 = vadd.f32 %v548, %v561
    %563 = vdwg.mxu0
    %564 = vmatpush.bf16.msra.mxu0 0
    %565 = vmatpush.bf16.msra.mxu0 0
    %566 = vmatpush.bf16.msra.mxu0 0
    %567 = vmatpush.bf16.msra.mxu0 0
    %568 = vmatpush.bf16.msra.mxu0 0
    %569 = vmatpush.bf16.msra.mxu0 0
    %570 = vmatpush.bf16.msra.mxu0 0
    %571 = vmatpush.bf16.msra.mxu0 %v478
    %572 = vmatmul.bf16.gmra.mxu0 %v474
    %v573 = vpop.f32.mrf.mxu0
    %v574 = vadd.f32 %v560, %v573
    %v575 = vpop.f32.mrf.mxu0
    %v576 = vadd.f32 %v562, %v575
    %577 = vdwg.mxu0
    %v578 = vld [vmem:[%s3] sm:$0xff]
    %v579 = vld [vmem:[%s3 + $0x8] sm:$0x3]
    %v580 = vld [vmem:[%s4] sm:$0x1]
    %v581 = vld [vmem:[%s5] sm:$0x1]
    %582 = vadd.xlane.f32.xlu0 %v574
    %v583 = vpop.xlane.xlu0 %582
    %vm584 = vcmask 1041408
    %v585 = vsel %vm584, %v576, 0.0
    %586 = vadd.xlane.f32.xlu0 %v585
    %v587 = vpop.xlane.xlu0 %586
    %v588 = vrcp.pop 128.0
    %v589 = vmul.f32 128.0, %v588
    %v590 = vsub.f32 1.0, %v589
    %v591 = vmul.f32 %v588, %v590
    %v592 = vadd.f32 %v588, %v591
    %vm593 = vweird.f32 %v588
    %v594 = vsel %vm593, %v588, %v592
    %v595 = vmul.f32 %v583, %v594
    %v596 = vmul.f32 %v587, %v594
    %v597 = vsub.f32 %v574, %v595
    %v598 = vsub.f32 %v576, %v596
    %v599 = vmul.f32 %v597, %v597
    %v600 = vmul.f32 %v598, %v598
    %601 = vadd.xlane.f32.xlu0 %v599
    %v602 = vpop.xlane.xlu0 %601
    %v603 = vsel %vm584, %v600, 0.0
    %604 = vadd.xlane.f32.xlu0 %v603
    %v605 = vpop.xlane.xlu0 %604
    %v606 = vmul.f32 %v602, %v594
    %v607 = vmul.f32 %v605, %v594
    %v608 = vadd.f32 %v606, 1e-06
    %v609 = vadd.f32 %v607, 1e-06
    %v610 = vrsqrt.pop %v608
    %v611 = vmul.f32 %v610, %v608
    %v612 = vmul.f32 %v611, %v610
    %v613 = vmul.f32 0.5, %v612
    %v614 = vsub.f32 1.5, %v613
    %v615 = vmul.f32 %v610, %v614
    %vm616 = vweird.f32 %v608
    %vm617 = vweird.f32 %v610
    %vm618 = vmor %vm616, %vm617
    %v619 = vsel %vm618, %v610, %v615
    %v620 = vrsqrt.pop %v609
    %v621 = vmul.f32 %v620, %v609
    %v622 = vmul.f32 %v621, %v620
    %v623 = vmul.f32 0.5, %v622
    %v624 = vsub.f32 1.5, %v623
    %v625 = vmul.f32 %v620, %v624
    %vm626 = vweird.f32 %v609
    %vm627 = vweird.f32 %v620
    %vm628 = vmor %vm626, %vm627
    %v629 = vsel %vm628, %v620, %v625
    %v630 = vmul.f32 %v597, %v619
    %v631 = vmul.f32 %v598, %v629
    %v633 = vperm.slane %v580, 0
    %v635 = vmul.f32 %v630, %v633
    %v636 = vmul.f32 %v631, %v633
    %v638 = vperm.slane %v581, 0
    %v640 = vadd.f32 %v635, %v638
    %v641 = vadd.f32 %v636, %v638
    %v642 = vpack.c.bf16 %v641, %v640
    %v643 = vld [vmem:[%s6] sm:$0xff]
    %v644 = vld [vmem:[%s6 + $0x8] sm:$0xf]
    %v645 = vld [vmem:[%s6 + $0xc] sm:$0xff]
    %v646 = vld [vmem:[%s6 + $0x14] sm:$0xf]
    %v647 = vld [vmem:[%s6 + $0x18] sm:$0xff]
    %v648 = vld [vmem:[%s6 + $0x20] sm:$0xf]
    %v649 = vld [vmem:[%s6 + $0x24] sm:$0xff]
    %v650 = vld [vmem:[%s6 + $0x2c] sm:$0xf]
    %v651 = vld [vmem:[%s6 + $0x30] sm:$0xff]
    %v652 = vld [vmem:[%s6 + $0x38] sm:$0xf]
    %v653 = vld [vmem:[%s6 + $0x3c] sm:$0xff]
    %v654 = vld [vmem:[%s6 + $0x44] sm:$0xf]
    %v655 = vld [vmem:[%s6 + $0x48] sm:$0xff]
    %v656 = vld [vmem:[%s6 + $0x50] sm:$0xf]
    %v657 = vld [vmem:[%s6 + $0x54] sm:$0xff]
    %v658 = vld [vmem:[%s6 + $0x5c] sm:$0xf]
    %v659 = vld [vmem:[%s6 + $0x60] sm:$0xff]
    %v660 = vld [vmem:[%s6 + $0x68] sm:$0xf]
    %v661 = vld [vmem:[%s6 + $0x6c] sm:$0xff]
    %v662 = vld [vmem:[%s6 + $0x74] sm:$0xf]
    %v663 = vld [vmem:[%s6 + $0x78] sm:$0xff]
    %v664 = vld [vmem:[%s6 + $0x80] sm:$0xf]
    %v665 = vld [vmem:[%s6 + $0x84] sm:$0xff]
    %v666 = vld [vmem:[%s6 + $0x8c] sm:$0xf]
    %v667 = vld [vmem:[%s6 + $0x90] sm:$0xff]
    %v668 = vld [vmem:[%s6 + $0x98] sm:$0xf]
    %v669 = vld [vmem:[%s6 + $0x9c] sm:$0xff]
    %v670 = vld [vmem:[%s6 + $0xa4] sm:$0xf]
    %v671 = vld [vmem:[%s6 + $0xa8] sm:$0xff]
    %v672 = vld [vmem:[%s6 + $0xb0] sm:$0xf]
    %v673 = vld [vmem:[%s6 + $0xb4] sm:$0xff]
    %v674 = vld [vmem:[%s6 + $0xbc] sm:$0xf]
    %v675 = vld [vmem:[%s7] sm:$0x7]
    %v677 = vperm.slane %v675, 0
    %v678 = vperm.slane %v675, 1
    %v679 = vperm.slane %v675, 2
    %v715 = vunpack.c.l.b16 %v643
    %v716 = vunpack.c.h.b16 %v643
    %v717 = vunpack.c.l.b16 %v644
    %v718 = vunpack.c.l.b16 %v645
    %v719 = vunpack.c.h.b16 %v645
    %v720 = vunpack.c.l.b16 %v646
    %v721 = vunpack.c.l.b16 %v647
    %v722 = vunpack.c.h.b16 %v647
    %v723 = vunpack.c.l.b16 %v648
    %v724 = vunpack.c.l.b16 %v649
    %v725 = vunpack.c.h.b16 %v649
    %v726 = vunpack.c.l.b16 %v650
    %v727 = vunpack.c.l.b16 %v651
    %v728 = vunpack.c.h.b16 %v651
    %v729 = vunpack.c.l.b16 %v652
    %v730 = vunpack.c.l.b16 %v653
    %v731 = vunpack.c.h.b16 %v653
    %v732 = vunpack.c.l.b16 %v654
    %v733 = vunpack.c.l.b16 %v655
    %v734 = vunpack.c.h.b16 %v655
    %v735 = vunpack.c.l.b16 %v656
    %v736 = vunpack.c.l.b16 %v657
    %v737 = vunpack.c.h.b16 %v657
    %v738 = vunpack.c.l.b16 %v658
    %v739 = vunpack.c.l.b16 %v659
    %v740 = vunpack.c.h.b16 %v659
    %v741 = vunpack.c.l.b16 %v660
    %v742 = vunpack.c.l.b16 %v661
    %v743 = vunpack.c.h.b16 %v661
    %v744 = vunpack.c.l.b16 %v662
    %v745 = vunpack.c.l.b16 %v663
    %v746 = vunpack.c.h.b16 %v663
    %v747 = vunpack.c.l.b16 %v664
    %v748 = vunpack.c.l.b16 %v665
    %v749 = vunpack.c.h.b16 %v665
    %v750 = vunpack.c.l.b16 %v666
    %v751 = vunpack.c.l.b16 %v667
    %v752 = vunpack.c.h.b16 %v667
    %v753 = vunpack.c.l.b16 %v668
    %v754 = vunpack.c.l.b16 %v669
    %v755 = vunpack.c.h.b16 %v669
    %v756 = vunpack.c.l.b16 %v670
    %v757 = vunpack.c.l.b16 %v671
    %v758 = vunpack.c.h.b16 %v671
    %v759 = vunpack.c.l.b16 %v672
    %v760 = vunpack.c.l.b16 %v673
    %v761 = vunpack.c.h.b16 %v673
    %v762 = vunpack.c.l.b16 %v674
    %v763 = vpack.c.b16 %v718, %v715
    %v764 = vpack.c.b16 %v719, %v716
    %v765 = vpack.c.b16 %v720, %v717
    %v766 = vpack.c.b16 %v724, %v721
    %v767 = vpack.c.b16 %v725, %v722
    %v768 = vpack.c.b16 %v726, %v723
    %v769 = vpack.c.b16 %v730, %v727
    %v770 = vpack.c.b16 %v731, %v728
    %v771 = vpack.c.b16 %v732, %v729
    %v772 = vpack.c.b16 %v736, %v733
    %v773 = vpack.c.b16 %v737, %v734
    %v774 = vpack.c.b16 %v738, %v735
    %v775 = vpack.c.b16 %v742, %v739
    %v776 = vpack.c.b16 %v743, %v740
    %v777 = vpack.c.b16 %v744, %v741
    %v778 = vpack.c.b16 %v748, %v745
    %v779 = vpack.c.b16 %v749, %v746
    %v780 = vpack.c.b16 %v750, %v747
    %v781 = vpack.c.b16 %v754, %v751
    %v782 = vpack.c.b16 %v755, %v752
    %v783 = vpack.c.b16 %v756, %v753
    %v784 = vpack.c.b16 %v760, %v757
    %v785 = vpack.c.b16 %v761, %v758
    %v786 = vpack.c.b16 %v762, %v759
    %811 = vmatpush.bf16.msra.mxu0 %v784
    %812 = vmatpush.bf16.msra.mxu0 %v781
    %813 = vmatpush.bf16.msra.mxu0 %v778
    %814 = vmatpush.bf16.msra.mxu0 %v775
    %815 = vmatpush.bf16.msra.mxu0 %v772
    %816 = vmatpush.bf16.msra.mxu0 %v769
    %817 = vmatpush.bf16.msra.mxu0 %v766
    %818 = vmatpush.bf16.msra.mxu0 %v763
    %819 = vmatmul.bf16.gmra.mxu0 %v642
    %v820 = vpop.f32.mrf.mxu0
    %v821 = vadd.f32 %v677, %v820
    %v822 = vpop.f32.mrf.mxu0
    %v823 = vadd.f32 %v677, %v822
    %824 = vdwg.mxu0
    %825 = vmatpush.bf16.msra.mxu0 %v785
    %826 = vmatpush.bf16.msra.mxu0 %v782
    %827 = vmatpush.bf16.msra.mxu0 %v779
    %828 = vmatpush.bf16.msra.mxu0 %v776
    %829 = vmatpush.bf16.msra.mxu0 %v773
    %830 = vmatpush.bf16.msra.mxu0 %v770
    %831 = vmatpush.bf16.msra.mxu0 %v767
    %832 = vmatpush.bf16.msra.mxu0 %v764
    %833 = vmatmul.bf16.gmra.mxu0 %v642
    %v834 = vpop.f32.mrf.mxu0
    %v835 = vadd.f32 %v678, %v834
    %v836 = vpop.f32.mrf.mxu0
    %v837 = vadd.f32 %v678, %v836
    %838 = vdwg.mxu0
    %839 = vmatpush.bf16.msra.mxu0 %v786
    %840 = vmatpush.bf16.msra.mxu0 %v783
    %841 = vmatpush.bf16.msra.mxu0 %v780
    %842 = vmatpush.bf16.msra.mxu0 %v777
    %843 = vmatpush.bf16.msra.mxu0 %v774
    %844 = vmatpush.bf16.msra.mxu0 %v771
    %845 = vmatpush.bf16.msra.mxu0 %v768
    %846 = vmatpush.bf16.msra.mxu0 %v765
    %847 = vmatmul.bf16.gmra.mxu0 %v642
    %v848 = vpop.f32.mrf.mxu0
    %v849 = vadd.f32 %v679, %v848
    %v850 = vpop.f32.mrf.mxu0
    %v851 = vadd.f32 %v679, %v850
    %852 = vdwg.mxu0
    %855 = vrot.lane.b32.xlu0 %v821, 96
    %v856 = vpop.permute.xlu0 %855
    %857 = vrot.lane.b32.xlu0 %v823, 96
    %v858 = vpop.permute.xlu0 %857
    %859 = vrot.lane.b32.xlu0 %v821, 64
    %v860 = vpop.permute.xlu0 %859
    %861 = vrot.lane.b32.xlu0 %v823, 64
    %v862 = vpop.permute.xlu0 %861
    %863 = vrot.lane.b32.xlu0 %v821, 32
    %v864 = vpop.permute.xlu0 %863
    %865 = vrot.lane.b32.xlu0 %v823, 32
    %v866 = vpop.permute.xlu0 %865
    %869 = vrot.lane.b32.xlu0 %v835, 96
    %v870 = vpop.permute.xlu0 %869
    %871 = vrot.lane.b32.xlu0 %v837, 96
    %v872 = vpop.permute.xlu0 %871
    %873 = vrot.lane.b32.xlu0 %v835, 64
    %v874 = vpop.permute.xlu0 %873
    %875 = vrot.lane.b32.xlu0 %v837, 64
    %v876 = vpop.permute.xlu0 %875
    %877 = vrot.lane.b32.xlu0 %v835, 32
    %v878 = vpop.permute.xlu0 %877
    %879 = vrot.lane.b32.xlu0 %v837, 32
    %v880 = vpop.permute.xlu0 %879
    %883 = vrot.lane.b32.xlu0 %v849, 96
    %v884 = vpop.permute.xlu0 %883
    %885 = vrot.lane.b32.xlu0 %v851, 96
    %v886 = vpop.permute.xlu0 %885
    %888 = vrot.lane.b32.xlu0 %v849, 64
    %v889 = vpop.permute.xlu0 %888
    %890 = vrot.lane.b32.xlu0 %v851, 64
    %v891 = vpop.permute.xlu0 %890
    %893 = vrot.lane.b32.xlu0 %v849, 32
    %v894 = vpop.permute.xlu0 %893
    %895 = vrot.lane.b32.xlu0 %v851, 32
    %v896 = vpop.permute.xlu0 %895
    %vm898 = vcmask 261120
    %v899 = vsel %vm898, %v821, 0
    %v901 = vsel %vm898, %v823, 0
    %v903 = vsel %vm898, %v835, 0
    %v905 = vsel %vm898, %v837, 0
    %907 = vmatpush.xpose.msra.mxu0 0.0
    %908 = vmatpush.xpose.msra.mxu0 0.0
    %909 = vmatpush.xpose.msra.mxu0 0.0
    %910 = vmatpush.xpose.msra.mxu0 0.0
    %911 = vmatpush.xpose.msra.mxu0 0.0
    %912 = vmatpush.xpose.msra.mxu0 0.0
    %913 = vmatpush.xpose.msra.mxu0 0.0
    %914 = vmatpush.xpose.msra.mxu0 0.0
    %915 = vmatpush.xpose.msra.mxu0 0.0
    %916 = vmatpush.xpose.msra.mxu0 0.0
    %917 = vmatpush.xpose.msra.mxu0 0.0
    %918 = vmatpush.xpose.msra.mxu0 0.0
    %919 = vmatpush.xpose.msra.mxu0 0.0
    %920 = vmatpush.xpose.msra.mxu0 0.0
    %921 = vmatpush.xpose.msra.mxu0 %v905
    %922 = vmatpush.xpose.msra.mxu0 %v903
    %923 = vmatmul.f32.gmra.mxu0 %v899
    %v924 = vpop.f32.mrf.mxu0
    %v925 = vadd.f32 0.0, %v924
    %926 = vmatmul.f32.gmra.mxu0 %v901
    %v927 = vpop.f32.mrf.mxu0
    %v928 = vadd.f32 0.0, %v927
    %929 = vdwg.mxu0
    %v930 = vsel %vm898, %v856, 0
    %v932 = vsel %vm898, %v858, 0
    %v934 = vsel %vm898, %v870, 0
    %v936 = vsel %vm898, %v872, 0
    %938 = vmatpush.xpose.msra.mxu0 0.0
    %939 = vmatpush.xpose.msra.mxu0 0.0
    %940 = vmatpush.xpose.msra.mxu0 0.0
    %941 = vmatpush.xpose.msra.mxu0 0.0
    %942 = vmatpush.xpose.msra.mxu0 0.0
    %943 = vmatpush.xpose.msra.mxu0 0.0
    %944 = vmatpush.xpose.msra.mxu0 0.0
    %945 = vmatpush.xpose.msra.mxu0 0.0
    %946 = vmatpush.xpose.msra.mxu0 0.0
    %947 = vmatpush.xpose.msra.mxu0 0.0
    %948 = vmatpush.xpose.msra.mxu0 0.0
    %949 = vmatpush.xpose.msra.mxu0 0.0
    %950 = vmatpush.xpose.msra.mxu0 0.0
    %951 = vmatpush.xpose.msra.mxu0 0.0
    %952 = vmatpush.xpose.msra.mxu0 %v936
    %953 = vmatpush.xpose.msra.mxu0 %v934
    %954 = vmatmul.f32.gmra.mxu0 %v930
    %v955 = vpop.f32.mrf.mxu0
    %v956 = vadd.f32 0.0, %v955
    %957 = vmatmul.f32.gmra.mxu0 %v932
    %v958 = vpop.f32.mrf.mxu0
    %v959 = vadd.f32 0.0, %v958
    %960 = vdwg.mxu0
    %v961 = vsel %vm898, %v860, 0
    %v963 = vsel %vm898, %v862, 0
    %v965 = vsel %vm898, %v874, 0
    %v967 = vsel %vm898, %v876, 0
    %969 = vmatpush.xpose.msra.mxu0 0.0
    %970 = vmatpush.xpose.msra.mxu0 0.0
    %971 = vmatpush.xpose.msra.mxu0 0.0
    %972 = vmatpush.xpose.msra.mxu0 0.0
    %973 = vmatpush.xpose.msra.mxu0 0.0
    %974 = vmatpush.xpose.msra.mxu0 0.0
    %975 = vmatpush.xpose.msra.mxu0 0.0
    %976 = vmatpush.xpose.msra.mxu0 0.0
    %977 = vmatpush.xpose.msra.mxu0 0.0
    %978 = vmatpush.xpose.msra.mxu0 0.0
    %979 = vmatpush.xpose.msra.mxu0 0.0
    %980 = vmatpush.xpose.msra.mxu0 0.0
    %981 = vmatpush.xpose.msra.mxu0 0.0
    %982 = vmatpush.xpose.msra.mxu0 0.0
    %983 = vmatpush.xpose.msra.mxu0 %v967
    %984 = vmatpush.xpose.msra.mxu0 %v965
    %985 = vmatmul.f32.gmra.mxu0 %v961
    %v986 = vpop.f32.mrf.mxu0
    %v987 = vadd.f32 0.0, %v986
    %988 = vmatmul.f32.gmra.mxu0 %v963
    %v989 = vpop.f32.mrf.mxu0
    %v990 = vadd.f32 0.0, %v989
    %991 = vdwg.mxu0
    %v992 = vsel %vm898, %v864, 0
    %v994 = vsel %vm898, %v866, 0
    %v996 = vsel %vm898, %v878, 0
    %v998 = vsel %vm898, %v880, 0
    %1000 = vmatpush.xpose.msra.mxu0 0.0
    %1001 = vmatpush.xpose.msra.mxu0 0.0
    %1002 = vmatpush.xpose.msra.mxu0 0.0
    %1003 = vmatpush.xpose.msra.mxu0 0.0
    %1004 = vmatpush.xpose.msra.mxu0 0.0
    %1005 = vmatpush.xpose.msra.mxu0 0.0
    %1006 = vmatpush.xpose.msra.mxu0 0.0
    %1007 = vmatpush.xpose.msra.mxu0 0.0
    %1008 = vmatpush.xpose.msra.mxu0 0.0
    %1009 = vmatpush.xpose.msra.mxu0 0.0
    %1010 = vmatpush.xpose.msra.mxu0 0.0
    %1011 = vmatpush.xpose.msra.mxu0 0.0
    %1012 = vmatpush.xpose.msra.mxu0 0.0
    %1013 = vmatpush.xpose.msra.mxu0 0.0
    %1014 = vmatpush.xpose.msra.mxu0 %v998
    %1015 = vmatpush.xpose.msra.mxu0 %v996
    %1016 = vmatmul.f32.gmra.mxu0 %v992
    %v1017 = vpop.f32.mrf.mxu0
    %v1018 = vadd.f32 0.0, %v1017
    %1019 = vmatmul.f32.gmra.mxu0 %v994
    %v1020 = vpop.f32.mrf.mxu0
    %v1021 = vadd.f32 0.0, %v1020
    %1022 = vdwg.mxu0
    %v1023 = vmul.f32 %v925, 0.17677669
    %v1024 = vmul.f32 %v928, 0.17677669
    %v1025 = vmul.f32 %v956, 0.17677669
    %v1026 = vmul.f32 %v959, 0.17677669
    %v1027 = vmul.f32 %v987, 0.17677669
    %v1028 = vmul.f32 %v990, 0.17677669
    %v1029 = vmul.f32 %v1018, 0.17677669
    %v1030 = vmul.f32 %v1021, 0.17677669
    %v1031 = vadd.f32 %v1023, %v578
    %v1032 = vadd.f32 %v1024, %v579
    %v1033 = vadd.f32 %v1025, %v578
    %v1034 = vadd.f32 %v1026, %v579
    %v1035 = vadd.f32 %v1027, %v578
    %v1036 = vadd.f32 %v1028, %v579
    %v1037 = vadd.f32 %v1029, %v578
    %v1038 = vadd.f32 %v1030, %v579
    %vm1039 = vcmask 80896
    %v1040 = vsel %vm1039, %v1031, -inf
    %1041 = vmax.xlane.f32.xlu0 %v1040
    %v1042 = vpop.xlane.xlu0 %1041
    %vm1043 = vcmask 74752
    %v1044 = vsel %vm1043, %v1032, -inf
    %1045 = vmax.xlane.f32.xlu0 %v1044
    %v1046 = vpop.xlane.xlu0 %1045
    %v1047 = vsel %vm1039, %v1033, -inf
    %1048 = vmax.xlane.f32.xlu0 %v1047
    %v1049 = vpop.xlane.xlu0 %1048
    %v1050 = vsel %vm1043, %v1034, -inf
    %1051 = vmax.xlane.f32.xlu0 %v1050
    %v1052 = vpop.xlane.xlu0 %1051
    %v1053 = vsel %vm1039, %v1035, -inf
    %1054 = vmax.xlane.f32.xlu0 %v1053
    %v1055 = vpop.xlane.xlu0 %1054
    %v1056 = vsel %vm1043, %v1036, -inf
    %1057 = vmax.xlane.f32.xlu0 %v1056
    %v1058 = vpop.xlane.xlu0 %1057
    %v1059 = vsel %vm1039, %v1037, -inf
    %1060 = vmax.xlane.f32.xlu0 %v1059
    %v1061 = vpop.xlane.xlu0 %1060
    %v1062 = vsel %vm1043, %v1038, -inf
    %1063 = vmax.xlane.f32.xlu0 %v1062
    %v1064 = vpop.xlane.xlu0 %1063
    %v1065 = vsub.f32 %v1031, %v1042
    %v1066 = vsub.f32 %v1032, %v1046
    %v1067 = vsub.f32 %v1033, %v1049
    %v1068 = vsub.f32 %v1034, %v1052
    %v1069 = vsub.f32 %v1035, %v1055
    %v1070 = vsub.f32 %v1036, %v1058
    %v1071 = vsub.f32 %v1037, %v1061
    %v1072 = vsub.f32 %v1038, %v1064
    %v1073 = vmul.f32 %v1065, 1.442695
    %v1074 = vpow.pop %v1073
    %v1075 = vmul.f32 %v1066, 1.442695
    %v1076 = vpow.pop %v1075
    %v1077 = vmul.f32 %v1067, 1.442695
    %v1078 = vpow.pop %v1077
    %v1079 = vmul.f32 %v1068, 1.442695
    %v1080 = vpow.pop %v1079
    %v1081 = vmul.f32 %v1069, 1.442695
    %v1082 = vpow.pop %v1081
    %v1083 = vmul.f32 %v1070, 1.442695
    %v1084 = vpow.pop %v1083
    %v1085 = vmul.f32 %v1071, 1.442695
    %v1086 = vpow.pop %v1085
    %v1087 = vmul.f32 %v1072, 1.442695
    %v1088 = vpow.pop %v1087
    %v1089 = vsel %vm1039, %v1074, 0.0
    %1090 = vadd.xlane.f32.xlu0 %v1089
    %v1091 = vpop.xlane.xlu0 %1090
    %v1092 = vsel %vm1043, %v1076, 0.0
    %1093 = vadd.xlane.f32.xlu0 %v1092
    %v1094 = vpop.xlane.xlu0 %1093
    %v1095 = vsel %vm1039, %v1078, 0.0
    %1096 = vadd.xlane.f32.xlu0 %v1095
    %v1097 = vpop.xlane.xlu0 %1096
    %v1098 = vsel %vm1043, %v1080, 0.0
    %1099 = vadd.xlane.f32.xlu0 %v1098
    %v1100 = vpop.xlane.xlu0 %1099
    %v1101 = vsel %vm1039, %v1082, 0.0
    %1102 = vadd.xlane.f32.xlu0 %v1101
    %v1103 = vpop.xlane.xlu0 %1102
    %v1104 = vsel %vm1043, %v1084, 0.0
    %1105 = vadd.xlane.f32.xlu0 %v1104
    %v1106 = vpop.xlane.xlu0 %1105
    %v1107 = vsel %vm1039, %v1086, 0.0
    %1108 = vadd.xlane.f32.xlu0 %v1107
    %v1109 = vpop.xlane.xlu0 %1108
    %v1110 = vsel %vm1043, %v1088, 0.0
    %1111 = vadd.xlane.f32.xlu0 %v1110
    %v1112 = vpop.xlane.xlu0 %1111
    %v1113 = vrcp.pop %v1091
    %v1114 = vrcp.pop %v1094
    %v1115 = vrcp.pop %v1097
    %v1116 = vrcp.pop %v1100
    %v1117 = vrcp.pop %v1103
    %v1118 = vrcp.pop %v1106
    %v1119 = vrcp.pop %v1109
    %v1120 = vrcp.pop %v1112
    %v1121 = vmul.f32 %v1074, %v1113
    %v1122 = vmul.f32 %v1076, %v1114
    %v1123 = vmul.f32 %v1078, %v1115
    %v1124 = vmul.f32 %v1080, %v1116
    %v1125 = vmul.f32 %v1082, %v1117
    %v1126 = vmul.f32 %v1084, %v1118
    %v1127 = vmul.f32 %v1086, %v1119
    %v1128 = vmul.f32 %v1088, %v1120
    %v1130 = vsel %vm1039, %v1121, 0
    %v1133 = vsel %vm1039, %v1122, 0
    %v1135 = vsel %vm584, %v851, 0
    %1137 = vmatpush.msra.mxu0 0.0
    %1138 = vmatpush.msra.mxu0 0.0
    %1139 = vmatpush.msra.mxu0 0.0
    %1140 = vmatpush.msra.mxu0 0.0
    %1141 = vmatpush.msra.mxu0 0.0
    %1142 = vmatpush.msra.mxu0 0.0
    %1143 = vmatpush.msra.mxu0 0.0
    %1144 = vmatpush.msra.mxu0 0.0
    %1145 = vmatpush.msra.mxu0 0.0
    %1146 = vmatpush.msra.mxu0 0.0
    %1147 = vmatpush.msra.mxu0 0.0
    %1148 = vmatpush.msra.mxu0 0.0
    %1149 = vmatpush.msra.mxu0 0.0
    %1150 = vmatpush.msra.mxu0 0.0
    %1151 = vmatpush.msra.mxu0 %v1135
    %1152 = vmatpush.msra.mxu0 %v849
    %1153 = vmatmul.f32.gmra.mxu0 %v1130
    %v1154 = vpop.f32.mrf.mxu0
    %v1155 = vadd.f32 0.0, %v1154
    %1156 = vmatmul.f32.gmra.mxu0 %v1133
    %v1157 = vpop.f32.mrf.mxu0
    %v1158 = vadd.f32 0.0, %v1157
    %1159 = vdwg.mxu0
    %v1161 = vsel %vm1039, %v1123, 0
    %v1164 = vsel %vm1039, %v1124, 0
    %v1166 = vsel %vm584, %v886, 0
    %1168 = vmatpush.msra.mxu0 0.0
    %1169 = vmatpush.msra.mxu0 0.0
    %1170 = vmatpush.msra.mxu0 0.0
    %1171 = vmatpush.msra.mxu0 0.0
    %1172 = vmatpush.msra.mxu0 0.0
    %1173 = vmatpush.msra.mxu0 0.0
    %1174 = vmatpush.msra.mxu0 0.0
    %1175 = vmatpush.msra.mxu0 0.0
    %1176 = vmatpush.msra.mxu0 0.0
    %1177 = vmatpush.msra.mxu0 0.0
    %1178 = vmatpush.msra.mxu0 0.0
    %1179 = vmatpush.msra.mxu0 0.0
    %1180 = vmatpush.msra.mxu0 0.0
    %1181 = vmatpush.msra.mxu0 0.0
    %1182 = vmatpush.msra.mxu0 %v1166
    %1183 = vmatpush.msra.mxu0 %v884
    %1184 = vmatmul.f32.gmra.mxu0 %v1161
    %v1185 = vpop.f32.mrf.mxu0
    %v1186 = vadd.f32 0.0, %v1185
    %1187 = vmatmul.f32.gmra.mxu0 %v1164
    %v1188 = vpop.f32.mrf.mxu0
    %v1189 = vadd.f32 0.0, %v1188
    %1190 = vdwg.mxu0
    %v1192 = vsel %vm1039, %v1125, 0
    %v1195 = vsel %vm1039, %v1126, 0
    %v1197 = vsel %vm584, %v891, 0
    %1199 = vmatpush.msra.mxu0 0.0
    %1200 = vmatpush.msra.mxu0 0.0
    %1201 = vmatpush.msra.mxu0 0.0
    %1202 = vmatpush.msra.mxu0 0.0
    %1203 = vmatpush.msra.mxu0 0.0
    %1204 = vmatpush.msra.mxu0 0.0
    %1205 = vmatpush.msra.mxu0 0.0
    %1206 = vmatpush.msra.mxu0 0.0
    %1207 = vmatpush.msra.mxu0 0.0
    %1208 = vmatpush.msra.mxu0 0.0
    %1209 = vmatpush.msra.mxu0 0.0
    %1210 = vmatpush.msra.mxu0 0.0
    %1211 = vmatpush.msra.mxu0 0.0
    %1212 = vmatpush.msra.mxu0 0.0
    %1213 = vmatpush.msra.mxu0 %v1197
    %1214 = vmatpush.msra.mxu0 %v889
    %1215 = vmatmul.f32.gmra.mxu0 %v1192
    %v1216 = vpop.f32.mrf.mxu0
    %v1217 = vadd.f32 0.0, %v1216
    %1218 = vmatmul.f32.gmra.mxu0 %v1195
    %v1219 = vpop.f32.mrf.mxu0
    %v1220 = vadd.f32 0.0, %v1219
    %1221 = vdwg.mxu0
    %v1223 = vsel %vm1039, %v1127, 0
    %v1226 = vsel %vm1039, %v1128, 0
    %v1228 = vsel %vm584, %v896, 0
    %1230 = vmatpush.msra.mxu0 0.0
    %1231 = vmatpush.msra.mxu0 0.0
    %1232 = vmatpush.msra.mxu0 0.0
    %1233 = vmatpush.msra.mxu0 0.0
    %1234 = vmatpush.msra.mxu0 0.0
    %1235 = vmatpush.msra.mxu0 0.0
    %1236 = vmatpush.msra.mxu0 0.0
    %1237 = vmatpush.msra.mxu0 0.0
    %1238 = vmatpush.msra.mxu0 0.0
    %1239 = vmatpush.msra.mxu0 0.0
    %1240 = vmatpush.msra.mxu0 0.0
    %1241 = vmatpush.msra.mxu0 0.0
    %1242 = vmatpush.msra.mxu0 0.0
    %1243 = vmatpush.msra.mxu0 0.0
    %1244 = vmatpush.msra.mxu0 %v1228
    %1245 = vmatpush.msra.mxu0 %v894
    %1246 = vmatmul.f32.gmra.mxu0 %v1223
    %v1247 = vpop.f32.mrf.mxu0
    %v1248 = vadd.f32 0.0, %v1247
    %1249 = vmatmul.f32.gmra.mxu0 %v1226
    %v1250 = vpop.f32.mrf.mxu0
    %v1251 = vadd.f32 0.0, %v1250
    %1252 = vdwg.mxu0
    %1255 = vrot.lane.b32.xlu0 %v1186, 32
    %v1256 = vpop.permute.xlu0 %1255
    %1257 = vrot.lane.b32.xlu0 %v1189, 32
    %v1258 = vpop.permute.xlu0 %1257
    %1263 = vrot.lane.b32.xlu0 %v1217, 64
    %v1264 = vpop.permute.xlu0 %1263
    %1265 = vrot.lane.b32.xlu0 %v1220, 64
    %v1266 = vpop.permute.xlu0 %1265
    %1271 = vrot.lane.b32.xlu0 %v1248, 96
    %v1272 = vpop.permute.xlu0 %1271
    %1273 = vrot.lane.b32.xlu0 %v1251, 96
    %v1274 = vpop.permute.xlu0 %1273
    %v1277 = vsel %vm898, %v1155, %v1256
    %v1278 = vsel %vm898, %v1158, %v1258
    %vm1279 = vcmask 523264
    %v1280 = vsel %vm1279, %v1277, %v1264
    %v1281 = vsel %vm1279, %v1278, %v1266
    %vm1282 = vcmask 785408
    %v1283 = vsel %vm1282, %v1280, %v1272
    %v1284 = vsel %vm1282, %v1281, %v1274
    %v1285 = vpack.c.bf16 %v1284, %v1283
    %v1286 = vld [vmem:[%s8] sm:$0xf]
    %v1287 = vld [vmem:[%s8 + $0x4] sm:$0xf]
    %v1288 = vld [vmem:[%s8 + $0x8] sm:$0xf]
    %v1289 = vld [vmem:[%s8 + $0xc] sm:$0xf]
    %v1290 = vld [vmem:[%s8 + $0x10] sm:$0xf]
    %v1291 = vld [vmem:[%s8 + $0x14] sm:$0xf]
    %v1292 = vld [vmem:[%s8 + $0x18] sm:$0xf]
    %v1293 = vld [vmem:[%s8 + $0x1c] sm:$0xf]
    %v1294 = vld [vmem:[%s8 + $0x20] sm:$0xf]
    %v1295 = vld [vmem:[%s8 + $0x24] sm:$0xf]
    %v1296 = vld [vmem:[%s8 + $0x28] sm:$0xf]
    %v1297 = vld [vmem:[%s8 + $0x2c] sm:$0xf]
    %v1298 = vld [vmem:[%s8 + $0x30] sm:$0xf]
    %v1299 = vld [vmem:[%s8 + $0x34] sm:$0xf]
    %v1300 = vld [vmem:[%s8 + $0x38] sm:$0xf]
    %v1301 = vld [vmem:[%s8 + $0x3c] sm:$0xf]
    %v1302 = vld [vmem:[%s9] sm:$0x1]
    %v1304 = vperm.slane %v1302, 0
    %v1322 = vunpack.c.l.b16 %v1286
    %v1323 = vunpack.c.l.b16 %v1287
    %v1324 = vunpack.c.l.b16 %v1288
    %v1325 = vunpack.c.l.b16 %v1289
    %v1326 = vunpack.c.l.b16 %v1290
    %v1327 = vunpack.c.l.b16 %v1291
    %v1328 = vunpack.c.l.b16 %v1292
    %v1329 = vunpack.c.l.b16 %v1293
    %v1330 = vunpack.c.l.b16 %v1294
    %v1331 = vunpack.c.l.b16 %v1295
    %v1332 = vunpack.c.l.b16 %v1296
    %v1333 = vunpack.c.l.b16 %v1297
    %v1334 = vunpack.c.l.b16 %v1298
    %v1335 = vunpack.c.l.b16 %v1299
    %v1336 = vunpack.c.l.b16 %v1300
    %v1337 = vunpack.c.l.b16 %v1301
    %v1338 = vpack.c.b16 %v1323, %v1322
    %v1339 = vpack.c.b16 %v1325, %v1324
    %v1340 = vpack.c.b16 %v1327, %v1326
    %v1341 = vpack.c.b16 %v1329, %v1328
    %v1342 = vpack.c.b16 %v1331, %v1330
    %v1343 = vpack.c.b16 %v1333, %v1332
    %v1344 = vpack.c.b16 %v1335, %v1334
    %v1345 = vpack.c.b16 %v1337, %v1336
    %1354 = vmatpush.bf16.msra.mxu0 %v1345
    %1355 = vmatpush.bf16.msra.mxu0 %v1344
    %1356 = vmatpush.bf16.msra.mxu0 %v1343
    %1357 = vmatpush.bf16.msra.mxu0 %v1342
    %1358 = vmatpush.bf16.msra.mxu0 %v1341
    %1359 = vmatpush.bf16.msra.mxu0 %v1340
    %1360 = vmatpush.bf16.msra.mxu0 %v1339
    %1361 = vmatpush.bf16.msra.mxu0 %v1338
    %1362 = vmatmul.bf16.gmra.mxu0 %v1285
    %v1363 = vpop.f32.mrf.mxu0
    %v1364 = vadd.f32 %v1304, %v1363
    %v1365 = vpop.f32.mrf.mxu0
    %v1366 = vadd.f32 %v1304, %v1365
    %1367 = vdwg.mxu0
    %v1368 = vadd.f32 %v574, %v1364
    %v1369 = vadd.f32 %v576, %v1366
    %v1370 = vld [vmem:[%s10] sm:$0x1]
    %v1371 = vld [vmem:[%s11] sm:$0x1]
    %1372 = vadd.xlane.f32.xlu0 %v1368
    %v1373 = vpop.xlane.xlu0 %1372
    %v1374 = vsel %vm584, %v1369, 0.0
    %1375 = vadd.xlane.f32.xlu0 %v1374
    %v1376 = vpop.xlane.xlu0 %1375
    %v1377 = vmul.f32 %v1373, %v594
    %v1378 = vmul.f32 %v1376, %v594
    %v1379 = vsub.f32 %v1368, %v1377
    %v1380 = vsub.f32 %v1369, %v1378
    %v1381 = vmul.f32 %v1379, %v1379
    %v1382 = vmul.f32 %v1380, %v1380
    %1383 = vadd.xlane.f32.xlu0 %v1381
    %v1384 = vpop.xlane.xlu0 %1383
    %v1385 = vsel %vm584, %v1382, 0.0
    %1386 = vadd.xlane.f32.xlu0 %v1385
    %v1387 = vpop.xlane.xlu0 %1386
    %v1388 = vmul.f32 %v1384, %v594
    %v1389 = vmul.f32 %v1387, %v594
    %v1390 = vadd.f32 %v1388, 1e-06
    %v1391 = vadd.f32 %v1389, 1e-06
    %v1392 = vrsqrt.pop %v1390
    %v1393 = vmul.f32 %v1392, %v1390
    %v1394 = vmul.f32 %v1393, %v1392
    %v1395 = vmul.f32 0.5, %v1394
    %v1396 = vsub.f32 1.5, %v1395
    %v1397 = vmul.f32 %v1392, %v1396
    %vm1398 = vweird.f32 %v1390
    %vm1399 = vweird.f32 %v1392
    %vm1400 = vmor %vm1398, %vm1399
    %v1401 = vsel %vm1400, %v1392, %v1397
    %v1402 = vrsqrt.pop %v1391
    %v1403 = vmul.f32 %v1402, %v1391
    %v1404 = vmul.f32 %v1403, %v1402
    %v1405 = vmul.f32 0.5, %v1404
    %v1406 = vsub.f32 1.5, %v1405
    %v1407 = vmul.f32 %v1402, %v1406
    %vm1408 = vweird.f32 %v1391
    %vm1409 = vweird.f32 %v1402
    %vm1410 = vmor %vm1408, %vm1409
    %v1411 = vsel %vm1410, %v1402, %v1407
    %v1412 = vmul.f32 %v1379, %v1401
    %v1413 = vmul.f32 %v1380, %v1411
    %v1415 = vperm.slane %v1370, 0
    %v1417 = vmul.f32 %v1412, %v1415
    %v1418 = vmul.f32 %v1413, %v1415
    %v1420 = vperm.slane %v1371, 0
    %v1422 = vadd.f32 %v1417, %v1420
    %v1423 = vadd.f32 %v1418, %v1420
    %v1424 = vpack.c.bf16 %v1423, %v1422
    %v1425 = vld [vmem:[%s12] sm:$0xff]
    %v1426 = vld [vmem:[%s12 + $0x8] sm:$0xff]
    %v1427 = vld [vmem:[%s12 + $0x10] sm:$0xff]
    %v1428 = vld [vmem:[%s12 + $0x18] sm:$0xff]
    %v1429 = vld [vmem:[%s12 + $0x20] sm:$0xff]
    %v1430 = vld [vmem:[%s12 + $0x28] sm:$0xff]
    %v1431 = vld [vmem:[%s12 + $0x30] sm:$0xff]
    %v1432 = vld [vmem:[%s12 + $0x38] sm:$0xff]
    %v1433 = vld [vmem:[%s12 + $0x40] sm:$0xff]
    %v1434 = vld [vmem:[%s12 + $0x48] sm:$0xff]
    %v1435 = vld [vmem:[%s12 + $0x50] sm:$0xff]
    %v1436 = vld [vmem:[%s12 + $0x58] sm:$0xff]
    %v1437 = vld [vmem:[%s12 + $0x60] sm:$0xff]
    %v1438 = vld [vmem:[%s12 + $0x68] sm:$0xff]
    %v1439 = vld [vmem:[%s12 + $0x70] sm:$0xff]
    %v1440 = vld [vmem:[%s12 + $0x78] sm:$0xff]
    %v1441 = vld [vmem:[%s12 + $0x80] sm:$0xff]
    %v1442 = vld [vmem:[%s12 + $0x88] sm:$0xff]
    %v1443 = vld [vmem:[%s12 + $0x90] sm:$0xff]
    %v1444 = vld [vmem:[%s12 + $0x98] sm:$0xff]
    %v1445 = vld [vmem:[%s12 + $0xa0] sm:$0xff]
    %v1446 = vld [vmem:[%s12 + $0xa8] sm:$0xff]
    %v1447 = vld [vmem:[%s12 + $0xb0] sm:$0xff]
    %v1448 = vld [vmem:[%s12 + $0xb8] sm:$0xff]
    %v1449 = vld [vmem:[%s12 + $0xc0] sm:$0xff]
    %v1450 = vld [vmem:[%s12 + $0xc8] sm:$0xff]
    %v1451 = vld [vmem:[%s12 + $0xd0] sm:$0xff]
    %v1452 = vld [vmem:[%s12 + $0xd8] sm:$0xff]
    %v1453 = vld [vmem:[%s12 + $0xe0] sm:$0xff]
    %v1454 = vld [vmem:[%s12 + $0xe8] sm:$0xff]
    %v1455 = vld [vmem:[%s12 + $0xf0] sm:$0xff]
    %v1456 = vld [vmem:[%s12 + $0xf8] sm:$0xff]
    %v1457 = vld [vmem:[%s13] sm:$0xf]
    %v1459 = vperm.slane %v1457, 0
    %v1460 = vperm.slane %v1457, 1
    %v1461 = vperm.slane %v1457, 2
    %v1462 = vperm.slane %v1457, 3
    %v1499 = vunpack.c.l.b16 %v1425
    %v1500 = vunpack.c.h.b16 %v1425
    %v1501 = vunpack.c.l.b16 %v1426
    %v1502 = vunpack.c.h.b16 %v1426
    %v1503 = vunpack.c.l.b16 %v1427
    %v1504 = vunpack.c.h.b16 %v1427
    %v1505 = vunpack.c.l.b16 %v1428
    %v1506 = vunpack.c.h.b16 %v1428
    %v1507 = vunpack.c.l.b16 %v1429
    %v1508 = vunpack.c.h.b16 %v1429
    %v1509 = vunpack.c.l.b16 %v1430
    %v1510 = vunpack.c.h.b16 %v1430
    %v1511 = vunpack.c.l.b16 %v1431
    %v1512 = vunpack.c.h.b16 %v1431
    %v1513 = vunpack.c.l.b16 %v1432
    %v1514 = vunpack.c.h.b16 %v1432
    %v1515 = vunpack.c.l.b16 %v1433
    %v1516 = vunpack.c.h.b16 %v1433
    %v1517 = vunpack.c.l.b16 %v1434
    %v1518 = vunpack.c.h.b16 %v1434
    %v1519 = vunpack.c.l.b16 %v1435
    %v1520 = vunpack.c.h.b16 %v1435
    %v1521 = vunpack.c.l.b16 %v1436
    %v1522 = vunpack.c.h.b16 %v1436
    %v1523 = vunpack.c.l.b16 %v1437
    %v1524 = vunpack.c.h.b16 %v1437
    %v1525 = vunpack.c.l.b16 %v1438
    %v1526 = vunpack.c.h.b16 %v1438
    %v1527 = vunpack.c.l.b16 %v1439
    %v1528 = vunpack.c.h.b16 %v1439
    %v1529 = vunpack.c.l.b16 %v1440
    %v1530 = vunpack.c.h.b16 %v1440
    %v1531 = vunpack.c.l.b16 %v1441
    %v1532 = vunpack.c.h.b16 %v1441
    %v1533 = vunpack.c.l.b16 %v1442
    %v1534 = vunpack.c.h.b16 %v1442
    %v1535 = vunpack.c.l.b16 %v1443
    %v1536 = vunpack.c.h.b16 %v1443
    %v1537 = vunpack.c.l.b16 %v1444
    %v1538 = vunpack.c.h.b16 %v1444
    %v1539 = vunpack.c.l.b16 %v1445
    %v1540 = vunpack.c.h.b16 %v1445
    %v1541 = vunpack.c.l.b16 %v1446
    %v1542 = vunpack.c.h.b16 %v1446
    %v1543 = vunpack.c.l.b16 %v1447
    %v1544 = vunpack.c.h.b16 %v1447
    %v1545 = vunpack.c.l.b16 %v1448
    %v1546 = vunpack.c.h.b16 %v1448
    %v1547 = vunpack.c.l.b16 %v1449
    %v1548 = vunpack.c.h.b16 %v1449
    %v1549 = vunpack.c.l.b16 %v1450
    %v1550 = vunpack.c.h.b16 %v1450
    %v1551 = vunpack.c.l.b16 %v1451
    %v1552 = vunpack.c.h.b16 %v1451
    %v1553 = vunpack.c.l.b16 %v1452
    %v1554 = vunpack.c.h.b16 %v1452
    %v1555 = vunpack.c.l.b16 %v1453
    %v1556 = vunpack.c.h.b16 %v1453
    %v1557 = vunpack.c.l.b16 %v1454
    %v1558 = vunpack.c.h.b16 %v1454
    %v1559 = vunpack.c.l.b16 %v1455
    %v1560 = vunpack.c.h.b16 %v1455
    %v1561 = vunpack.c.l.b16 %v1456
    %v1562 = vunpack.c.h.b16 %v1456
    %v1563 = vpack.c.b16 %v1503, %v1499
    %v1564 = vpack.c.b16 %v1504, %v1500
    %v1565 = vpack.c.b16 %v1505, %v1501
    %v1566 = vpack.c.b16 %v1506, %v1502
    %v1567 = vpack.c.b16 %v1511, %v1507
    %v1568 = vpack.c.b16 %v1512, %v1508
    %v1569 = vpack.c.b16 %v1513, %v1509
    %v1570 = vpack.c.b16 %v1514, %v1510
    %v1571 = vpack.c.b16 %v1519, %v1515
    %v1572 = vpack.c.b16 %v1520, %v1516
    %v1573 = vpack.c.b16 %v1521, %v1517
    %v1574 = vpack.c.b16 %v1522, %v1518
    %v1575 = vpack.c.b16 %v1527, %v1523
    %v1576 = vpack.c.b16 %v1528, %v1524
    %v1577 = vpack.c.b16 %v1529, %v1525
    %v1578 = vpack.c.b16 %v1530, %v1526
    %v1579 = vpack.c.b16 %v1535, %v1531
    %v1580 = vpack.c.b16 %v1536, %v1532
    %v1581 = vpack.c.b16 %v1537, %v1533
    %v1582 = vpack.c.b16 %v1538, %v1534
    %v1583 = vpack.c.b16 %v1543, %v1539
    %v1584 = vpack.c.b16 %v1544, %v1540
    %v1585 = vpack.c.b16 %v1545, %v1541
    %v1586 = vpack.c.b16 %v1546, %v1542
    %v1587 = vpack.c.b16 %v1551, %v1547
    %v1588 = vpack.c.b16 %v1552, %v1548
    %v1589 = vpack.c.b16 %v1553, %v1549
    %v1590 = vpack.c.b16 %v1554, %v1550
    %v1591 = vpack.c.b16 %v1559, %v1555
    %v1592 = vpack.c.b16 %v1560, %v1556
    %v1593 = vpack.c.b16 %v1561, %v1557
    %v1594 = vpack.c.b16 %v1562, %v1558
    %1627 = vmatpush.bf16.msra.mxu0 %v1591
    %1628 = vmatpush.bf16.msra.mxu0 %v1587
    %1629 = vmatpush.bf16.msra.mxu0 %v1583
    %1630 = vmatpush.bf16.msra.mxu0 %v1579
    %1631 = vmatpush.bf16.msra.mxu0 %v1575
    %1632 = vmatpush.bf16.msra.mxu0 %v1571
    %1633 = vmatpush.bf16.msra.mxu0 %v1567
    %1634 = vmatpush.bf16.msra.mxu0 %v1563
    %1635 = vmatmul.bf16.gmra.mxu0 %v1424
    %v1636 = vpop.f32.mrf.mxu0
    %v1637 = vadd.f32 %v1459, %v1636
    %v1638 = vpop.f32.mrf.mxu0
    %v1639 = vadd.f32 %v1459, %v1638
    %1640 = vdwg.mxu0
    %1641 = vmatpush.bf16.msra.mxu0 %v1592
    %1642 = vmatpush.bf16.msra.mxu0 %v1588
    %1643 = vmatpush.bf16.msra.mxu0 %v1584
    %1644 = vmatpush.bf16.msra.mxu0 %v1580
    %1645 = vmatpush.bf16.msra.mxu0 %v1576
    %1646 = vmatpush.bf16.msra.mxu0 %v1572
    %1647 = vmatpush.bf16.msra.mxu0 %v1568
    %1648 = vmatpush.bf16.msra.mxu0 %v1564
    %1649 = vmatmul.bf16.gmra.mxu0 %v1424
    %v1650 = vpop.f32.mrf.mxu0
    %v1651 = vadd.f32 %v1460, %v1650
    %v1652 = vpop.f32.mrf.mxu0
    %v1653 = vadd.f32 %v1460, %v1652
    %1654 = vdwg.mxu0
    %1655 = vmatpush.bf16.msra.mxu0 %v1593
    %1656 = vmatpush.bf16.msra.mxu0 %v1589
    %1657 = vmatpush.bf16.msra.mxu0 %v1585
    %1658 = vmatpush.bf16.msra.mxu0 %v1581
    %1659 = vmatpush.bf16.msra.mxu0 %v1577
    %1660 = vmatpush.bf16.msra.mxu0 %v1573
    %1661 = vmatpush.bf16.msra.mxu0 %v1569
    %1662 = vmatpush.bf16.msra.mxu0 %v1565
    %1663 = vmatmul.bf16.gmra.mxu0 %v1424
    %v1664 = vpop.f32.mrf.mxu0
    %v1665 = vadd.f32 %v1461, %v1664
    %v1666 = vpop.f32.mrf.mxu0
    %v1667 = vadd.f32 %v1461, %v1666
    %1668 = vdwg.mxu0
    %1669 = vmatpush.bf16.msra.mxu0 %v1594
    %1670 = vmatpush.bf16.msra.mxu0 %v1590
    %1671 = vmatpush.bf16.msra.mxu0 %v1586
    %1672 = vmatpush.bf16.msra.mxu0 %v1582
    %1673 = vmatpush.bf16.msra.mxu0 %v1578
    %1674 = vmatpush.bf16.msra.mxu0 %v1574
    %1675 = vmatpush.bf16.msra.mxu0 %v1570
    %1676 = vmatpush.bf16.msra.mxu0 %v1566
    %1677 = vmatmul.bf16.gmra.mxu0 %v1424
    %v1678 = vpop.f32.mrf.mxu0
    %v1679 = vadd.f32 %v1462, %v1678
    %v1680 = vpop.f32.mrf.mxu0
    %v1681 = vadd.f32 %v1462, %v1680
    %1682 = vdwg.mxu0
    %v1683 = vmul.f32 %v1637, 0.5
    %v1684 = vmul.f32 %v1651, 0.5
    %v1685 = vmul.f32 %v1665, 0.5
    %v1686 = vmul.f32 %v1679, 0.5
    %v1687 = vmul.f32 %v1639, 0.5
    %v1688 = vmul.f32 %v1653, 0.5
    %v1689 = vmul.f32 %v1667, 0.5
    %v1690 = vmul.f32 %v1681, 0.5
    %v1691 = vmul.f32 %v1637, 0.044715
    %v1692 = vmul.f32 %v1651, 0.044715
    %v1693 = vmul.f32 %v1665, 0.044715
    %v1694 = vmul.f32 %v1679, 0.044715
    %v1695 = vmul.f32 %v1639, 0.044715
    %v1696 = vmul.f32 %v1653, 0.044715
    %v1697 = vmul.f32 %v1667, 0.044715
    %v1698 = vmul.f32 %v1681, 0.044715
    %v1699 = vmul.f32 %v1691, %v1637
    %v1700 = vmul.f32 %v1692, %v1651
    %v1701 = vmul.f32 %v1693, %v1665
    %v1702 = vmul.f32 %v1694, %v1679
    %v1703 = vmul.f32 %v1695, %v1639
    %v1704 = vmul.f32 %v1696, %v1653
    %v1705 = vmul.f32 %v1697, %v1667
    %v1706 = vmul.f32 %v1698, %v1681
    %v1707 = vmul.f32 %v1699, %v1637
    %v1708 = vmul.f32 %v1700, %v1651
    %v1709 = vmul.f32 %v1701, %v1665
    %v1710 = vmul.f32 %v1702, %v1679
    %v1711 = vmul.f32 %v1703, %v1639
    %v1712 = vmul.f32 %v1704, %v1653
    %v1713 = vmul.f32 %v1705, %v1667
    %v1714 = vmul.f32 %v1706, %v1681
    %v1715 = vadd.f32 %v1637, %v1707
    %v1716 = vadd.f32 %v1651, %v1708
    %v1717 = vadd.f32 %v1665, %v1709
    %v1718 = vadd.f32 %v1679, %v1710
    %v1719 = vadd.f32 %v1639, %v1711
    %v1720 = vadd.f32 %v1653, %v1712
    %v1721 = vadd.f32 %v1667, %v1713
    %v1722 = vadd.f32 %v1681, %v1714
    %v1723 = vmul.f32 %v1715, 0.7978846
    %v1724 = vmul.f32 %v1716, 0.7978846
    %v1725 = vmul.f32 %v1717, 0.7978846
    %v1726 = vmul.f32 %v1718, 0.7978846
    %v1727 = vmul.f32 %v1719, 0.7978846
    %v1728 = vmul.f32 %v1720, 0.7978846
    %v1729 = vmul.f32 %v1721, 0.7978846
    %v1730 = vmul.f32 %v1722, 0.7978846
    %v1731 = vtanh.pop %v1723
    %v1732 = vtanh.pop %v1724
    %v1733 = vtanh.pop %v1725
    %v1734 = vtanh.pop %v1726
    %v1735 = vtanh.pop %v1727
    %v1736 = vtanh.pop %v1728
    %v1737 = vtanh.pop %v1729
    %v1738 = vtanh.pop %v1730
    %v1739 = vadd.f32 %v1731, 1.0
    %v1740 = vadd.f32 %v1732, 1.0
    %v1741 = vadd.f32 %v1733, 1.0
    %v1742 = vadd.f32 %v1734, 1.0
    %v1743 = vadd.f32 %v1735, 1.0
    %v1744 = vadd.f32 %v1736, 1.0
    %v1745 = vadd.f32 %v1737, 1.0
    %v1746 = vadd.f32 %v1738, 1.0
    %v1747 = vmul.f32 %v1683, %v1739
    %v1748 = vmul.f32 %v1684, %v1740
    %v1749 = vmul.f32 %v1685, %v1741
    %v1750 = vmul.f32 %v1686, %v1742
    %v1751 = vmul.f32 %v1687, %v1743
    %v1752 = vmul.f32 %v1688, %v1744
    %v1753 = vmul.f32 %v1689, %v1745
    %v1754 = vmul.f32 %v1690, %v1746
    %v1755 = vpack.c.bf16 %v1751, %v1747
    %v1756 = vpack.c.bf16 %v1752, %v1748
    %v1757 = vpack.c.bf16 %v1753, %v1749
    %v1758 = vpack.c.bf16 %v1754, %v1750
    %v1759 = vld [vmem:[%s14] sm:$0xf]
    %v1760 = vld [vmem:[%s14 + $0x4] sm:$0xf]
    %v1761 = vld [vmem:[%s14 + $0x8] sm:$0xf]
    %v1762 = vld [vmem:[%s14 + $0xc] sm:$0xf]
    %v1763 = vld [vmem:[%s14 + $0x10] sm:$0xf]
    %v1764 = vld [vmem:[%s14 + $0x14] sm:$0xf]
    %v1765 = vld [vmem:[%s14 + $0x18] sm:$0xf]
    %v1766 = vld [vmem:[%s14 + $0x1c] sm:$0xf]
    %v1767 = vld [vmem:[%s14 + $0x20] sm:$0xf]
    %v1768 = vld [vmem:[%s14 + $0x24] sm:$0xf]
    %v1769 = vld [vmem:[%s14 + $0x28] sm:$0xf]
    %v1770 = vld [vmem:[%s14 + $0x2c] sm:$0xf]
    %v1771 = vld [vmem:[%s14 + $0x30] sm:$0xf]
    %v1772 = vld [vmem:[%s14 + $0x34] sm:$0xf]
    %v1773 = vld [vmem:[%s14 + $0x38] sm:$0xf]
    %v1774 = vld [vmem:[%s14 + $0x3c] sm:$0xf]
    %v1775 = vld [vmem:[%s14 + $0x40] sm:$0xf]
    %v1776 = vld [vmem:[%s14 + $0x44] sm:$0xf]
    %v1777 = vld [vmem:[%s14 + $0x48] sm:$0xf]
    %v1778 = vld [vmem:[%s14 + $0x4c] sm:$0xf]
    %v1779 = vld [vmem:[%s14 + $0x50] sm:$0xf]
    %v1780 = vld [vmem:[%s14 + $0x54] sm:$0xf]
    %v1781 = vld [vmem:[%s14 + $0x58] sm:$0xf]
    %v1782 = vld [vmem:[%s14 + $0x5c] sm:$0xf]
    %v1783 = vld [vmem:[%s14 + $0x60] sm:$0xf]
    %v1784 = vld [vmem:[%s14 + $0x64] sm:$0xf]
    %v1785 = vld [vmem:[%s14 + $0x68] sm:$0xf]
    %v1786 = vld [vmem:[%s14 + $0x6c] sm:$0xf]
    %v1787 = vld [vmem:[%s14 + $0x70] sm:$0xf]
    %v1788 = vld [vmem:[%s14 + $0x74] sm:$0xf]
    %v1789 = vld [vmem:[%s14 + $0x78] sm:$0xf]
    %v1790 = vld [vmem:[%s14 + $0x7c] sm:$0xf]
    %v1791 = vld [vmem:[%s14 + $0x80] sm:$0xf]
    %v1792 = vld [vmem:[%s14 + $0x84] sm:$0xf]
    %v1793 = vld [vmem:[%s14 + $0x88] sm:$0xf]
    %v1794 = vld [vmem:[%s14 + $0x8c] sm:$0xf]
    %v1795 = vld [vmem:[%s14 + $0x90] sm:$0xf]
    %v1796 = vld [vmem:[%s14 + $0x94] sm:$0xf]
    %v1797 = vld [vmem:[%s14 + $0x98] sm:$0xf]
    %v1798 = vld [vmem:[%s14 + $0x9c] sm:$0xf]
    %v1799 = vld [vmem:[%s14 + $0xa0] sm:$0xf]
    %v1800 = vld [vmem:[%s14 + $0xa4] sm:$0xf]
    %v1801 = vld [vmem:[%s14 + $0xa8] sm:$0xf]
    %v1802 = vld [vmem:[%s14 + $0xac] sm:$0xf]
    %v1803 = vld [vmem:[%s14 + $0xb0] sm:$0xf]
    %v1804 = vld [vmem:[%s14 + $0xb4] sm:$0xf]
    %v1805 = vld [vmem:[%s14 + $0xb8] sm:$0xf]
    %v1806 = vld [vmem:[%s14 + $0xbc] sm:$0xf]
    %v1807 = vld [vmem:[%s14 + $0xc0] sm:$0xf]
    %v1808 = vld [vmem:[%s14 + $0xc4] sm:$0xf]
    %v1809 = vld [vmem:[%s14 + $0xc8] sm:$0xf]
    %v1810 = vld [vmem:[%s14 + $0xcc] sm:$0xf]
    %v1811 = vld [vmem:[%s14 + $0xd0] sm:$0xf]
    %v1812 = vld [vmem:[%s14 + $0xd4] sm:$0xf]
    %v1813 = vld [vmem:[%s14 + $0xd8] sm:$0xf]
    %v1814 = vld [vmem:[%s14 + $0xdc] sm:$0xf]
    %v1815 = vld [vmem:[%s14 + $0xe0] sm:$0xf]
    %v1816 = vld [vmem:[%s14 + $0xe4] sm:$0xf]
    %v1817 = vld [vmem:[%s14 + $0xe8] sm:$0xf]
    %v1818 = vld [vmem:[%s14 + $0xec] sm:$0xf]
    %v1819 = vld [vmem:[%s14 + $0xf0] sm:$0xf]
    %v1820 = vld [vmem:[%s14 + $0xf4] sm:$0xf]
    %v1821 = vld [vmem:[%s14 + $0xf8] sm:$0xf]
    %v1822 = vld [vmem:[%s14 + $0xfc] sm:$0xf]
    %v1823 = vld [vmem:[%s15] sm:$0x1]
    %v1825 = vperm.slane %v1823, 0
    %v1891 = vunpack.c.l.b16 %v1759
    %v1892 = vunpack.c.l.b16 %v1760
    %v1893 = vunpack.c.l.b16 %v1761
    %v1894 = vunpack.c.l.b16 %v1762
    %v1895 = vunpack.c.l.b16 %v1763
    %v1896 = vunpack.c.l.b16 %v1764
    %v1897 = vunpack.c.l.b16 %v1765
    %v1898 = vunpack.c.l.b16 %v1766
    %v1899 = vunpack.c.l.b16 %v1767
    %v1900 = vunpack.c.l.b16 %v1768
    %v1901 = vunpack.c.l.b16 %v1769
    %v1902 = vunpack.c.l.b16 %v1770
    %v1903 = vunpack.c.l.b16 %v1771
    %v1904 = vunpack.c.l.b16 %v1772
    %v1905 = vunpack.c.l.b16 %v1773
    %v1906 = vunpack.c.l.b16 %v1774
    %v1907 = vunpack.c.l.b16 %v1775
    %v1908 = vunpack.c.l.b16 %v1776
    %v1909 = vunpack.c.l.b16 %v1777
    %v1910 = vunpack.c.l.b16 %v1778
    %v1911 = vunpack.c.l.b16 %v1779
    %v1912 = vunpack.c.l.b16 %v1780
    %v1913 = vunpack.c.l.b16 %v1781
    %v1914 = vunpack.c.l.b16 %v1782
    %v1915 = vunpack.c.l.b16 %v1783
    %v1916 = vunpack.c.l.b16 %v1784
    %v1917 = vunpack.c.l.b16 %v1785
    %v1918 = vunpack.c.l.b16 %v1786
    %v1919 = vunpack.c.l.b16 %v1787
    %v1920 = vunpack.c.l.b16 %v1788
    %v1921 = vunpack.c.l.b16 %v1789
    %v1922 = vunpack.c.l.b16 %v1790
    %v1923 = vunpack.c.l.b16 %v1791
    %v1924 = vunpack.c.l.b16 %v1792
    %v1925 = vunpack.c.l.b16 %v1793
    %v1926 = vunpack.c.l.b16 %v1794
    %v1927 = vunpack.c.l.b16 %v1795
    %v1928 = vunpack.c.l.b16 %v1796
    %v1929 = vunpack.c.l.b16 %v1797
    %v1930 = vunpack.c.l.b16 %v1798
    %v1931 = vunpack.c.l.b16 %v1799
    %v1932 = vunpack.c.l.b16 %v1800
    %v1933 = vunpack.c.l.b16 %v1801
    %v1934 = vunpack.c.l.b16 %v1802
    %v1935 = vunpack.c.l.b16 %v1803
    %v1936 = vunpack.c.l.b16 %v1804
    %v1937 = vunpack.c.l.b16 %v1805
    %v1938 = vunpack.c.l.b16 %v1806
    %v1939 = vunpack.c.l.b16 %v1807
    %v1940 = vunpack.c.l.b16 %v1808
    %v1941 = vunpack.c.l.b16 %v1809
    %v1942 = vunpack.c.l.b16 %v1810
    %v1943 = vunpack.c.l.b16 %v1811
    %v1944 = vunpack.c.l.b16 %v1812
    %v1945 = vunpack.c.l.b16 %v1813
    %v1946 = vunpack.c.l.b16 %v1814
    %v1947 = vunpack.c.l.b16 %v1815
    %v1948 = vunpack.c.l.b16 %v1816
    %v1949 = vunpack.c.l.b16 %v1817
    %v1950 = vunpack.c.l.b16 %v1818
    %v1951 = vunpack.c.l.b16 %v1819
    %v1952 = vunpack.c.l.b16 %v1820
    %v1953 = vunpack.c.l.b16 %v1821
    %v1954 = vunpack.c.l.b16 %v1822
    %v1955 = vpack.c.b16 %v1892, %v1891
    %v1956 = vpack.c.b16 %v1894, %v1893
    %v1957 = vpack.c.b16 %v1896, %v1895
    %v1958 = vpack.c.b16 %v1898, %v1897
    %v1959 = vpack.c.b16 %v1900, %v1899
    %v1960 = vpack.c.b16 %v1902, %v1901
    %v1961 = vpack.c.b16 %v1904, %v1903
    %v1962 = vpack.c.b16 %v1906, %v1905
    %v1963 = vpack.c.b16 %v1908, %v1907
    %v1964 = vpack.c.b16 %v1910, %v1909
    %v1965 = vpack.c.b16 %v1912, %v1911
    %v1966 = vpack.c.b16 %v1914, %v1913
    %v1967 = vpack.c.b16 %v1916, %v1915
    %v1968 = vpack.c.b16 %v1918, %v1917
    %v1969 = vpack.c.b16 %v1920, %v1919
    %v1970 = vpack.c.b16 %v1922, %v1921
    %v1971 = vpack.c.b16 %v1924, %v1923
    %v1972 = vpack.c.b16 %v1926, %v1925
    %v1973 = vpack.c.b16 %v1928, %v1927
    %v1974 = vpack.c.b16 %v1930, %v1929
    %v1975 = vpack.c.b16 %v1932, %v1931
    %v1976 = vpack.c.b16 %v1934, %v1933
    %v1977 = vpack.c.b16 %v1936, %v1935
    %v1978 = vpack.c.b16 %v1938, %v1937
    %v1979 = vpack.c.b16 %v1940, %v1939
    %v1980 = vpack.c.b16 %v1942, %v1941
    %v1981 = vpack.c.b16 %v1944, %v1943
    %v1982 = vpack.c.b16 %v1946, %v1945
    %v1983 = vpack.c.b16 %v1948, %v1947
    %v1984 = vpack.c.b16 %v1950, %v1949
    %v1985 = vpack.c.b16 %v1952, %v1951
    %v1986 = vpack.c.b16 %v1954, %v1953
    %2019 = vmatpush.bf16.msra.mxu0 %v1962
    %2020 = vmatpush.bf16.msra.mxu0 %v1961
    %2021 = vmatpush.bf16.msra.mxu0 %v1960
    %2022 = vmatpush.bf16.msra.mxu0 %v1959
    %2023 = vmatpush.bf16.msra.mxu0 %v1958
    %2024 = vmatpush.bf16.msra.mxu0 %v1957
    %2025 = vmatpush.bf16.msra.mxu0 %v1956
    %2026 = vmatpush.bf16.msra.mxu0 %v1955
    %2027 = vmatmul.bf16.gmra.mxu0 %v1755
    %v2028 = vpop.f32.mrf.mxu0
    %v2029 = vadd.f32 %v1825, %v2028
    %v2030 = vpop.f32.mrf.mxu0
    %v2031 = vadd.f32 %v1825, %v2030
    %2032 = vdwg.mxu0
    %2033 = vmatpush.bf16.msra.mxu0 %v1970
    %2034 = vmatpush.bf16.msra.mxu0 %v1969
    %2035 = vmatpush.bf16.msra.mxu0 %v1968
    %2036 = vmatpush.bf16.msra.mxu0 %v1967
    %2037 = vmatpush.bf16.msra.mxu0 %v1966
    %2038 = vmatpush.bf16.msra.mxu0 %v1965
    %2039 = vmatpush.bf16.msra.mxu0 %v1964
    %2040 = vmatpush.bf16.msra.mxu0 %v1963
    %2041 = vmatmul.bf16.gmra.mxu0 %v1756
    %v2042 = vpop.f32.mrf.mxu0
    %v2043 = vadd.f32 %v2029, %v2042
    %v2044 = vpop.f32.mrf.mxu0
    %v2045 = vadd.f32 %v2031, %v2044
    %2046 = vdwg.mxu0
    %2047 = vmatpush.bf16.msra.mxu0 %v1978
    %2048 = vmatpush.bf16.msra.mxu0 %v1977
    %2049 = vmatpush.bf16.msra.mxu0 %v1976
    %2050 = vmatpush.bf16.msra.mxu0 %v1975
    %2051 = vmatpush.bf16.msra.mxu0 %v1974
    %2052 = vmatpush.bf16.msra.mxu0 %v1973
    %2053 = vmatpush.bf16.msra.mxu0 %v1972
    %2054 = vmatpush.bf16.msra.mxu0 %v1971
    %2055 = vmatmul.bf16.gmra.mxu0 %v1757
    %v2056 = vpop.f32.mrf.mxu0
    %v2057 = vadd.f32 %v2043, %v2056
    %v2058 = vpop.f32.mrf.mxu0
    %v2059 = vadd.f32 %v2045, %v2058
    %2060 = vdwg.mxu0
    %2061 = vmatpush.bf16.msra.mxu0 %v1986
    %2062 = vmatpush.bf16.msra.mxu0 %v1985
    %2063 = vmatpush.bf16.msra.mxu0 %v1984
    %2064 = vmatpush.bf16.msra.mxu0 %v1983
    %2065 = vmatpush.bf16.msra.mxu0 %v1982
    %2066 = vmatpush.bf16.msra.mxu0 %v1981
    %2067 = vmatpush.bf16.msra.mxu0 %v1980
    %2068 = vmatpush.bf16.msra.mxu0 %v1979
    %2069 = vmatmul.bf16.gmra.mxu0 %v1758
    %v2070 = vpop.f32.mrf.mxu0
    %v2071 = vadd.f32 %v2057, %v2070
    %v2072 = vpop.f32.mrf.mxu0
    %v2073 = vadd.f32 %v2059, %v2072
    %2074 = vdwg.mxu0
    %v2075 = vadd.f32 %v1368, %v2071
    %v2076 = vadd.f32 %v1369, %v2073
    %s2077 = scalar_lea.vmem %s4, 1
    %v2078 = vld [vmem:[%s2077] sm:$0x1]
    %s2079 = scalar_lea.vmem %s5, 1
    %v2080 = vld [vmem:[%s2079] sm:$0x1]
    %2081 = vadd.xlane.f32.xlu0 %v2075
    %v2082 = vpop.xlane.xlu0 %2081
    %v2083 = vsel %vm584, %v2076, 0.0
    %2084 = vadd.xlane.f32.xlu0 %v2083
    %v2085 = vpop.xlane.xlu0 %2084
    %v2086 = vmul.f32 %v2082, %v594
    %v2087 = vmul.f32 %v2085, %v594
    %v2088 = vsub.f32 %v2075, %v2086
    %v2089 = vsub.f32 %v2076, %v2087
    %v2090 = vmul.f32 %v2088, %v2088
    %v2091 = vmul.f32 %v2089, %v2089
    %2092 = vadd.xlane.f32.xlu0 %v2090
    %v2093 = vpop.xlane.xlu0 %2092
    %v2094 = vsel %vm584, %v2091, 0.0
    %2095 = vadd.xlane.f32.xlu0 %v2094
    %v2096 = vpop.xlane.xlu0 %2095
    %v2097 = vmul.f32 %v2093, %v594
    %v2098 = vmul.f32 %v2096, %v594
    %v2099 = vadd.f32 %v2097, 1e-06
    %v2100 = vadd.f32 %v2098, 1e-06
    %v2101 = vrsqrt.pop %v2099
    %v2102 = vmul.f32 %v2101, %v2099
    %v2103 = vmul.f32 %v2102, %v2101
    %v2104 = vmul.f32 0.5, %v2103
    %v2105 = vsub.f32 1.5, %v2104
    %v2106 = vmul.f32 %v2101, %v2105
    %vm2107 = vweird.f32 %v2099
    %vm2108 = vweird.f32 %v2101
    %vm2109 = vmor %vm2107, %vm2108
    %v2110 = vsel %vm2109, %v2101, %v2106
    %v2111 = vrsqrt.pop %v2100
    %v2112 = vmul.f32 %v2111, %v2100
    %v2113 = vmul.f32 %v2112, %v2111
    %v2114 = vmul.f32 0.5, %v2113
    %v2115 = vsub.f32 1.5, %v2114
    %v2116 = vmul.f32 %v2111, %v2115
    %vm2117 = vweird.f32 %v2100
    %vm2118 = vweird.f32 %v2111
    %vm2119 = vmor %vm2117, %vm2118
    %v2120 = vsel %vm2119, %v2111, %v2116
    %v2121 = vmul.f32 %v2088, %v2110
    %v2122 = vmul.f32 %v2089, %v2120
    %v2124 = vperm.slane %v2078, 0
    %v2126 = vmul.f32 %v2121, %v2124
    %v2127 = vmul.f32 %v2122, %v2124
    %v2129 = vperm.slane %v2080, 0
    %v2131 = vadd.f32 %v2126, %v2129
    %v2132 = vadd.f32 %v2127, %v2129
    %v2133 = vpack.c.bf16 %v2132, %v2131
    %s2134 = scalar_lea.vmem %s6, 192
    %v2135 = vld [vmem:[%s2134] sm:$0xff]
    %v2136 = vld [vmem:[%s2134 + $0x8] sm:$0xf]
    %v2137 = vld [vmem:[%s2134 + $0xc] sm:$0xff]
    %v2138 = vld [vmem:[%s2134 + $0x14] sm:$0xf]
    %v2139 = vld [vmem:[%s2134 + $0x18] sm:$0xff]
    %v2140 = vld [vmem:[%s2134 + $0x20] sm:$0xf]
    %v2141 = vld [vmem:[%s2134 + $0x24] sm:$0xff]
    %v2142 = vld [vmem:[%s2134 + $0x2c] sm:$0xf]
    %v2143 = vld [vmem:[%s2134 + $0x30] sm:$0xff]
    %v2144 = vld [vmem:[%s2134 + $0x38] sm:$0xf]
    %v2145 = vld [vmem:[%s2134 + $0x3c] sm:$0xff]
    %v2146 = vld [vmem:[%s2134 + $0x44] sm:$0xf]
    %v2147 = vld [vmem:[%s2134 + $0x48] sm:$0xff]
    %v2148 = vld [vmem:[%s2134 + $0x50] sm:$0xf]
    %v2149 = vld [vmem:[%s2134 + $0x54] sm:$0xff]
    %v2150 = vld [vmem:[%s2134 + $0x5c] sm:$0xf]
    %v2151 = vld [vmem:[%s2134 + $0x60] sm:$0xff]
    %v2152 = vld [vmem:[%s2134 + $0x68] sm:$0xf]
    %v2153 = vld [vmem:[%s2134 + $0x6c] sm:$0xff]
    %v2154 = vld [vmem:[%s2134 + $0x74] sm:$0xf]
    %v2155 = vld [vmem:[%s2134 + $0x78] sm:$0xff]
    %v2156 = vld [vmem:[%s2134 + $0x80] sm:$0xf]
    %v2157 = vld [vmem:[%s2134 + $0x84] sm:$0xff]
    %v2158 = vld [vmem:[%s2134 + $0x8c] sm:$0xf]
    %v2159 = vld [vmem:[%s2134 + $0x90] sm:$0xff]
    %v2160 = vld [vmem:[%s2134 + $0x98] sm:$0xf]
    %v2161 = vld [vmem:[%s2134 + $0x9c] sm:$0xff]
    %v2162 = vld [vmem:[%s2134 + $0xa4] sm:$0xf]
    %v2163 = vld [vmem:[%s2134 + $0xa8] sm:$0xff]
    %v2164 = vld [vmem:[%s2134 + $0xb0] sm:$0xf]
    %v2165 = vld [vmem:[%s2134 + $0xb4] sm:$0xff]
    %v2166 = vld [vmem:[%s2134 + $0xbc] sm:$0xf]
    %s2167 = scalar_lea.vmem %s7, 3
    %v2168 = vld [vmem:[%s2167] sm:$0x7]
    %v2170 = vperm.slane %v2168, 0
    %v2171 = vperm.slane %v2168, 1
    %v2172 = vperm.slane %v2168, 2
    %v2208 = vunpack.c.l.b16 %v2135
    %v2209 = vunpack.c.h.b16 %v2135
    %v2210 = vunpack.c.l.b16 %v2136
    %v2211 = vunpack.c.l.b16 %v2137
    %v2212 = vunpack.c.h.b16 %v2137
    %v2213 = vunpack.c.l.b16 %v2138
    %v2214 = vunpack.c.l.b16 %v2139
    %v2215 = vunpack.c.h.b16 %v2139
    %v2216 = vunpack.c.l.b16 %v2140
    %v2217 = vunpack.c.l.b16 %v2141
    %v2218 = vunpack.c.h.b16 %v2141
    %v2219 = vunpack.c.l.b16 %v2142
    %v2220 = vunpack.c.l.b16 %v2143
    %v2221 = vunpack.c.h.b16 %v2143
    %v2222 = vunpack.c.l.b16 %v2144
    %v2223 = vunpack.c.l.b16 %v2145
    %v2224 = vunpack.c.h.b16 %v2145
    %v2225 = vunpack.c.l.b16 %v2146
    %v2226 = vunpack.c.l.b16 %v2147
    %v2227 = vunpack.c.h.b16 %v2147
    %v2228 = vunpack.c.l.b16 %v2148
    %v2229 = vunpack.c.l.b16 %v2149
    %v2230 = vunpack.c.h.b16 %v2149
    %v2231 = vunpack.c.l.b16 %v2150
    %v2232 = vunpack.c.l.b16 %v2151
    %v2233 = vunpack.c.h.b16 %v2151
    %v2234 = vunpack.c.l.b16 %v2152
    %v2235 = vunpack.c.l.b16 %v2153
    %v2236 = vunpack.c.h.b16 %v2153
    %v2237 = vunpack.c.l.b16 %v2154
    %v2238 = vunpack.c.l.b16 %v2155
    %v2239 = vunpack.c.h.b16 %v2155
    %v2240 = vunpack.c.l.b16 %v2156
    %v2241 = vunpack.c.l.b16 %v2157
    %v2242 = vunpack.c.h.b16 %v2157
    %v2243 = vunpack.c.l.b16 %v2158
    %v2244 = vunpack.c.l.b16 %v2159
    %v2245 = vunpack.c.h.b16 %v2159
    %v2246 = vunpack.c.l.b16 %v2160
    %v2247 = vunpack.c.l.b16 %v2161
    %v2248 = vunpack.c.h.b16 %v2161
    %v2249 = vunpack.c.l.b16 %v2162
    %v2250 = vunpack.c.l.b16 %v2163
    %v2251 = vunpack.c.h.b16 %v2163
    %v2252 = vunpack.c.l.b16 %v2164
    %v2253 = vunpack.c.l.b16 %v2165
    %v2254 = vunpack.c.h.b16 %v2165
    %v2255 = vunpack.c.l.b16 %v2166
    %v2256 = vpack.c.b16 %v2211, %v2208
    %v2257 = vpack.c.b16 %v2212, %v2209
    %v2258 = vpack.c.b16 %v2213, %v2210
    %v2259 = vpack.c.b16 %v2217, %v2214
    %v2260 = vpack.c.b16 %v2218, %v2215
    %v2261 = vpack.c.b16 %v2219, %v2216
    %v2262 = vpack.c.b16 %v2223, %v2220
    %v2263 = vpack.c.b16 %v2224, %v2221
    %v2264 = vpack.c.b16 %v2225, %v2222
    %v2265 = vpack.c.b16 %v2229, %v2226
    %v2266 = vpack.c.b16 %v2230, %v2227
    %v2267 = vpack.c.b16 %v2231, %v2228
    %v2268 = vpack.c.b16 %v2235, %v2232
    %v2269 = vpack.c.b16 %v2236, %v2233
    %v2270 = vpack.c.b16 %v2237, %v2234
    %v2271 = vpack.c.b16 %v2241, %v2238
    %v2272 = vpack.c.b16 %v2242, %v2239
    %v2273 = vpack.c.b16 %v2243, %v2240
    %v2274 = vpack.c.b16 %v2247, %v2244
    %v2275 = vpack.c.b16 %v2248, %v2245
    %v2276 = vpack.c.b16 %v2249, %v2246
    %v2277 = vpack.c.b16 %v2253, %v2250
    %v2278 = vpack.c.b16 %v2254, %v2251
    %v2279 = vpack.c.b16 %v2255, %v2252
    %2304 = vmatpush.bf16.msra.mxu0 %v2277
    %2305 = vmatpush.bf16.msra.mxu0 %v2274
    %2306 = vmatpush.bf16.msra.mxu0 %v2271
    %2307 = vmatpush.bf16.msra.mxu0 %v2268
    %2308 = vmatpush.bf16.msra.mxu0 %v2265
    %2309 = vmatpush.bf16.msra.mxu0 %v2262
    %2310 = vmatpush.bf16.msra.mxu0 %v2259
    %2311 = vmatpush.bf16.msra.mxu0 %v2256
    %2312 = vmatmul.bf16.gmra.mxu0 %v2133
    %v2313 = vpop.f32.mrf.mxu0
    %v2314 = vadd.f32 %v2170, %v2313
    %v2315 = vpop.f32.mrf.mxu0
    %v2316 = vadd.f32 %v2170, %v2315
    %2317 = vdwg.mxu0
    %2318 = vmatpush.bf16.msra.mxu0 %v2278
    %2319 = vmatpush.bf16.msra.mxu0 %v2275
    %2320 = vmatpush.bf16.msra.mxu0 %v2272
    %2321 = vmatpush.bf16.msra.mxu0 %v2269
    %2322 = vmatpush.bf16.msra.mxu0 %v2266
    %2323 = vmatpush.bf16.msra.mxu0 %v2263
    %2324 = vmatpush.bf16.msra.mxu0 %v2260
    %2325 = vmatpush.bf16.msra.mxu0 %v2257
    %2326 = vmatmul.bf16.gmra.mxu0 %v2133
    %v2327 = vpop.f32.mrf.mxu0
    %v2328 = vadd.f32 %v2171, %v2327
    %v2329 = vpop.f32.mrf.mxu0
    %v2330 = vadd.f32 %v2171, %v2329
    %2331 = vdwg.mxu0
    %2332 = vmatpush.bf16.msra.mxu0 %v2279
    %2333 = vmatpush.bf16.msra.mxu0 %v2276
    %2334 = vmatpush.bf16.msra.mxu0 %v2273
    %2335 = vmatpush.bf16.msra.mxu0 %v2270
    %2336 = vmatpush.bf16.msra.mxu0 %v2267
    %2337 = vmatpush.bf16.msra.mxu0 %v2264
    %2338 = vmatpush.bf16.msra.mxu0 %v2261
    %2339 = vmatpush.bf16.msra.mxu0 %v2258
    %2340 = vmatmul.bf16.gmra.mxu0 %v2133
    %v2341 = vpop.f32.mrf.mxu0
    %v2342 = vadd.f32 %v2172, %v2341
    %v2343 = vpop.f32.mrf.mxu0
    %v2344 = vadd.f32 %v2172, %v2343
    %2345 = vdwg.mxu0
    %2348 = vrot.lane.b32.xlu0 %v2314, 96
    %v2349 = vpop.permute.xlu0 %2348
    %2350 = vrot.lane.b32.xlu0 %v2316, 96
    %v2351 = vpop.permute.xlu0 %2350
    %2352 = vrot.lane.b32.xlu0 %v2314, 64
    %v2353 = vpop.permute.xlu0 %2352
    %2354 = vrot.lane.b32.xlu0 %v2316, 64
    %v2355 = vpop.permute.xlu0 %2354
    %2356 = vrot.lane.b32.xlu0 %v2314, 32
    %v2357 = vpop.permute.xlu0 %2356
    %2358 = vrot.lane.b32.xlu0 %v2316, 32
    %v2359 = vpop.permute.xlu0 %2358
    %2362 = vrot.lane.b32.xlu0 %v2328, 96
    %v2363 = vpop.permute.xlu0 %2362
    %2364 = vrot.lane.b32.xlu0 %v2330, 96
    %v2365 = vpop.permute.xlu0 %2364
    %2366 = vrot.lane.b32.xlu0 %v2328, 64
    %v2367 = vpop.permute.xlu0 %2366
    %2368 = vrot.lane.b32.xlu0 %v2330, 64
    %v2369 = vpop.permute.xlu0 %2368
    %2370 = vrot.lane.b32.xlu0 %v2328, 32
    %v2371 = vpop.permute.xlu0 %2370
    %2372 = vrot.lane.b32.xlu0 %v2330, 32
    %v2373 = vpop.permute.xlu0 %2372
    %2376 = vrot.lane.b32.xlu0 %v2342, 96
    %v2377 = vpop.permute.xlu0 %2376
    %2378 = vrot.lane.b32.xlu0 %v2344, 96
    %v2379 = vpop.permute.xlu0 %2378
    %2381 = vrot.lane.b32.xlu0 %v2342, 64
    %v2382 = vpop.permute.xlu0 %2381
    %2383 = vrot.lane.b32.xlu0 %v2344, 64
    %v2384 = vpop.permute.xlu0 %2383
    %2386 = vrot.lane.b32.xlu0 %v2342, 32
    %v2387 = vpop.permute.xlu0 %2386
    %2388 = vrot.lane.b32.xlu0 %v2344, 32
    %v2389 = vpop.permute.xlu0 %2388
    %v2391 = vsel %vm898, %v2314, 0
    %v2393 = vsel %vm898, %v2316, 0
    %v2395 = vsel %vm898, %v2328, 0
    %v2397 = vsel %vm898, %v2330, 0
    %2399 = vmatpush.xpose.msra.mxu0 0.0
    %2400 = vmatpush.xpose.msra.mxu0 0.0
    %2401 = vmatpush.xpose.msra.mxu0 0.0
    %2402 = vmatpush.xpose.msra.mxu0 0.0
    %2403 = vmatpush.xpose.msra.mxu0 0.0
    %2404 = vmatpush.xpose.msra.mxu0 0.0
    %2405 = vmatpush.xpose.msra.mxu0 0.0
    %2406 = vmatpush.xpose.msra.mxu0 0.0
    %2407 = vmatpush.xpose.msra.mxu0 0.0
    %2408 = vmatpush.xpose.msra.mxu0 0.0
    %2409 = vmatpush.xpose.msra.mxu0 0.0
    %2410 = vmatpush.xpose.msra.mxu0 0.0
    %2411 = vmatpush.xpose.msra.mxu0 0.0
    %2412 = vmatpush.xpose.msra.mxu0 0.0
    %2413 = vmatpush.xpose.msra.mxu0 %v2397
    %2414 = vmatpush.xpose.msra.mxu0 %v2395
    %2415 = vmatmul.f32.gmra.mxu0 %v2391
    %v2416 = vpop.f32.mrf.mxu0
    %v2417 = vadd.f32 0.0, %v2416
    %2418 = vmatmul.f32.gmra.mxu0 %v2393
    %v2419 = vpop.f32.mrf.mxu0
    %v2420 = vadd.f32 0.0, %v2419
    %2421 = vdwg.mxu0
    %v2422 = vsel %vm898, %v2349, 0
    %v2424 = vsel %vm898, %v2351, 0
    %v2426 = vsel %vm898, %v2363, 0
    %v2428 = vsel %vm898, %v2365, 0
    %2430 = vmatpush.xpose.msra.mxu0 0.0
    %2431 = vmatpush.xpose.msra.mxu0 0.0
    %2432 = vmatpush.xpose.msra.mxu0 0.0
    %2433 = vmatpush.xpose.msra.mxu0 0.0
    %2434 = vmatpush.xpose.msra.mxu0 0.0
    %2435 = vmatpush.xpose.msra.mxu0 0.0
    %2436 = vmatpush.xpose.msra.mxu0 0.0
    %2437 = vmatpush.xpose.msra.mxu0 0.0
    %2438 = vmatpush.xpose.msra.mxu0 0.0
    %2439 = vmatpush.xpose.msra.mxu0 0.0
    %2440 = vmatpush.xpose.msra.mxu0 0.0
    %2441 = vmatpush.xpose.msra.mxu0 0.0
    %2442 = vmatpush.xpose.msra.mxu0 0.0
    %2443 = vmatpush.xpose.msra.mxu0 0.0
    %2444 = vmatpush.xpose.msra.mxu0 %v2428
    %2445 = vmatpush.xpose.msra.mxu0 %v2426
    %2446 = vmatmul.f32.gmra.mxu0 %v2422
    %v2447 = vpop.f32.mrf.mxu0
    %v2448 = vadd.f32 0.0, %v2447
    %2449 = vmatmul.f32.gmra.mxu0 %v2424
    %v2450 = vpop.f32.mrf.mxu0
    %v2451 = vadd.f32 0.0, %v2450
    %2452 = vdwg.mxu0
    %v2453 = vsel %vm898, %v2353, 0
    %v2455 = vsel %vm898, %v2355, 0
    %v2457 = vsel %vm898, %v2367, 0
    %v2459 = vsel %vm898, %v2369, 0
    %2461 = vmatpush.xpose.msra.mxu0 0.0
    %2462 = vmatpush.xpose.msra.mxu0 0.0
    %2463 = vmatpush.xpose.msra.mxu0 0.0
    %2464 = vmatpush.xpose.msra.mxu0 0.0
    %2465 = vmatpush.xpose.msra.mxu0 0.0
    %2466 = vmatpush.xpose.msra.mxu0 0.0
    %2467 = vmatpush.xpose.msra.mxu0 0.0
    %2468 = vmatpush.xpose.msra.mxu0 0.0
    %2469 = vmatpush.xpose.msra.mxu0 0.0
    %2470 = vmatpush.xpose.msra.mxu0 0.0
    %2471 = vmatpush.xpose.msra.mxu0 0.0
    %2472 = vmatpush.xpose.msra.mxu0 0.0
    %2473 = vmatpush.xpose.msra.mxu0 0.0
    %2474 = vmatpush.xpose.msra.mxu0 0.0
    %2475 = vmatpush.xpose.msra.mxu0 %v2459
    %2476 = vmatpush.xpose.msra.mxu0 %v2457
    %2477 = vmatmul.f32.gmra.mxu0 %v2453
    %v2478 = vpop.f32.mrf.mxu0
    %v2479 = vadd.f32 0.0, %v2478
    %2480 = vmatmul.f32.gmra.mxu0 %v2455
    %v2481 = vpop.f32.mrf.mxu0
    %v2482 = vadd.f32 0.0, %v2481
    %2483 = vdwg.mxu0
    %v2484 = vsel %vm898, %v2357, 0
    %v2486 = vsel %vm898, %v2359, 0
    %v2488 = vsel %vm898, %v2371, 0
    %v2490 = vsel %vm898, %v2373, 0
    %2492 = vmatpush.xpose.msra.mxu0 0.0
    %2493 = vmatpush.xpose.msra.mxu0 0.0
    %2494 = vmatpush.xpose.msra.mxu0 0.0
    %2495 = vmatpush.xpose.msra.mxu0 0.0
    %2496 = vmatpush.xpose.msra.mxu0 0.0
    %2497 = vmatpush.xpose.msra.mxu0 0.0
    %2498 = vmatpush.xpose.msra.mxu0 0.0
    %2499 = vmatpush.xpose.msra.mxu0 0.0
    %2500 = vmatpush.xpose.msra.mxu0 0.0
    %2501 = vmatpush.xpose.msra.mxu0 0.0
    %2502 = vmatpush.xpose.msra.mxu0 0.0
    %2503 = vmatpush.xpose.msra.mxu0 0.0
    %2504 = vmatpush.xpose.msra.mxu0 0.0
    %2505 = vmatpush.xpose.msra.mxu0 0.0
    %2506 = vmatpush.xpose.msra.mxu0 %v2490
    %2507 = vmatpush.xpose.msra.mxu0 %v2488
    %2508 = vmatmul.f32.gmra.mxu0 %v2484
    %v2509 = vpop.f32.mrf.mxu0
    %v2510 = vadd.f32 0.0, %v2509
    %2511 = vmatmul.f32.gmra.mxu0 %v2486
    %v2512 = vpop.f32.mrf.mxu0
    %v2513 = vadd.f32 0.0, %v2512
    %2514 = vdwg.mxu0
    %v2515 = vmul.f32 %v2417, 0.17677669
    %v2516 = vmul.f32 %v2420, 0.17677669
    %v2517 = vmul.f32 %v2448, 0.17677669
    %v2518 = vmul.f32 %v2451, 0.17677669
    %v2519 = vmul.f32 %v2479, 0.17677669
    %v2520 = vmul.f32 %v2482, 0.17677669
    %v2521 = vmul.f32 %v2510, 0.17677669
    %v2522 = vmul.f32 %v2513, 0.17677669
    %v2523 = vadd.f32 %v2515, %v578
    %v2524 = vadd.f32 %v2516, %v579
    %v2525 = vadd.f32 %v2517, %v578
    %v2526 = vadd.f32 %v2518, %v579
    %v2527 = vadd.f32 %v2519, %v578
    %v2528 = vadd.f32 %v2520, %v579
    %v2529 = vadd.f32 %v2521, %v578
    %v2530 = vadd.f32 %v2522, %v579
    %v2531 = vsel %vm1039, %v2523, -inf
    %2532 = vmax.xlane.f32.xlu0 %v2531
    %v2533 = vpop.xlane.xlu0 %2532
    %v2534 = vsel %vm1043, %v2524, -inf
    %2535 = vmax.xlane.f32.xlu0 %v2534
    %v2536 = vpop.xlane.xlu0 %2535
    %v2537 = vsel %vm1039, %v2525, -inf
    %2538 = vmax.xlane.f32.xlu0 %v2537
    %v2539 = vpop.xlane.xlu0 %2538
    %v2540 = vsel %vm1043, %v2526, -inf
    %2541 = vmax.xlane.f32.xlu0 %v2540
    %v2542 = vpop.xlane.xlu0 %2541
    %v2543 = vsel %vm1039, %v2527, -inf
    %2544 = vmax.xlane.f32.xlu0 %v2543
    %v2545 = vpop.xlane.xlu0 %2544
    %v2546 = vsel %vm1043, %v2528, -inf
    %2547 = vmax.xlane.f32.xlu0 %v2546
    %v2548 = vpop.xlane.xlu0 %2547
    %v2549 = vsel %vm1039, %v2529, -inf
    %2550 = vmax.xlane.f32.xlu0 %v2549
    %v2551 = vpop.xlane.xlu0 %2550
    %v2552 = vsel %vm1043, %v2530, -inf
    %2553 = vmax.xlane.f32.xlu0 %v2552
    %v2554 = vpop.xlane.xlu0 %2553
    %v2555 = vsub.f32 %v2523, %v2533
    %v2556 = vsub.f32 %v2524, %v2536
    %v2557 = vsub.f32 %v2525, %v2539
    %v2558 = vsub.f32 %v2526, %v2542
    %v2559 = vsub.f32 %v2527, %v2545
    %v2560 = vsub.f32 %v2528, %v2548
    %v2561 = vsub.f32 %v2529, %v2551
    %v2562 = vsub.f32 %v2530, %v2554
    %v2563 = vmul.f32 %v2555, 1.442695
    %v2564 = vpow.pop %v2563
    %v2565 = vmul.f32 %v2556, 1.442695
    %v2566 = vpow.pop %v2565
    %v2567 = vmul.f32 %v2557, 1.442695
    %v2568 = vpow.pop %v2567
    %v2569 = vmul.f32 %v2558, 1.442695
    %v2570 = vpow.pop %v2569
    %v2571 = vmul.f32 %v2559, 1.442695
    %v2572 = vpow.pop %v2571
    %v2573 = vmul.f32 %v2560, 1.442695
    %v2574 = vpow.pop %v2573
    %v2575 = vmul.f32 %v2561, 1.442695
    %v2576 = vpow.pop %v2575
    %v2577 = vmul.f32 %v2562, 1.442695
    %v2578 = vpow.pop %v2577
    %v2579 = vsel %vm1039, %v2564, 0.0
    %2580 = vadd.xlane.f32.xlu0 %v2579
    %v2581 = vpop.xlane.xlu0 %2580
    %v2582 = vsel %vm1043, %v2566, 0.0
    %2583 = vadd.xlane.f32.xlu0 %v2582
    %v2584 = vpop.xlane.xlu0 %2583
    %v2585 = vsel %vm1039, %v2568, 0.0
    %2586 = vadd.xlane.f32.xlu0 %v2585
    %v2587 = vpop.xlane.xlu0 %2586
    %v2588 = vsel %vm1043, %v2570, 0.0
    %2589 = vadd.xlane.f32.xlu0 %v2588
    %v2590 = vpop.xlane.xlu0 %2589
    %v2591 = vsel %vm1039, %v2572, 0.0
    %2592 = vadd.xlane.f32.xlu0 %v2591
    %v2593 = vpop.xlane.xlu0 %2592
    %v2594 = vsel %vm1043, %v2574, 0.0
    %2595 = vadd.xlane.f32.xlu0 %v2594
    %v2596 = vpop.xlane.xlu0 %2595
    %v2597 = vsel %vm1039, %v2576, 0.0
    %2598 = vadd.xlane.f32.xlu0 %v2597
    %v2599 = vpop.xlane.xlu0 %2598
    %v2600 = vsel %vm1043, %v2578, 0.0
    %2601 = vadd.xlane.f32.xlu0 %v2600
    %v2602 = vpop.xlane.xlu0 %2601
    %v2603 = vrcp.pop %v2581
    %v2604 = vrcp.pop %v2584
    %v2605 = vrcp.pop %v2587
    %v2606 = vrcp.pop %v2590
    %v2607 = vrcp.pop %v2593
    %v2608 = vrcp.pop %v2596
    %v2609 = vrcp.pop %v2599
    %v2610 = vrcp.pop %v2602
    %v2611 = vmul.f32 %v2564, %v2603
    %v2612 = vmul.f32 %v2566, %v2604
    %v2613 = vmul.f32 %v2568, %v2605
    %v2614 = vmul.f32 %v2570, %v2606
    %v2615 = vmul.f32 %v2572, %v2607
    %v2616 = vmul.f32 %v2574, %v2608
    %v2617 = vmul.f32 %v2576, %v2609
    %v2618 = vmul.f32 %v2578, %v2610
    %v2620 = vsel %vm1039, %v2611, 0
    %v2623 = vsel %vm1039, %v2612, 0
    %v2625 = vsel %vm584, %v2344, 0
    %2627 = vmatpush.msra.mxu0 0.0
    %2628 = vmatpush.msra.mxu0 0.0
    %2629 = vmatpush.msra.mxu0 0.0
    %2630 = vmatpush.msra.mxu0 0.0
    %2631 = vmatpush.msra.mxu0 0.0
    %2632 = vmatpush.msra.mxu0 0.0
    %2633 = vmatpush.msra.mxu0 0.0
    %2634 = vmatpush.msra.mxu0 0.0
    %2635 = vmatpush.msra.mxu0 0.0
    %2636 = vmatpush.msra.mxu0 0.0
    %2637 = vmatpush.msra.mxu0 0.0
    %2638 = vmatpush.msra.mxu0 0.0
    %2639 = vmatpush.msra.mxu0 0.0
    %2640 = vmatpush.msra.mxu0 0.0
    %2641 = vmatpush.msra.mxu0 %v2625
    %2642 = vmatpush.msra.mxu0 %v2342
    %2643 = vmatmul.f32.gmra.mxu0 %v2620
    %v2644 = vpop.f32.mrf.mxu0
    %v2645 = vadd.f32 0.0, %v2644
    %2646 = vmatmul.f32.gmra.mxu0 %v2623
    %v2647 = vpop.f32.mrf.mxu0
    %v2648 = vadd.f32 0.0, %v2647
    %2649 = vdwg.mxu0
    %v2651 = vsel %vm1039, %v2613, 0
    %v2654 = vsel %vm1039, %v2614, 0
    %v2656 = vsel %vm584, %v2379, 0
    %2658 = vmatpush.msra.mxu0 0.0
    %2659 = vmatpush.msra.mxu0 0.0
    %2660 = vmatpush.msra.mxu0 0.0
    %2661 = vmatpush.msra.mxu0 0.0
    %2662 = vmatpush.msra.mxu0 0.0
    %2663 = vmatpush.msra.mxu0 0.0
    %2664 = vmatpush.msra.mxu0 0.0
    %2665 = vmatpush.msra.mxu0 0.0
    %2666 = vmatpush.msra.mxu0 0.0
    %2667 = vmatpush.msra.mxu0 0.0
    %2668 = vmatpush.msra.mxu0 0.0
    %2669 = vmatpush.msra.mxu0 0.0
    %2670 = vmatpush.msra.mxu0 0.0
    %2671 = vmatpush.msra.mxu0 0.0
    %2672 = vmatpush.msra.mxu0 %v2656
    %2673 = vmatpush.msra.mxu0 %v2377
    %2674 = vmatmul.f32.gmra.mxu0 %v2651
    %v2675 = vpop.f32.mrf.mxu0
    %v2676 = vadd.f32 0.0, %v2675
    %2677 = vmatmul.f32.gmra.mxu0 %v2654
    %v2678 = vpop.f32.mrf.mxu0
    %v2679 = vadd.f32 0.0, %v2678
    %2680 = vdwg.mxu0
    %v2682 = vsel %vm1039, %v2615, 0
    %v2685 = vsel %vm1039, %v2616, 0
    %v2687 = vsel %vm584, %v2384, 0
    %2689 = vmatpush.msra.mxu0 0.0
    %2690 = vmatpush.msra.mxu0 0.0
    %2691 = vmatpush.msra.mxu0 0.0
    %2692 = vmatpush.msra.mxu0 0.0
    %2693 = vmatpush.msra.mxu0 0.0
    %2694 = vmatpush.msra.mxu0 0.0
    %2695 = vmatpush.msra.mxu0 0.0
    %2696 = vmatpush.msra.mxu0 0.0
    %2697 = vmatpush.msra.mxu0 0.0
    %2698 = vmatpush.msra.mxu0 0.0
    %2699 = vmatpush.msra.mxu0 0.0
    %2700 = vmatpush.msra.mxu0 0.0
    %2701 = vmatpush.msra.mxu0 0.0
    %2702 = vmatpush.msra.mxu0 0.0
    %2703 = vmatpush.msra.mxu0 %v2687
    %2704 = vmatpush.msra.mxu0 %v2382
    %2705 = vmatmul.f32.gmra.mxu0 %v2682
    %v2706 = vpop.f32.mrf.mxu0
    %v2707 = vadd.f32 0.0, %v2706
    %2708 = vmatmul.f32.gmra.mxu0 %v2685
    %v2709 = vpop.f32.mrf.mxu0
    %v2710 = vadd.f32 0.0, %v2709
    %2711 = vdwg.mxu0
    %v2713 = vsel %vm1039, %v2617, 0
    %v2716 = vsel %vm1039, %v2618, 0
    %v2718 = vsel %vm584, %v2389, 0
    %2720 = vmatpush.msra.mxu0 0.0
    %2721 = vmatpush.msra.mxu0 0.0
    %2722 = vmatpush.msra.mxu0 0.0
    %2723 = vmatpush.msra.mxu0 0.0
    %2724 = vmatpush.msra.mxu0 0.0
    %2725 = vmatpush.msra.mxu0 0.0
    %2726 = vmatpush.msra.mxu0 0.0
    %2727 = vmatpush.msra.mxu0 0.0
    %2728 = vmatpush.msra.mxu0 0.0
    %2729 = vmatpush.msra.mxu0 0.0
    %2730 = vmatpush.msra.mxu0 0.0
    %2731 = vmatpush.msra.mxu0 0.0
    %2732 = vmatpush.msra.mxu0 0.0
    %2733 = vmatpush.msra.mxu0 0.0
    %2734 = vmatpush.msra.mxu0 %v2718
    %2735 = vmatpush.msra.mxu0 %v2387
    %2736 = vmatmul.f32.gmra.mxu0 %v2713
    %v2737 = vpop.f32.mrf.mxu0
    %v2738 = vadd.f32 0.0, %v2737
    %2739 = vmatmul.f32.gmra.mxu0 %v2716
    %v2740 = vpop.f32.mrf.mxu0
    %v2741 = vadd.f32 0.0, %v2740
    %2742 = vdwg.mxu0
    %2745 = vrot.lane.b32.xlu0 %v2676, 32
    %v2746 = vpop.permute.xlu0 %2745
    %2747 = vrot.lane.b32.xlu0 %v2679, 32
    %v2748 = vpop.permute.xlu0 %2747
    %2753 = vrot.lane.b32.xlu0 %v2707, 64
    %v2754 = vpop.permute.xlu0 %2753
    %2755 = vrot.lane.b32.xlu0 %v2710, 64
    %v2756 = vpop.permute.xlu0 %2755
    %2761 = vrot.lane.b32.xlu0 %v2738, 96
    %v2762 = vpop.permute.xlu0 %2761
    %2763 = vrot.lane.b32.xlu0 %v2741, 96
    %v2764 = vpop.permute.xlu0 %2763
    %v2767 = vsel %vm898, %v2645, %v2746
    %v2768 = vsel %vm898, %v2648, %v2748
    %v2769 = vsel %vm1279, %v2767, %v2754
    %v2770 = vsel %vm1279, %v2768, %v2756
    %v2771 = vsel %vm1282, %v2769, %v2762
    %v2772 = vsel %vm1282, %v2770, %v2764
    %v2773 = vpack.c.bf16 %v2772, %v2771
    %s2774 = scalar_lea.vmem %s8, 64
    %v2775 = vld [vmem:[%s2774] sm:$0xf]
    %v2776 = vld [vmem:[%s2774 + $0x4] sm:$0xf]
    %v2777 = vld [vmem:[%s2774 + $0x8] sm:$0xf]
    %v2778 = vld [vmem:[%s2774 + $0xc] sm:$0xf]
    %v2779 = vld [vmem:[%s2774 + $0x10] sm:$0xf]
    %v2780 = vld [vmem:[%s2774 + $0x14] sm:$0xf]
    %v2781 = vld [vmem:[%s2774 + $0x18] sm:$0xf]
    %v2782 = vld [vmem:[%s2774 + $0x1c] sm:$0xf]
    %v2783 = vld [vmem:[%s2774 + $0x20] sm:$0xf]
    %v2784 = vld [vmem:[%s2774 + $0x24] sm:$0xf]
    %v2785 = vld [vmem:[%s2774 + $0x28] sm:$0xf]
    %v2786 = vld [vmem:[%s2774 + $0x2c] sm:$0xf]
    %v2787 = vld [vmem:[%s2774 + $0x30] sm:$0xf]
    %v2788 = vld [vmem:[%s2774 + $0x34] sm:$0xf]
    %v2789 = vld [vmem:[%s2774 + $0x38] sm:$0xf]
    %v2790 = vld [vmem:[%s2774 + $0x3c] sm:$0xf]
    %s2791 = scalar_lea.vmem %s9, 1
    %v2792 = vld [vmem:[%s2791] sm:$0x1]
    %v2794 = vperm.slane %v2792, 0
    %v2812 = vunpack.c.l.b16 %v2775
    %v2813 = vunpack.c.l.b16 %v2776
    %v2814 = vunpack.c.l.b16 %v2777
    %v2815 = vunpack.c.l.b16 %v2778
    %v2816 = vunpack.c.l.b16 %v2779
    %v2817 = vunpack.c.l.b16 %v2780
    %v2818 = vunpack.c.l.b16 %v2781
    %v2819 = vunpack.c.l.b16 %v2782
    %v2820 = vunpack.c.l.b16 %v2783
    %v2821 = vunpack.c.l.b16 %v2784
    %v2822 = vunpack.c.l.b16 %v2785
    %v2823 = vunpack.c.l.b16 %v2786
    %v2824 = vunpack.c.l.b16 %v2787
    %v2825 = vunpack.c.l.b16 %v2788
    %v2826 = vunpack.c.l.b16 %v2789
    %v2827 = vunpack.c.l.b16 %v2790
    %v2828 = vpack.c.b16 %v2813, %v2812
    %v2829 = vpack.c.b16 %v2815, %v2814
    %v2830 = vpack.c.b16 %v2817, %v2816
    %v2831 = vpack.c.b16 %v2819, %v2818
    %v2832 = vpack.c.b16 %v2821, %v2820
    %v2833 = vpack.c.b16 %v2823, %v2822
    %v2834 = vpack.c.b16 %v2825, %v2824
    %v2835 = vpack.c.b16 %v2827, %v2826
    %2844 = vmatpush.bf16.msra.mxu0 %v2835
    %2845 = vmatpush.bf16.msra.mxu0 %v2834
    %2846 = vmatpush.bf16.msra.mxu0 %v2833
    %2847 = vmatpush.bf16.msra.mxu0 %v2832
    %2848 = vmatpush.bf16.msra.mxu0 %v2831
    %2849 = vmatpush.bf16.msra.mxu0 %v2830
    %2850 = vmatpush.bf16.msra.mxu0 %v2829
    %2851 = vmatpush.bf16.msra.mxu0 %v2828
    %2852 = vmatmul.bf16.gmra.mxu0 %v2773
    %v2853 = vpop.f32.mrf.mxu0
    %v2854 = vadd.f32 %v2794, %v2853
    %v2855 = vpop.f32.mrf.mxu0
    %v2856 = vadd.f32 %v2794, %v2855
    %2857 = vdwg.mxu0
    %v2858 = vadd.f32 %v2075, %v2854
    %v2859 = vadd.f32 %v2076, %v2856
    %s2860 = scalar_lea.vmem %s10, 1
    %v2861 = vld [vmem:[%s2860] sm:$0x1]
    %s2862 = scalar_lea.vmem %s11, 1
    %v2863 = vld [vmem:[%s2862] sm:$0x1]
    %2864 = vadd.xlane.f32.xlu0 %v2858
    %v2865 = vpop.xlane.xlu0 %2864
    %v2866 = vsel %vm584, %v2859, 0.0
    %2867 = vadd.xlane.f32.xlu0 %v2866
    %v2868 = vpop.xlane.xlu0 %2867
    %v2869 = vmul.f32 %v2865, %v594
    %v2870 = vmul.f32 %v2868, %v594
    %v2871 = vsub.f32 %v2858, %v2869
    %v2872 = vsub.f32 %v2859, %v2870
    %v2873 = vmul.f32 %v2871, %v2871
    %v2874 = vmul.f32 %v2872, %v2872
    %2875 = vadd.xlane.f32.xlu0 %v2873
    %v2876 = vpop.xlane.xlu0 %2875
    %v2877 = vsel %vm584, %v2874, 0.0
    %2878 = vadd.xlane.f32.xlu0 %v2877
    %v2879 = vpop.xlane.xlu0 %2878
    %v2880 = vmul.f32 %v2876, %v594
    %v2881 = vmul.f32 %v2879, %v594
    %v2882 = vadd.f32 %v2880, 1e-06
    %v2883 = vadd.f32 %v2881, 1e-06
    %v2884 = vrsqrt.pop %v2882
    %v2885 = vmul.f32 %v2884, %v2882
    %v2886 = vmul.f32 %v2885, %v2884
    %v2887 = vmul.f32 0.5, %v2886
    %v2888 = vsub.f32 1.5, %v2887
    %v2889 = vmul.f32 %v2884, %v2888
    %vm2890 = vweird.f32 %v2882
    %vm2891 = vweird.f32 %v2884
    %vm2892 = vmor %vm2890, %vm2891
    %v2893 = vsel %vm2892, %v2884, %v2889
    %v2894 = vrsqrt.pop %v2883
    %v2895 = vmul.f32 %v2894, %v2883
    %v2896 = vmul.f32 %v2895, %v2894
    %v2897 = vmul.f32 0.5, %v2896
    %v2898 = vsub.f32 1.5, %v2897
    %v2899 = vmul.f32 %v2894, %v2898
    %vm2900 = vweird.f32 %v2883
    %vm2901 = vweird.f32 %v2894
    %vm2902 = vmor %vm2900, %vm2901
    %v2903 = vsel %vm2902, %v2894, %v2899
    %v2904 = vmul.f32 %v2871, %v2893
    %v2905 = vmul.f32 %v2872, %v2903
    %v2907 = vperm.slane %v2861, 0
    %v2909 = vmul.f32 %v2904, %v2907
    %v2910 = vmul.f32 %v2905, %v2907
    %v2912 = vperm.slane %v2863, 0
    %v2914 = vadd.f32 %v2909, %v2912
    %v2915 = vadd.f32 %v2910, %v2912
    %v2916 = vpack.c.bf16 %v2915, %v2914
    %s2917 = scalar_lea.vmem %s12, 256
    %v2918 = vld [vmem:[%s2917] sm:$0xff]
    %v2919 = vld [vmem:[%s2917 + $0x8] sm:$0xff]
    %v2920 = vld [vmem:[%s2917 + $0x10] sm:$0xff]
    %v2921 = vld [vmem:[%s2917 + $0x18] sm:$0xff]
    %v2922 = vld [vmem:[%s2917 + $0x20] sm:$0xff]
    %v2923 = vld [vmem:[%s2917 + $0x28] sm:$0xff]
    %v2924 = vld [vmem:[%s2917 + $0x30] sm:$0xff]
    %v2925 = vld [vmem:[%s2917 + $0x38] sm:$0xff]
    %v2926 = vld [vmem:[%s2917 + $0x40] sm:$0xff]
    %v2927 = vld [vmem:[%s2917 + $0x48] sm:$0xff]
    %v2928 = vld [vmem:[%s2917 + $0x50] sm:$0xff]
    %v2929 = vld [vmem:[%s2917 + $0x58] sm:$0xff]
    %v2930 = vld [vmem:[%s2917 + $0x60] sm:$0xff]
    %v2931 = vld [vmem:[%s2917 + $0x68] sm:$0xff]
    %v2932 = vld [vmem:[%s2917 + $0x70] sm:$0xff]
    %v2933 = vld [vmem:[%s2917 + $0x78] sm:$0xff]
    %v2934 = vld [vmem:[%s2917 + $0x80] sm:$0xff]
    %v2935 = vld [vmem:[%s2917 + $0x88] sm:$0xff]
    %v2936 = vld [vmem:[%s2917 + $0x90] sm:$0xff]
    %v2937 = vld [vmem:[%s2917 + $0x98] sm:$0xff]
    %v2938 = vld [vmem:[%s2917 + $0xa0] sm:$0xff]
    %v2939 = vld [vmem:[%s2917 + $0xa8] sm:$0xff]
    %v2940 = vld [vmem:[%s2917 + $0xb0] sm:$0xff]
    %v2941 = vld [vmem:[%s2917 + $0xb8] sm:$0xff]
    %v2942 = vld [vmem:[%s2917 + $0xc0] sm:$0xff]
    %v2943 = vld [vmem:[%s2917 + $0xc8] sm:$0xff]
    %v2944 = vld [vmem:[%s2917 + $0xd0] sm:$0xff]
    %v2945 = vld [vmem:[%s2917 + $0xd8] sm:$0xff]
    %v2946 = vld [vmem:[%s2917 + $0xe0] sm:$0xff]
    %v2947 = vld [vmem:[%s2917 + $0xe8] sm:$0xff]
    %v2948 = vld [vmem:[%s2917 + $0xf0] sm:$0xff]
    %v2949 = vld [vmem:[%s2917 + $0xf8] sm:$0xff]
    %s2950 = scalar_lea.vmem %s13, 4
    %v2951 = vld [vmem:[%s2950] sm:$0xf]
    %v2953 = vperm.slane %v2951, 0
    %v2954 = vperm.slane %v2951, 1
    %v2955 = vperm.slane %v2951, 2
    %v2956 = vperm.slane %v2951, 3
    %v2993 = vunpack.c.l.b16 %v2918
    %v2994 = vunpack.c.h.b16 %v2918
    %v2995 = vunpack.c.l.b16 %v2919
    %v2996 = vunpack.c.h.b16 %v2919
    %v2997 = vunpack.c.l.b16 %v2920
    %v2998 = vunpack.c.h.b16 %v2920
    %v2999 = vunpack.c.l.b16 %v2921
    %v3000 = vunpack.c.h.b16 %v2921
    %v3001 = vunpack.c.l.b16 %v2922
    %v3002 = vunpack.c.h.b16 %v2922
    %v3003 = vunpack.c.l.b16 %v2923
    %v3004 = vunpack.c.h.b16 %v2923
    %v3005 = vunpack.c.l.b16 %v2924
    %v3006 = vunpack.c.h.b16 %v2924
    %v3007 = vunpack.c.l.b16 %v2925
    %v3008 = vunpack.c.h.b16 %v2925
    %v3009 = vunpack.c.l.b16 %v2926
    %v3010 = vunpack.c.h.b16 %v2926
    %v3011 = vunpack.c.l.b16 %v2927
    %v3012 = vunpack.c.h.b16 %v2927
    %v3013 = vunpack.c.l.b16 %v2928
    %v3014 = vunpack.c.h.b16 %v2928
    %v3015 = vunpack.c.l.b16 %v2929
    %v3016 = vunpack.c.h.b16 %v2929
    %v3017 = vunpack.c.l.b16 %v2930
    %v3018 = vunpack.c.h.b16 %v2930
    %v3019 = vunpack.c.l.b16 %v2931
    %v3020 = vunpack.c.h.b16 %v2931
    %v3021 = vunpack.c.l.b16 %v2932
    %v3022 = vunpack.c.h.b16 %v2932
    %v3023 = vunpack.c.l.b16 %v2933
    %v3024 = vunpack.c.h.b16 %v2933
    %v3025 = vunpack.c.l.b16 %v2934
    %v3026 = vunpack.c.h.b16 %v2934
    %v3027 = vunpack.c.l.b16 %v2935
    %v3028 = vunpack.c.h.b16 %v2935
    %v3029 = vunpack.c.l.b16 %v2936
    %v3030 = vunpack.c.h.b16 %v2936
    %v3031 = vunpack.c.l.b16 %v2937
    %v3032 = vunpack.c.h.b16 %v2937
    %v3033 = vunpack.c.l.b16 %v2938
    %v3034 = vunpack.c.h.b16 %v2938
    %v3035 = vunpack.c.l.b16 %v2939
    %v3036 = vunpack.c.h.b16 %v2939
    %v3037 = vunpack.c.l.b16 %v2940
    %v3038 = vunpack.c.h.b16 %v2940
    %v3039 = vunpack.c.l.b16 %v2941
    %v3040 = vunpack.c.h.b16 %v2941
    %v3041 = vunpack.c.l.b16 %v2942
    %v3042 = vunpack.c.h.b16 %v2942
    %v3043 = vunpack.c.l.b16 %v2943
    %v3044 = vunpack.c.h.b16 %v2943
    %v3045 = vunpack.c.l.b16 %v2944
    %v3046 = vunpack.c.h.b16 %v2944
    %v3047 = vunpack.c.l.b16 %v2945
    %v3048 = vunpack.c.h.b16 %v2945
    %v3049 = vunpack.c.l.b16 %v2946
    %v3050 = vunpack.c.h.b16 %v2946
    %v3051 = vunpack.c.l.b16 %v2947
    %v3052 = vunpack.c.h.b16 %v2947
    %v3053 = vunpack.c.l.b16 %v2948
    %v3054 = vunpack.c.h.b16 %v2948
    %v3055 = vunpack.c.l.b16 %v2949
    %v3056 = vunpack.c.h.b16 %v2949
    %v3057 = vpack.c.b16 %v2997, %v2993
    %v3058 = vpack.c.b16 %v2998, %v2994
    %v3059 = vpack.c.b16 %v2999, %v2995
    %v3060 = vpack.c.b16 %v3000, %v2996
    %v3061 = vpack.c.b16 %v3005, %v3001
    %v3062 = vpack.c.b16 %v3006, %v3002
    %v3063 = vpack.c.b16 %v3007, %v3003
    %v3064 = vpack.c.b16 %v3008, %v3004
    %v3065 = vpack.c.b16 %v3013, %v3009
    %v3066 = vpack.c.b16 %v3014, %v3010
    %v3067 = vpack.c.b16 %v3015, %v3011
    %v3068 = vpack.c.b16 %v3016, %v3012
    %v3069 = vpack.c.b16 %v3021, %v3017
    %v3070 = vpack.c.b16 %v3022, %v3018
    %v3071 = vpack.c.b16 %v3023, %v3019
    %v3072 = vpack.c.b16 %v3024, %v3020
    %v3073 = vpack.c.b16 %v3029, %v3025
    %v3074 = vpack.c.b16 %v3030, %v3026
    %v3075 = vpack.c.b16 %v3031, %v3027
    %v3076 = vpack.c.b16 %v3032, %v3028
    %v3077 = vpack.c.b16 %v3037, %v3033
    %v3078 = vpack.c.b16 %v3038, %v3034
    %v3079 = vpack.c.b16 %v3039, %v3035
    %v3080 = vpack.c.b16 %v3040, %v3036
    %v3081 = vpack.c.b16 %v3045, %v3041
    %v3082 = vpack.c.b16 %v3046, %v3042
    %v3083 = vpack.c.b16 %v3047, %v3043
    %v3084 = vpack.c.b16 %v3048, %v3044
    %v3085 = vpack.c.b16 %v3053, %v3049
    %v3086 = vpack.c.b16 %v3054, %v3050
    %v3087 = vpack.c.b16 %v3055, %v3051
    %v3088 = vpack.c.b16 %v3056, %v3052
    %3121 = vmatpush.bf16.msra.mxu0 %v3085
    %3122 = vmatpush.bf16.msra.mxu0 %v3081
    %3123 = vmatpush.bf16.msra.mxu0 %v3077
    %3124 = vmatpush.bf16.msra.mxu0 %v3073
    %3125 = vmatpush.bf16.msra.mxu0 %v3069
    %3126 = vmatpush.bf16.msra.mxu0 %v3065
    %3127 = vmatpush.bf16.msra.mxu0 %v3061
    %3128 = vmatpush.bf16.msra.mxu0 %v3057
    %3129 = vmatmul.bf16.gmra.mxu0 %v2916
    %v3130 = vpop.f32.mrf.mxu0
    %v3131 = vadd.f32 %v2953, %v3130
    %v3132 = vpop.f32.mrf.mxu0
    %v3133 = vadd.f32 %v2953, %v3132
    %3134 = vdwg.mxu0
    %3135 = vmatpush.bf16.msra.mxu0 %v3086
    %3136 = vmatpush.bf16.msra.mxu0 %v3082
    %3137 = vmatpush.bf16.msra.mxu0 %v3078
    %3138 = vmatpush.bf16.msra.mxu0 %v3074
    %3139 = vmatpush.bf16.msra.mxu0 %v3070
    %3140 = vmatpush.bf16.msra.mxu0 %v3066
    %3141 = vmatpush.bf16.msra.mxu0 %v3062
    %3142 = vmatpush.bf16.msra.mxu0 %v3058
    %3143 = vmatmul.bf16.gmra.mxu0 %v2916
    %v3144 = vpop.f32.mrf.mxu0
    %v3145 = vadd.f32 %v2954, %v3144
    %v3146 = vpop.f32.mrf.mxu0
    %v3147 = vadd.f32 %v2954, %v3146
    %3148 = vdwg.mxu0
    %3149 = vmatpush.bf16.msra.mxu0 %v3087
    %3150 = vmatpush.bf16.msra.mxu0 %v3083
    %3151 = vmatpush.bf16.msra.mxu0 %v3079
    %3152 = vmatpush.bf16.msra.mxu0 %v3075
    %3153 = vmatpush.bf16.msra.mxu0 %v3071
    %3154 = vmatpush.bf16.msra.mxu0 %v3067
    %3155 = vmatpush.bf16.msra.mxu0 %v3063
    %3156 = vmatpush.bf16.msra.mxu0 %v3059
    %3157 = vmatmul.bf16.gmra.mxu0 %v2916
    %v3158 = vpop.f32.mrf.mxu0
    %v3159 = vadd.f32 %v2955, %v3158
    %v3160 = vpop.f32.mrf.mxu0
    %v3161 = vadd.f32 %v2955, %v3160
    %3162 = vdwg.mxu0
    %3163 = vmatpush.bf16.msra.mxu0 %v3088
    %3164 = vmatpush.bf16.msra.mxu0 %v3084
    %3165 = vmatpush.bf16.msra.mxu0 %v3080
    %3166 = vmatpush.bf16.msra.mxu0 %v3076
    %3167 = vmatpush.bf16.msra.mxu0 %v3072
    %3168 = vmatpush.bf16.msra.mxu0 %v3068
    %3169 = vmatpush.bf16.msra.mxu0 %v3064
    %3170 = vmatpush.bf16.msra.mxu0 %v3060
    %3171 = vmatmul.bf16.gmra.mxu0 %v2916
    %v3172 = vpop.f32.mrf.mxu0
    %v3173 = vadd.f32 %v2956, %v3172
    %v3174 = vpop.f32.mrf.mxu0
    %v3175 = vadd.f32 %v2956, %v3174
    %3176 = vdwg.mxu0
    %v3177 = vmul.f32 %v3131, 0.5
    %v3178 = vmul.f32 %v3145, 0.5
    %v3179 = vmul.f32 %v3159, 0.5
    %v3180 = vmul.f32 %v3173, 0.5
    %v3181 = vmul.f32 %v3133, 0.5
    %v3182 = vmul.f32 %v3147, 0.5
    %v3183 = vmul.f32 %v3161, 0.5
    %v3184 = vmul.f32 %v3175, 0.5
    %v3185 = vmul.f32 %v3131, 0.044715
    %v3186 = vmul.f32 %v3145, 0.044715
    %v3187 = vmul.f32 %v3159, 0.044715
    %v3188 = vmul.f32 %v3173, 0.044715
    %v3189 = vmul.f32 %v3133, 0.044715
    %v3190 = vmul.f32 %v3147, 0.044715
    %v3191 = vmul.f32 %v3161, 0.044715
    %v3192 = vmul.f32 %v3175, 0.044715
    %v3193 = vmul.f32 %v3185, %v3131
    %v3194 = vmul.f32 %v3186, %v3145
    %v3195 = vmul.f32 %v3187, %v3159
    %v3196 = vmul.f32 %v3188, %v3173
    %v3197 = vmul.f32 %v3189, %v3133
    %v3198 = vmul.f32 %v3190, %v3147
    %v3199 = vmul.f32 %v3191, %v3161
    %v3200 = vmul.f32 %v3192, %v3175
    %v3201 = vmul.f32 %v3193, %v3131
    %v3202 = vmul.f32 %v3194, %v3145
    %v3203 = vmul.f32 %v3195, %v3159
    %v3204 = vmul.f32 %v3196, %v3173
    %v3205 = vmul.f32 %v3197, %v3133
    %v3206 = vmul.f32 %v3198, %v3147
    %v3207 = vmul.f32 %v3199, %v3161
    %v3208 = vmul.f32 %v3200, %v3175
    %v3209 = vadd.f32 %v3131, %v3201
    %v3210 = vadd.f32 %v3145, %v3202
    %v3211 = vadd.f32 %v3159, %v3203
    %v3212 = vadd.f32 %v3173, %v3204
    %v3213 = vadd.f32 %v3133, %v3205
    %v3214 = vadd.f32 %v3147, %v3206
    %v3215 = vadd.f32 %v3161, %v3207
    %v3216 = vadd.f32 %v3175, %v3208
    %v3217 = vmul.f32 %v3209, 0.7978846
    %v3218 = vmul.f32 %v3210, 0.7978846
    %v3219 = vmul.f32 %v3211, 0.7978846
    %v3220 = vmul.f32 %v3212, 0.7978846
    %v3221 = vmul.f32 %v3213, 0.7978846
    %v3222 = vmul.f32 %v3214, 0.7978846
    %v3223 = vmul.f32 %v3215, 0.7978846
    %v3224 = vmul.f32 %v3216, 0.7978846
    %v3225 = vtanh.pop %v3217
    %v3226 = vtanh.pop %v3218
    %v3227 = vtanh.pop %v3219
    %v3228 = vtanh.pop %v3220
    %v3229 = vtanh.pop %v3221
    %v3230 = vtanh.pop %v3222
    %v3231 = vtanh.pop %v3223
    %v3232 = vtanh.pop %v3224
    %v3233 = vadd.f32 %v3225, 1.0
    %v3234 = vadd.f32 %v3226, 1.0
    %v3235 = vadd.f32 %v3227, 1.0
    %v3236 = vadd.f32 %v3228, 1.0
    %v3237 = vadd.f32 %v3229, 1.0
    %v3238 = vadd.f32 %v3230, 1.0
    %v3239 = vadd.f32 %v3231, 1.0
    %v3240 = vadd.f32 %v3232, 1.0
    %v3241 = vmul.f32 %v3177, %v3233
    %v3242 = vmul.f32 %v3178, %v3234
    %v3243 = vmul.f32 %v3179, %v3235
    %v3244 = vmul.f32 %v3180, %v3236
    %v3245 = vmul.f32 %v3181, %v3237
    %v3246 = vmul.f32 %v3182, %v3238
    %v3247 = vmul.f32 %v3183, %v3239
    %v3248 = vmul.f32 %v3184, %v3240
    %v3249 = vpack.c.bf16 %v3245, %v3241
    %v3250 = vpack.c.bf16 %v3246, %v3242
    %v3251 = vpack.c.bf16 %v3247, %v3243
    %v3252 = vpack.c.bf16 %v3248, %v3244
    %s3253 = scalar_lea.vmem %s14, 256
    %v3254 = vld [vmem:[%s3253] sm:$0xf]
    %v3255 = vld [vmem:[%s3253 + $0x4] sm:$0xf]
    %v3256 = vld [vmem:[%s3253 + $0x8] sm:$0xf]
    %v3257 = vld [vmem:[%s3253 + $0xc] sm:$0xf]
    %v3258 = vld [vmem:[%s3253 + $0x10] sm:$0xf]
    %v3259 = vld [vmem:[%s3253 + $0x14] sm:$0xf]
    %v3260 = vld [vmem:[%s3253 + $0x18] sm:$0xf]
    %v3261 = vld [vmem:[%s3253 + $0x1c] sm:$0xf]
    %v3262 = vld [vmem:[%s3253 + $0x20] sm:$0xf]
    %v3263 = vld [vmem:[%s3253 + $0x24] sm:$0xf]
    %v3264 = vld [vmem:[%s3253 + $0x28] sm:$0xf]
    %v3265 = vld [vmem:[%s3253 + $0x2c] sm:$0xf]
    %v3266 = vld [vmem:[%s3253 + $0x30] sm:$0xf]
    %v3267 = vld [vmem:[%s3253 + $0x34] sm:$0xf]
    %v3268 = vld [vmem:[%s3253 + $0x38] sm:$0xf]
    %v3269 = vld [vmem:[%s3253 + $0x3c] sm:$0xf]
    %v3270 = vld [vmem:[%s3253 + $0x40] sm:$0xf]
    %v3271 = vld [vmem:[%s3253 + $0x44] sm:$0xf]
    %v3272 = vld [vmem:[%s3253 + $0x48] sm:$0xf]
    %v3273 = vld [vmem:[%s3253 + $0x4c] sm:$0xf]
    %v3274 = vld [vmem:[%s3253 + $0x50] sm:$0xf]
    %v3275 = vld [vmem:[%s3253 + $0x54] sm:$0xf]
    %v3276 = vld [vmem:[%s3253 + $0x58] sm:$0xf]
    %v3277 = vld [vmem:[%s3253 + $0x5c] sm:$0xf]
    %v3278 = vld [vmem:[%s3253 + $0x60] sm:$0xf]
    %v3279 = vld [vmem:[%s3253 + $0x64] sm:$0xf]
    %v3280 = vld [vmem:[%s3253 + $0x68] sm:$0xf]
    %v3281 = vld [vmem:[%s3253 + $0x6c] sm:$0xf]
    %v3282 = vld [vmem:[%s3253 + $0x70] sm:$0xf]
    %v3283 = vld [vmem:[%s3253 + $0x74] sm:$0xf]
    %v3284 = vld [vmem:[%s3253 + $0x78] sm:$0xf]
    %v3285 = vld [vmem:[%s3253 + $0x7c] sm:$0xf]
    %v3286 = vld [vmem:[%s3253 + $0x80] sm:$0xf]
    %v3287 = vld [vmem:[%s3253 + $0x84] sm:$0xf]
    %v3288 = vld [vmem:[%s3253 + $0x88] sm:$0xf]
    %v3289 = vld [vmem:[%s3253 + $0x8c] sm:$0xf]
    %v3290 = vld [vmem:[%s3253 + $0x90] sm:$0xf]
    %v3291 = vld [vmem:[%s3253 + $0x94] sm:$0xf]
    %v3292 = vld [vmem:[%s3253 + $0x98] sm:$0xf]
    %v3293 = vld [vmem:[%s3253 + $0x9c] sm:$0xf]
    %v3294 = vld [vmem:[%s3253 + $0xa0] sm:$0xf]
    %v3295 = vld [vmem:[%s3253 + $0xa4] sm:$0xf]
    %v3296 = vld [vmem:[%s3253 + $0xa8] sm:$0xf]
    %v3297 = vld [vmem:[%s3253 + $0xac] sm:$0xf]
    %v3298 = vld [vmem:[%s3253 + $0xb0] sm:$0xf]
    %v3299 = vld [vmem:[%s3253 + $0xb4] sm:$0xf]
    %v3300 = vld [vmem:[%s3253 + $0xb8] sm:$0xf]
    %v3301 = vld [vmem:[%s3253 + $0xbc] sm:$0xf]
    %v3302 = vld [vmem:[%s3253 + $0xc0] sm:$0xf]
    %v3303 = vld [vmem:[%s3253 + $0xc4] sm:$0xf]
    %v3304 = vld [vmem:[%s3253 + $0xc8] sm:$0xf]
    %v3305 = vld [vmem:[%s3253 + $0xcc] sm:$0xf]
    %v3306 = vld [vmem:[%s3253 + $0xd0] sm:$0xf]
    %v3307 = vld [vmem:[%s3253 + $0xd4] sm:$0xf]
    %v3308 = vld [vmem:[%s3253 + $0xd8] sm:$0xf]
    %v3309 = vld [vmem:[%s3253 + $0xdc] sm:$0xf]
    %v3310 = vld [vmem:[%s3253 + $0xe0] sm:$0xf]
    %v3311 = vld [vmem:[%s3253 + $0xe4] sm:$0xf]
    %v3312 = vld [vmem:[%s3253 + $0xe8] sm:$0xf]
    %v3313 = vld [vmem:[%s3253 + $0xec] sm:$0xf]
    %v3314 = vld [vmem:[%s3253 + $0xf0] sm:$0xf]
    %v3315 = vld [vmem:[%s3253 + $0xf4] sm:$0xf]
    %v3316 = vld [vmem:[%s3253 + $0xf8] sm:$0xf]
    %v3317 = vld [vmem:[%s3253 + $0xfc] sm:$0xf]
    %s3318 = scalar_lea.vmem %s15, 1
    %v3319 = vld [vmem:[%s3318] sm:$0x1]
    %v3321 = vperm.slane %v3319, 0
    %v3387 = vunpack.c.l.b16 %v3254
    %v3388 = vunpack.c.l.b16 %v3255
    %v3389 = vunpack.c.l.b16 %v3256
    %v3390 = vunpack.c.l.b16 %v3257
    %v3391 = vunpack.c.l.b16 %v3258
    %v3392 = vunpack.c.l.b16 %v3259
    %v3393 = vunpack.c.l.b16 %v3260
    %v3394 = vunpack.c.l.b16 %v3261
    %v3395 = vunpack.c.l.b16 %v3262
    %v3396 = vunpack.c.l.b16 %v3263
    %v3397 = vunpack.c.l.b16 %v3264
    %v3398 = vunpack.c.l.b16 %v3265
    %v3399 = vunpack.c.l.b16 %v3266
    %v3400 = vunpack.c.l.b16 %v3267
    %v3401 = vunpack.c.l.b16 %v3268
    %v3402 = vunpack.c.l.b16 %v3269
    %v3403 = vunpack.c.l.b16 %v3270
    %v3404 = vunpack.c.l.b16 %v3271
    %v3405 = vunpack.c.l.b16 %v3272
    %v3406 = vunpack.c.l.b16 %v3273
    %v3407 = vunpack.c.l.b16 %v3274
    %v3408 = vunpack.c.l.b16 %v3275
    %v3409 = vunpack.c.l.b16 %v3276
    %v3410 = vunpack.c.l.b16 %v3277
    %v3411 = vunpack.c.l.b16 %v3278
    %v3412 = vunpack.c.l.b16 %v3279
    %v3413 = vunpack.c.l.b16 %v3280
    %v3414 = vunpack.c.l.b16 %v3281
    %v3415 = vunpack.c.l.b16 %v3282
    %v3416 = vunpack.c.l.b16 %v3283
    %v3417 = vunpack.c.l.b16 %v3284
    %v3418 = vunpack.c.l.b16 %v3285
    %v3419 = vunpack.c.l.b16 %v3286
    %v3420 = vunpack.c.l.b16 %v3287
    %v3421 = vunpack.c.l.b16 %v3288
    %v3422 = vunpack.c.l.b16 %v3289
    %v3423 = vunpack.c.l.b16 %v3290
    %v3424 = vunpack.c.l.b16 %v3291
    %v3425 = vunpack.c.l.b16 %v3292
    %v3426 = vunpack.c.l.b16 %v3293
    %v3427 = vunpack.c.l.b16 %v3294
    %v3428 = vunpack.c.l.b16 %v3295
    %v3429 = vunpack.c.l.b16 %v3296
    %v3430 = vunpack.c.l.b16 %v3297
    %v3431 = vunpack.c.l.b16 %v3298
    %v3432 = vunpack.c.l.b16 %v3299
    %v3433 = vunpack.c.l.b16 %v3300
    %v3434 = vunpack.c.l.b16 %v3301
    %v3435 = vunpack.c.l.b16 %v3302
    %v3436 = vunpack.c.l.b16 %v3303
    %v3437 = vunpack.c.l.b16 %v3304
    %v3438 = vunpack.c.l.b16 %v3305
    %v3439 = vunpack.c.l.b16 %v3306
    %v3440 = vunpack.c.l.b16 %v3307
    %v3441 = vunpack.c.l.b16 %v3308
    %v3442 = vunpack.c.l.b16 %v3309
    %v3443 = vunpack.c.l.b16 %v3310
    %v3444 = vunpack.c.l.b16 %v3311
    %v3445 = vunpack.c.l.b16 %v3312
    %v3446 = vunpack.c.l.b16 %v3313
    %v3447 = vunpack.c.l.b16 %v3314
    %v3448 = vunpack.c.l.b16 %v3315
    %v3449 = vunpack.c.l.b16 %v3316
    %v3450 = vunpack.c.l.b16 %v3317
    %v3451 = vpack.c.b16 %v3388, %v3387
    %v3452 = vpack.c.b16 %v3390, %v3389
    %v3453 = vpack.c.b16 %v3392, %v3391
    %v3454 = vpack.c.b16 %v3394, %v3393
    %v3455 = vpack.c.b16 %v3396, %v3395
    %v3456 = vpack.c.b16 %v3398, %v3397
    %v3457 = vpack.c.b16 %v3400, %v3399
    %v3458 = vpack.c.b16 %v3402, %v3401
    %v3459 = vpack.c.b16 %v3404, %v3403
    %v3460 = vpack.c.b16 %v3406, %v3405
    %v3461 = vpack.c.b16 %v3408, %v3407
    %v3462 = vpack.c.b16 %v3410, %v3409
    %v3463 = vpack.c.b16 %v3412, %v3411
    %v3464 = vpack.c.b16 %v3414, %v3413
    %v3465 = vpack.c.b16 %v3416, %v3415
    %v3466 = vpack.c.b16 %v3418, %v3417
    %v3467 = vpack.c.b16 %v3420, %v3419
    %v3468 = vpack.c.b16 %v3422, %v3421
    %v3469 = vpack.c.b16 %v3424, %v3423
    %v3470 = vpack.c.b16 %v3426, %v3425
    %v3471 = vpack.c.b16 %v3428, %v3427
    %v3472 = vpack.c.b16 %v3430, %v3429
    %v3473 = vpack.c.b16 %v3432, %v3431
    %v3474 = vpack.c.b16 %v3434, %v3433
    %v3475 = vpack.c.b16 %v3436, %v3435
    %v3476 = vpack.c.b16 %v3438, %v3437
    %v3477 = vpack.c.b16 %v3440, %v3439
    %v3478 = vpack.c.b16 %v3442, %v3441
    %v3479 = vpack.c.b16 %v3444, %v3443
    %v3480 = vpack.c.b16 %v3446, %v3445
    %v3481 = vpack.c.b16 %v3448, %v3447
    %v3482 = vpack.c.b16 %v3450, %v3449
    %3515 = vmatpush.bf16.msra.mxu0 %v3458
    %3516 = vmatpush.bf16.msra.mxu0 %v3457
    %3517 = vmatpush.bf16.msra.mxu0 %v3456
    %3518 = vmatpush.bf16.msra.mxu0 %v3455
    %3519 = vmatpush.bf16.msra.mxu0 %v3454
    %3520 = vmatpush.bf16.msra.mxu0 %v3453
    %3521 = vmatpush.bf16.msra.mxu0 %v3452
    %3522 = vmatpush.bf16.msra.mxu0 %v3451
    %3523 = vmatmul.bf16.gmra.mxu0 %v3249
    %v3524 = vpop.f32.mrf.mxu0
    %v3525 = vadd.f32 %v3321, %v3524
    %v3526 = vpop.f32.mrf.mxu0
    %3527 = vdwg.mxu0
    %3528 = vmatpush.bf16.msra.mxu0 %v3466
    %3529 = vmatpush.bf16.msra.mxu0 %v3465
    %3530 = vmatpush.bf16.msra.mxu0 %v3464
    %3531 = vmatpush.bf16.msra.mxu0 %v3463
    %3532 = vmatpush.bf16.msra.mxu0 %v3462
    %3533 = vmatpush.bf16.msra.mxu0 %v3461
    %3534 = vmatpush.bf16.msra.mxu0 %v3460
    %3535 = vmatpush.bf16.msra.mxu0 %v3459
    %3536 = vmatmul.bf16.gmra.mxu0 %v3250
    %v3537 = vpop.f32.mrf.mxu0
    %v3538 = vadd.f32 %v3525, %v3537
    %v3539 = vpop.f32.mrf.mxu0
    %3540 = vdwg.mxu0
    %3541 = vmatpush.bf16.msra.mxu0 %v3474
    %3542 = vmatpush.bf16.msra.mxu0 %v3473
    %3543 = vmatpush.bf16.msra.mxu0 %v3472
    %3544 = vmatpush.bf16.msra.mxu0 %v3471
    %3545 = vmatpush.bf16.msra.mxu0 %v3470
    %3546 = vmatpush.bf16.msra.mxu0 %v3469
    %3547 = vmatpush.bf16.msra.mxu0 %v3468
    %3548 = vmatpush.bf16.msra.mxu0 %v3467
    %3549 = vmatmul.bf16.gmra.mxu0 %v3251
    %v3550 = vpop.f32.mrf.mxu0
    %v3551 = vadd.f32 %v3538, %v3550
    %v3552 = vpop.f32.mrf.mxu0
    %3553 = vdwg.mxu0
    %3554 = vmatpush.bf16.msra.mxu0 %v3482
    %3555 = vmatpush.bf16.msra.mxu0 %v3481
    %3556 = vmatpush.bf16.msra.mxu0 %v3480
    %3557 = vmatpush.bf16.msra.mxu0 %v3479
    %3558 = vmatpush.bf16.msra.mxu0 %v3478
    %3559 = vmatpush.bf16.msra.mxu0 %v3477
    %3560 = vmatpush.bf16.msra.mxu0 %v3476
    %3561 = vmatpush.bf16.msra.mxu0 %v3475
    %3562 = vmatmul.bf16.gmra.mxu0 %v3252
    %v3563 = vpop.f32.mrf.mxu0
    %v3564 = vadd.f32 %v3551, %v3563
    %v3565 = vpop.f32.mrf.mxu0
    %3566 = vdwg.mxu0
    %v3567 = vadd.f32 %v2858, %v3564
    %v3568 = vld [vmem:[%s16] sm:$0x1]
    %v3569 = vld [vmem:[%s17] sm:$0x1]
    %v3570 = vsel %vm476, %v3567, 0.0
    %3571 = vadd.xlane.f32.xlu0 %v3570
    %v3572 = vpop.xlane.xlu0 %3571
    %v3573 = vmul.f32 %v3572, %v594
    %v3574 = vsub.f32 %v3567, %v3573
    %v3575 = vmul.f32 %v3574, %v3574
    %v3576 = vsel %vm476, %v3575, 0.0
    %3577 = vadd.xlane.f32.xlu0 %v3576
    %v3578 = vpop.xlane.xlu0 %3577
    %v3579 = vmul.f32 %v3578, %v594
    %v3580 = vadd.f32 %v3579, 1e-06
    %v3581 = vrsqrt.pop %v3580
    %v3582 = vmul.f32 %v3581, %v3580
    %v3583 = vmul.f32 %v3582, %v3581
    %v3584 = vmul.f32 0.5, %v3583
    %v3585 = vsub.f32 1.5, %v3584
    %v3586 = vmul.f32 %v3581, %v3585
    %vm3587 = vweird.f32 %v3580
    %vm3588 = vweird.f32 %v3581
    %vm3589 = vmor %vm3587, %vm3588
    %v3590 = vsel %vm3589, %v3581, %v3586
    %v3591 = vmul.f32 %v3574, %v3590
    %v3592 = vmul.f32 %v3591, %v3568
    %v3593 = vadd.f32 %v3592, %v3569
    %3594 = vst [vmem:[#allocation2] sm:$0x1] %v3593
    %v3595 = vld [vmem:[%s16] sm:$0x1]
    %v3596 = vld [vmem:[%s17] sm:$0x1]
    %vm3597 = vcmask 1045509
    %v3598 = vsel %vm3597, %v3567, 0.0
    %3599 = vadd.xlane.f32.xlu0 %v3598
    %v3600 = vpop.xlane.xlu0 %3599
    %v3601 = vmul.f32 %v3600, %v594
    %v3602 = vsub.f32 %v3567, %v3601
    %v3603 = vmul.f32 %v3602, %v3602
    %v3604 = vsel %vm3597, %v3603, 0.0
    %3605 = vadd.xlane.f32.xlu0 %v3604
    %v3606 = vpop.xlane.xlu0 %3605
    %v3607 = vmul.f32 %v3606, %v594
    %v3608 = vadd.f32 %v3607, 1e-06
    %v3609 = vrsqrt.pop %v3608
    %v3610 = vmul.f32 %v3609, %v3608
    %v3611 = vmul.f32 %v3610, %v3609
    %v3612 = vmul.f32 0.5, %v3611
    %v3613 = vsub.f32 1.5, %v3612
    %v3614 = vmul.f32 %v3609, %v3613
    %vm3615 = vweird.f32 %v3608
    %vm3616 = vweird.f32 %v3609
    %vm3617 = vmor %vm3615, %vm3616
    %v3618 = vsel %vm3617, %v3609, %v3614
    %v3619 = vmul.f32 %v3602, %v3618
    %v3621 = vperm.slane %v3595, 0
    %v3623 = vmul.f32 %v3619, %v3621
    %v3625 = vperm.slane %v3596, 0
    %v3627 = vadd.f32 %v3623, %v3625
    %3628 = vst [vmem:[#allocation2 - $0x4] sm:$0x20] %v3627
    // Predicated region
    $region74: #{encoder_forward.1} parent=1 // pred_check
      _
    $region75: #{encoder_forward.1} parent=1 // pred_check_branch
      %3630 = sbr.rel (0) target = $region77
    $region76: #{encoder_forward.1} parent=1 // pred_region
      %3632 = vsyncadd [#allocation3], 0
      %s3634 = sshll.u32 [#allocation2], 4
      %s3635 = int_to_ptr.vmem [resolvable:$true] %s3634
      %s3636 = sshll.u32 %s18, 4
      %s3637 = int_to_ptr.hbm [resolvable:$true] %s3636
      %3639 = dma.vmem_to_hbm [thread:$0]  %s3635, 32, %s3637, [#allocation3]
    $region77: #{encoder_forward.1} parent=1 // pred_fallthru
      _
    // Predicated region
    $region78: #{encoder_forward.1} parent=1 // pred_check
      _
    $region79: #{encoder_forward.1} parent=1 // pred_check_branch
      %3641 = sbr.rel (0) target = $region81
    $region80: #{encoder_forward.1} parent=1 // pred_region
      %3643 = dma.done [#allocation3], 32
    $region81: #{encoder_forward.1} parent=1 // pred_fallthru
      _
    %3644 = vsyncpa [#allocation3], 1

</llo_original>
